<compile_context>
chip_gen: v7x
topology: tpu7x:2x2x1
jax: 0.10.0
libtpu: 0.0.40
codegen_flags: <defaults>
</compile_context>

<pallas_src>
import functools

import jax
import jax.numpy as jnp
from jax.experimental import pallas as pl
from jax.experimental.pallas import tpu as pltpu

LEAKY_SLOPE = 0.01        # nn.LeakyReLU() default inside BasicFullyConnectedNet
INV_LRELU_ALPHA = 0.95    # activation='lrelu' -> InvLeakyRelu(alpha=0.95)
_LOGDET_WIDTH = 128       # lane-dense logdet output slab (unmasked stores)

# Matmul precision used consistently in BOTH the kernel and the pure-JAX
# reference.  DEFAULT demotes f32 operands to bf16-class MXU passes (validated
# to hold the 1e-3 tolerance at these parameter scales).  For strict f32
# fidelity use jax.lax.Precision.HIGHEST (~3x MXU cost); for maximum throughput
# at scale, store/stream the packed weights as bf16 instead.
MATMUL_PRECISION = jax.lax.Precision.DEFAULT


def _round_up(a, m):
    return (a + m - 1) // m * m


def _tpu_generation(default=6):
    """Best-effort TPU generation detection (used only for tiling/layout knobs)."""
    try:
        kind = jax.devices()[0].device_kind.lower().replace(" ", "")
    except Exception:
        return default
    for gen in (7, 6, 5, 4, 3, 2):
        if f"v{gen}" in kind or (gen == 7 and "7x" in kind):
            return gen
    return default


def _choose_batch_tile(batch, gen):
    """Pad the batch to a sublane multiple and pick a batch tile.

    - tile cap 256 on v6e/v7x (fills the 256-wide MXU M dimension), 128 on v5e.
    - prefer >= 2 grid steps so the 'parallel' batch axis gives the second
      TensorCore (v7x) and the DMA pipeline something to overlap.
    """
    bp = _round_up(max(batch, 8), 8)
    cap = 256 if gen >= 6 else 128
    for tb in (256, 128, 64, 32, 16, 8):
        if tb <= cap and tb <= bp and _round_up(bp, tb) // tb >= 2:
            return _round_up(bp, tb), tb
    tb = min(cap, bp)
    return _round_up(bp, tb), tb


def _flow_kernel(x0_ref, x1_ref, loc_ref, scale_ref,
                 w_in_ref, b_in_ref, w_hid_ref, b_hid_ref, w_out_ref, b_out_ref,
                 perm_ref, o_ref, logdet_ref, *, n_flows, depth, c_half, s_pad):
    h0 = x0_ref[...].astype(jnp.float32)          # (tb, C2)  lower half
    h1 = x1_ref[...].astype(jnp.float32)          # (tb, C2)  upper half
    tb = h0.shape[0]
    # Accumulate every coupling-step s into a lockstep VPU accumulator; a single
    # cross-lane (XLU) reduce happens once after the flow loop.
    s_acc = jnp.zeros((tb, c_half), jnp.float32)

    def fused_net(z, fi):
        """Fused s/t BasicFullyConnectedNet pair (block-diagonal packing).

        Returns (tb, s_pad + C2): [:, :C2] = pre-tanh s output,
        [:, s_pad:s_pad+C2] = t output (s_pad is a lane-aligned offset on
        v6e/v7x so both slices are vreg-aligned).
        """
        y = jnp.dot(z, w_in_ref[fi], preferred_element_type=jnp.float32,
                    precision=MATMUL_PRECISION) + b_in_ref[fi]
        y = jnp.where(y >= 0, y, LEAKY_SLOPE * y)
        for d in range(depth):
            hd = fi * depth + d
            y = jnp.dot(y, w_hid_ref[hd], preferred_element_type=jnp.float32,
                        precision=MATMUL_PRECISION) + b_hid_ref[hd]
            y = jnp.where(y >= 0, y, LEAKY_SLOPE * y)
        y = jnp.dot(y, w_out_ref[fi], preferred_element_type=jnp.float32,
                    precision=MATMUL_PRECISION) + b_out_ref[fi]
        return y

    # Static unroll over flows: everything stays in vregs, no grid-step
    # overhead and no h/logdet VMEM round-trips between flows.
    for f in range(n_flows):
        # ---- ActNorm: h = scale * (h + loc); the batch-independent logdet
        #      term sum(log|scale|) is precomputed once in the wrapper.
        h0 = scale_ref[2 * f + 0] * (h0 + loc_ref[2 * f + 0])
        h1 = scale_ref[2 * f + 1] * (h1 + loc_ref[2 * f + 1])

        # ---- InvLeakyRelu(alpha=0.95); zero logdet contribution.
        h0 = jnp.where(h0 >= 0, h0, INV_LRELU_ALPHA * h0)
        h1 = jnp.where(h1 >= 0, h1, INV_LRELU_ALPHA * h1)

        # ---- Coupling step i=0: condition on h0, transform h1.
        y = fused_net(h0, 2 * f + 0)
        s = jnp.tanh(y[:, :c_half])
        t = y[:, s_pad:s_pad + c_half]
        h1 = h1 * jnp.exp(s) + t
        s_acc = s_acc + s

        # ---- Coupling step i=1: condition on (new) h1, transform h0.
        y = fused_net(h1, 2 * f + 1)
        s = jnp.tanh(y[:, :c_half])
        t = y[:, s_pad:s_pad + c_half]
        h0 = h0 * jnp.exp(s) + t
        s_acc = s_acc + s

        # ---- Shuffle: the full pre-shuffle state is [h1, h0]; the permutation
        #      matrix is pre-split into four C2xC2 blocks so no concatenate or
        #      lane-offset slicing is needed inside the flow loop.
        p00 = perm_ref[f * 4 + 0]   # P[:C2, :C2]
        p01 = perm_ref[f * 4 + 1]   # P[:C2, C2:]
        p10 = perm_ref[f * 4 + 2]   # P[C2:, :C2]
        p11 = perm_ref[f * 4 + 3]   # P[C2:, C2:]
        nh0 = (jnp.dot(h1, p00, preferred_element_type=jnp.float32,
                       precision=MATMUL_PRECISION)
               + jnp.dot(h0, p10, preferred_element_type=jnp.float32,
                         precision=MATMUL_PRECISION))
        nh1 = (jnp.dot(h1, p01, preferred_element_type=jnp.float32,
                       precision=MATMUL_PRECISION)
               + jnp.dot(h0, p11, preferred_element_type=jnp.float32,
                         precision=MATMUL_PRECISION))
        h0, h1 = nh0, nh1

    # Merged lane-contiguous output slab: one output DMA per grid step.
    o_ref[...] = jnp.concatenate([h0, h1], axis=-1).astype(o_ref.dtype)
    # Single cross-lane reduce; replicate across 128 lanes so the store is an
    # unmasked, lane-dense vst (extra HBM bytes are negligible).
    ld = jnp.sum(s_acc, axis=-1, keepdims=True)
    logdet_ref[...] = jnp.broadcast_to(ld, logdet_ref.shape)


def pack_params(params, *, lane_align_st=None):
    """One-time packing of raw per-net parameters into fused kernel arrays.

    Raw net layout along axis 1 is [s0, s1, t0, t1]; coupling step i uses s-net
    i and t-net 2+i.  The s/t pair is fused: w_in along the output dim, w_hid
    block-diagonally, and w_out block-diagonally with the t block placed at a
    lane-aligned column offset (v6e/v7x).  The zero blocks are exact, so the
    results are bit-compatible with the unfused nets.

    Call this ONCE at init; the forward hot path only consumes the result.
    """
    gen = _tpu_generation()
    if lane_align_st is None:
        # v6e/v7x (256-wide MXU): padding the fused s|t output so the t block
        # starts at lane 128 keeps the post-matmul s/t split vreg-aligned with
        # no extra MXU passes; on v5e (128-wide MXU) it would add a pass, so
        # keep the compact layout there.
        lane_align_st = gen >= 6

    loc = params["loc"]        # (F, 1, C)
    scale = params["scale"]    # (F, 1, C)
    w_in = params["w_in"]      # (F, 4, C2, Hd)
    b_in = params["b_in"]      # (F, 4, 1, Hd)
    w_hid = params["w_hid"]    # (F, 4, D, Hd, Hd)
    b_hid = params["b_hid"]    # (F, 4, D, 1, Hd)
    w_out = params["w_out"]    # (F, 4, Hd, C2)
    b_out = params["b_out"]    # (F, 4, 1, C2)
    P = params["perm"]         # (F, C, C)

    F_, _, C = loc.shape
    C2 = C // 2
    Hd = w_in.shape[-1]
    D = w_hid.shape[2]
    s_pad = _round_up(C2, 128) if lane_align_st else C2

    # ActNorm params split into halves: (F, 2, 1, C2) -> (2F, 1, C2)
    loc_h = loc.reshape(F_, 1, 2, C2).transpose(0, 2, 1, 3).reshape(F_ * 2, 1, C2)
    scale_h = scale.reshape(F_, 1, 2, C2).transpose(0, 2, 1, 3).reshape(F_ * 2, 1, C2)

    # Fused input layer: (F, 2, C2, 2Hd)
    w_in_f = jnp.concatenate([w_in[:, 0:2], w_in[:, 2:4]], axis=-1)
    b_in_f = jnp.concatenate([b_in[:, 0:2], b_in[:, 2:4]], axis=-1)

    # Fused (block-diagonal) hidden layers: (F, 2, D, 2Hd, 2Hd).
    # Scaling guard (documented, not needed at Hd=32): keep this fusion only
    # while 2*Hd <= MXU width (128 on v5e, 256 on v6e/v7x); above that the zero
    # blocks double the MXU passes and the two Hd x Hd matmuls should run
    # separately.
    zh = jnp.zeros((F_, 2, D, Hd, Hd), w_hid.dtype)
    w_hid_f = jnp.concatenate(
        [jnp.concatenate([w_hid[:, 0:2], zh], axis=-1),
         jnp.concatenate([zh, w_hid[:, 2:4]], axis=-1)], axis=-2)
    b_hid_f = jnp.concatenate([b_hid[:, 0:2], b_hid[:, 2:4]], axis=-1)

    # Fused (block-diagonal) output layer with the t block starting at column
    # s_pad: (F, 2, 2Hd, s_pad + C2).
    w_out_f = jnp.zeros((F_, 2, 2 * Hd, s_pad + C2), w_out.dtype)
    w_out_f = w_out_f.at[:, :, :Hd, :C2].set(w_out[:, 0:2])
    w_out_f = w_out_f.at[:, :, Hd:, s_pad:].set(w_out[:, 2:4])
    b_out_f = jnp.zeros((F_, 2, 1, s_pad + C2), b_out.dtype)
    b_out_f = b_out_f.at[..., :C2].set(b_out[:, 0:2])
    b_out_f = b_out_f.at[..., s_pad:].set(b_out[:, 2:4])

    # Permutation blocks: pb[f, r, c] = P[f, r*C2:(r+1)*C2, c*C2:(c+1)*C2]
    pb = P.reshape(F_, 2, C2, 2, C2).transpose(0, 1, 3, 2, 4)   # (F, 2, 2, C2, C2)

    packed = dict(
        loc=loc_h,
        scale=scale_h,
        w_in=w_in_f.reshape(F_ * 2, C2, 2 * Hd),
        b_in=b_in_f.reshape(F_ * 2, 1, 2 * Hd),
        w_hid=w_hid_f.reshape(F_ * 2 * D, 2 * Hd, 2 * Hd),
        b_hid=b_hid_f.reshape(F_ * 2 * D, 1, 2 * Hd),
        w_out=w_out_f.reshape(F_ * 2, 2 * Hd, s_pad + C2),
        b_out=b_out_f.reshape(F_ * 2, 1, s_pad + C2),
        perm=pb.reshape(F_ * 4, C2, C2),
    )
    # Batch-independent ActNorm logdet (H = W = 1), summed over all flows.
    actnorm_logdet = jnp.sum(jnp.log(jnp.abs(scale)))
    return packed, actnorm_logdet


@functools.partial(jax.jit, static_argnames=("single_buffer_consts",))
def _flow_forward_impl(x, packed, actnorm_logdet, *, single_buffer_consts=True):
    B, C, Hs, Ws = x.shape
    C2 = packed["loc"].shape[-1]
    assert Hs == 1 and Ws == 1 and C == 2 * C2, "expected (B, C, 1, 1) input"
    two_f = packed["loc"].shape[0]
    n_flows = two_f // 2
    depth = packed["w_hid"].shape[0] // two_f
    s_pad = packed["w_out"].shape[-1] - C2

    gen = _tpu_generation()
    Bp, tb = _choose_batch_tile(B, gen)
    nb = Bp // tb

    x2d = x.reshape(B, C).astype(jnp.float32)
    if Bp != B:
        x2d = jnp.pad(x2d, ((0, Bp - B), (0, 0)))
    # Halves split outside the kernel (no non-aligned lane slicing inside).
    x0 = x2d[:, :C2]
    x1 = x2d[:, C2:]

    kernel = functools.partial(_flow_kernel, n_flows=n_flows, depth=depth,
                               c_half=C2, s_pad=s_pad)

    def batch_spec(tail):
        nt = len(tail)
        return pl.BlockSpec((tb,) + tail, lambda b: (b,) + (0,) * nt)

    def const_spec(arr):
        n = arr.ndim
        kwargs = {}
        if single_buffer_consts:
            # Constant-index inputs are double-buffered by default; request a
            # single buffer (matters on v7x's 64 MiB VMEM for larger configs).
            kwargs["pipeline_mode"] = pl.Buffered(1)
        return pl.BlockSpec(arr.shape, lambda b: (0,) * n, **kwargs)

    const_names = ("loc", "scale", "w_in", "b_in", "w_hid", "b_hid",
                   "w_out", "b_out", "perm")
    const_arrays = [packed[k] for k in const_names]

    in_specs = ([batch_spec((C2,)), batch_spec((C2,))]
                + [const_spec(a) for a in const_arrays])
    out_specs = [batch_spec((C,)), batch_spec((_LOGDET_WIDTH,))]

    # Explicit VMEM budget: weights (x1 or x2 depending on buffering) + double-
    # buffered I/O tiles + headroom; capped well below v7x's 64 MiB per core.
    const_bytes = sum(a.size * a.dtype.itemsize for a in const_arrays)
    io_bytes = 4 * tb * (2 * C2 + C + _LOGDET_WIDTH)
    buf = 1 if single_buffer_consts else 2
    vmem_limit = int(min(max(buf * const_bytes + 2 * io_bytes + (4 << 20),
                             16 << 20), 48 << 20))

    h_full, ld_full = pl.pallas_call(
        kernel,
        out_shape=(jax.ShapeDtypeStruct((Bp, C), jnp.float32),
                   jax.ShapeDtypeStruct((Bp, _LOGDET_WIDTH), jnp.float32)),
        grid=(nb,),
        in_specs=in_specs,
        out_specs=out_specs,
        compiler_params=pltpu.CompilerParams(
            dimension_semantics=("parallel",),
            vmem_limit_bytes=vmem_limit,
        ),
    )(x0, x1, *const_arrays)

    h = h_full[:B].reshape(B, C, 1, 1)
    logdet = ld_full[:B, 0] + actnorm_logdet
    return h, logdet


def unconditional_flow_forward(x, packed, actnorm_logdet):
    """Forward pass of UnconditionalFlow (reverse=False).

    `packed` / `actnorm_logdet` come from a one-time `pack_params` call, so the
    hot path is a single jitted pallas_call plus trivial reshapes.
    """
    try:
        return _flow_forward_impl(x, packed, actnorm_logdet,
                                  single_buffer_consts=True)
    except Exception:
        # pipeline_mode=pl.Buffered(1) on top-level pallas_call inputs is a
        # newer Pallas feature; fall back to default double-buffered constants
        # (identical numerics) if this build rejects it.
        return _flow_forward_impl(x, packed, actnorm_logdet,
                                  single_buffer_consts=False)


def init_params(key, in_channels, hidden_dim, hidden_depth, n_flows):
    """Deterministic synthetic parameters (PyTorch-Linear-style uniform scaling)."""
    C, H, D, F = in_channels, hidden_dim, hidden_depth, n_flows
    C2 = C // 2
    ks = jax.random.split(key, 9)

    def u(k, shape, fan_in):
        return jax.random.uniform(k, shape, jnp.float32, -1.0, 1.0) / jnp.sqrt(fan_in)

    params = dict(
        # ActNorm params (non-trivial deterministic values to exercise the math)
        loc=0.1 * jax.random.normal(ks[0], (F, 1, C), jnp.float32),
        scale=1.0 + 0.2 * jax.random.normal(ks[1], (F, 1, C), jnp.float32),
        # 4 nets per flow: [s0, s1, t0, t1]
        w_in=u(ks[2], (F, 4, C2, H), C2),
        b_in=u(ks[3], (F, 4, 1, H), C2),
        w_hid=u(ks[4], (F, 4, D, H, H), H),
        b_hid=u(ks[5], (F, 4, D, 1, H), H),
        w_out=u(ks[6], (F, 4, H, C2), H),
        b_out=u(ks[7], (F, 4, 1, C2), H),
    )
    perm_keys = jax.random.split(ks[8], F)
    perms = []
    for f in range(F):
        idx = jax.random.permutation(perm_keys[f], C)
        # out[:, i] = x[:, idx[i]]  <=>  out = x @ P with P[idx[i], i] = 1
        P = jnp.zeros((C, C), jnp.float32).at[idx, jnp.arange(C)].set(1.0)
        perms.append(P)
    params["perm"] = jnp.stack(perms, axis=0)
    return params


def reference_forward(x, params, *, hidden_depth):
    """Pure-JAX reference of UnconditionalFlow.forward(x, reverse=False)."""
    B, C = x.shape[0], x.shape[1]
    C2 = C // 2
    F = params["loc"].shape[0]
    h = x.reshape(B, C).astype(jnp.float32)
    logdet = jnp.zeros((B,), jnp.float32)

    def mlp(z, f, k, use_tanh):
        y = jnp.dot(z, params["w_in"][f, k],
                    precision=MATMUL_PRECISION) + params["b_in"][f, k]
        y = jnp.where(y >= 0, y, LEAKY_SLOPE * y)
        for d in range(hidden_depth):
            y = jnp.dot(y, params["w_hid"][f, k, d],
                        precision=MATMUL_PRECISION) + params["b_hid"][f, k, d]
            y = jnp.where(y >= 0, y, LEAKY_SLOPE * y)
        y = jnp.dot(y, params["w_out"][f, k],
                    precision=MATMUL_PRECISION) + params["b_out"][f, k]
        return jnp.tanh(y) if use_tanh else y

    for f in range(F):
        h = params["scale"][f] * (h + params["loc"][f])
        logdet = logdet + jnp.sum(jnp.log(jnp.abs(params["scale"][f])))
        h = jnp.where(h >= 0, h, INV_LRELU_ALPHA * h)
        x0, x1 = h[:, :C2], h[:, C2:]
        s0 = mlp(x0, f, 0, True)
        t0 = mlp(x0, f, 2, False)
        x1 = x1 * jnp.exp(s0) + t0
        logdet = logdet + jnp.sum(s0, axis=1)
        s1 = mlp(x1, f, 1, True)
        t1 = mlp(x1, f, 3, False)
        x0 = x0 * jnp.exp(s1) + t1
        logdet = logdet + jnp.sum(s1, axis=1)
        h = jnp.concatenate([x1, x0], axis=1)
        h = jnp.dot(h, params["perm"][f], precision=MATMUL_PRECISION)
    return h.reshape(B, C, 1, 1), logdet


if __name__ == "__main__":
    # UnconditionalFlow(in_channels=16, hidden_dim=32, hidden_depth=2, n_flows=2)
    B, C, HID, DEPTH, NFLOWS = 8, 16, 32, 2, 2

    key = jax.random.PRNGKey(0)
    kx, kp = jax.random.split(key)
    x = jax.random.normal(kx, (B, C, 1, 1), jnp.float32)
    params = init_params(kp, C, HID, DEPTH, NFLOWS)

    # Pack ONCE at init time; the per-call hot path never repeats this work.
    packed, actnorm_ld = pack_params(params)
    packed, actnorm_ld = jax.block_until_ready((packed, actnorm_ld))

    out, logdet = unconditional_flow_forward(x, packed, actnorm_ld)
    out, logdet = jax.block_until_ready((out, logdet))

    ref_out, ref_logdet = reference_forward(x, params, hidden_depth=DEPTH)
    ref_out, ref_logdet = jax.block_until_ready((ref_out, ref_logdet))

    assert out.shape == (B, C, 1, 1) and logdet.shape == (B,)
    assert jnp.allclose(out, ref_out, atol=1e-3, rtol=1e-3), "output mismatch"
    assert jnp.allclose(logdet, ref_logdet, atol=1e-3, rtol=1e-3), "logdet mismatch"
    print("KERNEL_OK")
</pallas_src>

<mosaic_0001>
module attributes {stable_mosaic.version = 11 : i64} {
  func.func @_flow_kernel(%arg0: i32, %arg1: memref<8x8xf32, #tpu.memory_space<vmem>>, %arg2: memref<8x8xf32, #tpu.memory_space<vmem>>, %arg3: memref<4x1x8xf32, #tpu.memory_space<vmem>>, %arg4: memref<4x1x8xf32, #tpu.memory_space<vmem>>, %arg5: memref<4x8x64xf32, #tpu.memory_space<vmem>>, %arg6: memref<4x1x64xf32, #tpu.memory_space<vmem>>, %arg7: memref<8x64x64xf32, #tpu.memory_space<vmem>>, %arg8: memref<8x1x64xf32, #tpu.memory_space<vmem>>, %arg9: memref<4x64x136xf32, #tpu.memory_space<vmem>>, %arg10: memref<4x1x136xf32, #tpu.memory_space<vmem>>, %arg11: memref<8x8x8xf32, #tpu.memory_space<vmem>>, %arg12: memref<8x16xf32, #tpu.memory_space<vmem>>, %arg13: memref<8x128xf32, #tpu.memory_space<vmem>>) attributes {dimension_semantics = [#tpu.dimension_semantics<parallel>], iteration_bounds = array<i64: 1>, scalar_prefetch = 0 : i64, scratch_operands = 0 : i64, tpu.core_type = #tpu.core_type<tc>, window_params = [{transform_indices = @transform_0, window_bounds = array<i64: 8, 8>}, {transform_indices = @transform_1, window_bounds = array<i64: 8, 8>}, {pipeline_mode = #tpu.pipeline_mode<synchronous>, transform_indices = @transform_2, window_bounds = array<i64: 4, 1, 8>}, {pipeline_mode = #tpu.pipeline_mode<synchronous>, transform_indices = @transform_3, window_bounds = array<i64: 4, 1, 8>}, {pipeline_mode = #tpu.pipeline_mode<synchronous>, transform_indices = @transform_4, window_bounds = array<i64: 4, 8, 64>}, {pipeline_mode = #tpu.pipeline_mode<synchronous>, transform_indices = @transform_5, window_bounds = array<i64: 4, 1, 64>}, {pipeline_mode = #tpu.pipeline_mode<synchronous>, transform_indices = @transform_6, window_bounds = array<i64: 8, 64, 64>}, {pipeline_mode = #tpu.pipeline_mode<synchronous>, transform_indices = @transform_7, window_bounds = array<i64: 8, 1, 64>}, {pipeline_mode = #tpu.pipeline_mode<synchronous>, transform_indices = @transform_8, window_bounds = array<i64: 4, 64, 136>}, {pipeline_mode = #tpu.pipeline_mode<synchronous>, transform_indices = @transform_9, window_bounds = array<i64: 4, 1, 136>}, {pipeline_mode = #tpu.pipeline_mode<synchronous>, transform_indices = @transform_10, window_bounds = array<i64: 8, 8, 8>}, {transform_indices = @transform_11, window_bounds = array<i64: 8, 16>}, {transform_indices = @transform_12, window_bounds = array<i64: 8, 128>}]} {
    %c0 = arith.constant 0 : index
    %c0_0 = arith.constant 0 : index
    %0 = vector.load %arg1[%c0, %c0_0] : memref<8x8xf32, #tpu.memory_space<vmem>>, vector<8x8xf32>
    %c0_1 = arith.constant 0 : index
    %c0_2 = arith.constant 0 : index
    %1 = vector.load %arg2[%c0_1, %c0_2] : memref<8x8xf32, #tpu.memory_space<vmem>>, vector<8x8xf32>
    %cst = arith.constant 0.000000e+00 : f32
    %2 = vector.broadcast %cst : f32 to vector<8x8xf32>
    %c0_3 = arith.constant 0 : index
    %c0_4 = arith.constant 0 : index
    %c0_5 = arith.constant 0 : index
    %3 = vector.load %arg4[%c0_3, %c0_4, %c0_5] : memref<4x1x8xf32, #tpu.memory_space<vmem>>, vector<1x1x8xf32>
    %4 = vector.shape_cast %3 : vector<1x1x8xf32> to vector<1x8xf32>
    %c0_6 = arith.constant 0 : index
    %c0_7 = arith.constant 0 : index
    %c0_8 = arith.constant 0 : index
    %5 = vector.load %arg3[%c0_6, %c0_7, %c0_8] : memref<4x1x8xf32, #tpu.memory_space<vmem>>, vector<1x1x8xf32>
    %6 = vector.shape_cast %5 : vector<1x1x8xf32> to vector<1x8xf32>
    %7 = vector.broadcast %6 : vector<1x8xf32> to vector<8x8xf32>
    %8 = arith.addf %0, %7 : vector<8x8xf32>
    %9 = vector.broadcast %4 : vector<1x8xf32> to vector<8x8xf32>
    %10 = arith.mulf %9, %8 : vector<8x8xf32>
    %c1 = arith.constant 1 : index
    %c0_9 = arith.constant 0 : index
    %c0_10 = arith.constant 0 : index
    %11 = vector.load %arg4[%c1, %c0_9, %c0_10] : memref<4x1x8xf32, #tpu.memory_space<vmem>>, vector<1x1x8xf32>
    %12 = vector.shape_cast %11 : vector<1x1x8xf32> to vector<1x8xf32>
    %c1_11 = arith.constant 1 : index
    %c0_12 = arith.constant 0 : index
    %c0_13 = arith.constant 0 : index
    %13 = vector.load %arg3[%c1_11, %c0_12, %c0_13] : memref<4x1x8xf32, #tpu.memory_space<vmem>>, vector<1x1x8xf32>
    %14 = vector.shape_cast %13 : vector<1x1x8xf32> to vector<1x8xf32>
    %15 = vector.broadcast %14 : vector<1x8xf32> to vector<8x8xf32>
    %16 = arith.addf %1, %15 : vector<8x8xf32>
    %17 = vector.broadcast %12 : vector<1x8xf32> to vector<8x8xf32>
    %18 = arith.mulf %17, %16 : vector<8x8xf32>
    %cst_14 = arith.constant 0.000000e+00 : f32
    %19 = vector.broadcast %cst_14 : f32 to vector<8x8xf32>
    %20 = arith.cmpf oge, %10, %19 : vector<8x8xf32>
    %cst_15 = arith.constant 0.949999988 : f32
    %21 = vector.broadcast %cst_15 : f32 to vector<8x8xf32>
    %22 = arith.mulf %21, %10 : vector<8x8xf32>
    %23 = arith.select %20, %10, %22 : vector<8x8xi1>, vector<8x8xf32>
    %cst_16 = arith.constant 0.000000e+00 : f32
    %24 = vector.broadcast %cst_16 : f32 to vector<8x8xf32>
    %25 = arith.cmpf oge, %18, %24 : vector<8x8xf32>
    %cst_17 = arith.constant 0.949999988 : f32
    %26 = vector.broadcast %cst_17 : f32 to vector<8x8xf32>
    %27 = arith.mulf %26, %18 : vector<8x8xf32>
    %28 = arith.select %25, %18, %27 : vector<8x8xi1>, vector<8x8xf32>
    %c0_18 = arith.constant 0 : index
    %c0_19 = arith.constant 0 : index
    %c0_20 = arith.constant 0 : index
    %29 = vector.load %arg5[%c0_18, %c0_19, %c0_20] : memref<4x8x64xf32, #tpu.memory_space<vmem>>, vector<1x8x64xf32>
    %30 = vector.shape_cast %29 : vector<1x8x64xf32> to vector<8x64xf32>
    %cst_21 = arith.constant dense<0.000000e+00> : vector<8x64xf32>
    %31 = tpu.matmul %23, %30, %cst_21 {dimension_numbers = #tpu.dot_dimension_numbers<[1], [0], [0], [1], [0, 0, 1, 1], [], []>} : vector<8x8xf32>, vector<8x64xf32>, vector<8x64xf32> -> vector<8x64xf32>
    %c0_22 = arith.constant 0 : index
    %c0_23 = arith.constant 0 : index
    %c0_24 = arith.constant 0 : index
    %32 = vector.load %arg6[%c0_22, %c0_23, %c0_24] : memref<4x1x64xf32, #tpu.memory_space<vmem>>, vector<1x1x64xf32>
    %33 = vector.shape_cast %32 : vector<1x1x64xf32> to vector<1x64xf32>
    %34 = vector.broadcast %33 : vector<1x64xf32> to vector<8x64xf32>
    %35 = arith.addf %31, %34 : vector<8x64xf32>
    %cst_25 = arith.constant 0.000000e+00 : f32
    %36 = vector.broadcast %cst_25 : f32 to vector<8x64xf32>
    %37 = arith.cmpf oge, %35, %36 : vector<8x64xf32>
    %cst_26 = arith.constant 0.00999999977 : f32
    %38 = vector.broadcast %cst_26 : f32 to vector<8x64xf32>
    %39 = arith.mulf %38, %35 : vector<8x64xf32>
    %40 = arith.select %37, %35, %39 : vector<8x64xi1>, vector<8x64xf32>
    %c0_27 = arith.constant 0 : index
    %c0_28 = arith.constant 0 : index
    %c0_29 = arith.constant 0 : index
    %41 = vector.load %arg7[%c0_27, %c0_28, %c0_29] : memref<8x64x64xf32, #tpu.memory_space<vmem>>, vector<1x64x64xf32>
    %42 = vector.shape_cast %41 : vector<1x64x64xf32> to vector<64x64xf32>
    %cst_30 = arith.constant dense<0.000000e+00> : vector<8x64xf32>
    %43 = tpu.matmul %40, %42, %cst_30 {dimension_numbers = #tpu.dot_dimension_numbers<[1], [0], [0], [1], [0, 0, 1, 1], [], []>} : vector<8x64xf32>, vector<64x64xf32>, vector<8x64xf32> -> vector<8x64xf32>
    %c0_31 = arith.constant 0 : index
    %c0_32 = arith.constant 0 : index
    %c0_33 = arith.constant 0 : index
    %44 = vector.load %arg8[%c0_31, %c0_32, %c0_33] : memref<8x1x64xf32, #tpu.memory_space<vmem>>, vector<1x1x64xf32>
    %45 = vector.shape_cast %44 : vector<1x1x64xf32> to vector<1x64xf32>
    %46 = vector.broadcast %45 : vector<1x64xf32> to vector<8x64xf32>
    %47 = arith.addf %43, %46 : vector<8x64xf32>
    %cst_34 = arith.constant 0.000000e+00 : f32
    %48 = vector.broadcast %cst_34 : f32 to vector<8x64xf32>
    %49 = arith.cmpf oge, %47, %48 : vector<8x64xf32>
    %cst_35 = arith.constant 0.00999999977 : f32
    %50 = vector.broadcast %cst_35 : f32 to vector<8x64xf32>
    %51 = arith.mulf %50, %47 : vector<8x64xf32>
    %52 = arith.select %49, %47, %51 : vector<8x64xi1>, vector<8x64xf32>
    %c1_36 = arith.constant 1 : index
    %c0_37 = arith.constant 0 : index
    %c0_38 = arith.constant 0 : index
    %53 = vector.load %arg7[%c1_36, %c0_37, %c0_38] : memref<8x64x64xf32, #tpu.memory_space<vmem>>, vector<1x64x64xf32>
    %54 = vector.shape_cast %53 : vector<1x64x64xf32> to vector<64x64xf32>
    %cst_39 = arith.constant dense<0.000000e+00> : vector<8x64xf32>
    %55 = tpu.matmul %52, %54, %cst_39 {dimension_numbers = #tpu.dot_dimension_numbers<[1], [0], [0], [1], [0, 0, 1, 1], [], []>} : vector<8x64xf32>, vector<64x64xf32>, vector<8x64xf32> -> vector<8x64xf32>
    %c1_40 = arith.constant 1 : index
    %c0_41 = arith.constant 0 : index
    %c0_42 = arith.constant 0 : index
    %56 = vector.load %arg8[%c1_40, %c0_41, %c0_42] : memref<8x1x64xf32, #tpu.memory_space<vmem>>, vector<1x1x64xf32>
    %57 = vector.shape_cast %56 : vector<1x1x64xf32> to vector<1x64xf32>
    %58 = vector.broadcast %57 : vector<1x64xf32> to vector<8x64xf32>
    %59 = arith.addf %55, %58 : vector<8x64xf32>
    %cst_43 = arith.constant 0.000000e+00 : f32
    %60 = vector.broadcast %cst_43 : f32 to vector<8x64xf32>
    %61 = arith.cmpf oge, %59, %60 : vector<8x64xf32>
    %cst_44 = arith.constant 0.00999999977 : f32
    %62 = vector.broadcast %cst_44 : f32 to vector<8x64xf32>
    %63 = arith.mulf %62, %59 : vector<8x64xf32>
    %64 = arith.select %61, %59, %63 : vector<8x64xi1>, vector<8x64xf32>
    %c0_45 = arith.constant 0 : index
    %c0_46 = arith.constant 0 : index
    %c0_47 = arith.constant 0 : index
    %65 = vector.load %arg9[%c0_45, %c0_46, %c0_47] : memref<4x64x136xf32, #tpu.memory_space<vmem>>, vector<1x64x136xf32>
    %66 = vector.shape_cast %65 : vector<1x64x136xf32> to vector<64x136xf32>
    %cst_48 = arith.constant dense<0.000000e+00> : vector<8x136xf32>
    %67 = tpu.matmul %64, %66, %cst_48 {dimension_numbers = #tpu.dot_dimension_numbers<[1], [0], [0], [1], [0, 0, 1, 1], [], []>} : vector<8x64xf32>, vector<64x136xf32>, vector<8x136xf32> -> vector<8x136xf32>
    %c0_49 = arith.constant 0 : index
    %c0_50 = arith.constant 0 : index
    %c0_51 = arith.constant 0 : index
    %68 = vector.load %arg10[%c0_49, %c0_50, %c0_51] : memref<4x1x136xf32, #tpu.memory_space<vmem>>, vector<1x1x136xf32>
    %69 = vector.shape_cast %68 : vector<1x1x136xf32> to vector<1x136xf32>
    %70 = vector.broadcast %69 : vector<1x136xf32> to vector<8x136xf32>
    %71 = arith.addf %67, %70 : vector<8x136xf32>
    %72 = vector.extract_strided_slice %71 {offsets = [0, 0], sizes = [8, 8], strides = [1, 1]} : vector<8x136xf32> to vector<8x8xf32>
    %73 = math.tanh %72 : vector<8x8xf32>
    %74 = vector.extract_strided_slice %71 {offsets = [0, 128], sizes = [8, 8], strides = [1, 1]} : vector<8x136xf32> to vector<8x8xf32>
    %75 = math.exp %73 : vector<8x8xf32>
    %76 = arith.mulf %28, %75 : vector<8x8xf32>
    %77 = arith.addf %76, %74 : vector<8x8xf32>
    %78 = arith.addf %2, %73 : vector<8x8xf32>
    %c1_52 = arith.constant 1 : index
    %c0_53 = arith.constant 0 : index
    %c0_54 = arith.constant 0 : index
    %79 = vector.load %arg5[%c1_52, %c0_53, %c0_54] : memref<4x8x64xf32, #tpu.memory_space<vmem>>, vector<1x8x64xf32>
    %80 = vector.shape_cast %79 : vector<1x8x64xf32> to vector<8x64xf32>
    %cst_55 = arith.constant dense<0.000000e+00> : vector<8x64xf32>
    %81 = tpu.matmul %77, %80, %cst_55 {dimension_numbers = #tpu.dot_dimension_numbers<[1], [0], [0], [1], [0, 0, 1, 1], [], []>} : vector<8x8xf32>, vector<8x64xf32>, vector<8x64xf32> -> vector<8x64xf32>
    %c1_56 = arith.constant 1 : index
    %c0_57 = arith.constant 0 : index
    %c0_58 = arith.constant 0 : index
    %82 = vector.load %arg6[%c1_56, %c0_57, %c0_58] : memref<4x1x64xf32, #tpu.memory_space<vmem>>, vector<1x1x64xf32>
    %83 = vector.shape_cast %82 : vector<1x1x64xf32> to vector<1x64xf32>
    %84 = vector.broadcast %83 : vector<1x64xf32> to vector<8x64xf32>
    %85 = arith.addf %81, %84 : vector<8x64xf32>
    %cst_59 = arith.constant 0.000000e+00 : f32
    %86 = vector.broadcast %cst_59 : f32 to vector<8x64xf32>
    %87 = arith.cmpf oge, %85, %86 : vector<8x64xf32>
    %cst_60 = arith.constant 0.00999999977 : f32
    %88 = vector.broadcast %cst_60 : f32 to vector<8x64xf32>
    %89 = arith.mulf %88, %85 : vector<8x64xf32>
    %90 = arith.select %87, %85, %89 : vector<8x64xi1>, vector<8x64xf32>
    %c2 = arith.constant 2 : index
    %c0_61 = arith.constant 0 : index
    %c0_62 = arith.constant 0 : index
    %91 = vector.load %arg7[%c2, %c0_61, %c0_62] : memref<8x64x64xf32, #tpu.memory_space<vmem>>, vector<1x64x64xf32>
    %92 = vector.shape_cast %91 : vector<1x64x64xf32> to vector<64x64xf32>
    %cst_63 = arith.constant dense<0.000000e+00> : vector<8x64xf32>
    %93 = tpu.matmul %90, %92, %cst_63 {dimension_numbers = #tpu.dot_dimension_numbers<[1], [0], [0], [1], [0, 0, 1, 1], [], []>} : vector<8x64xf32>, vector<64x64xf32>, vector<8x64xf32> -> vector<8x64xf32>
    %c2_64 = arith.constant 2 : index
    %c0_65 = arith.constant 0 : index
    %c0_66 = arith.constant 0 : index
    %94 = vector.load %arg8[%c2_64, %c0_65, %c0_66] : memref<8x1x64xf32, #tpu.memory_space<vmem>>, vector<1x1x64xf32>
    %95 = vector.shape_cast %94 : vector<1x1x64xf32> to vector<1x64xf32>
    %96 = vector.broadcast %95 : vector<1x64xf32> to vector<8x64xf32>
    %97 = arith.addf %93, %96 : vector<8x64xf32>
    %cst_67 = arith.constant 0.000000e+00 : f32
    %98 = vector.broadcast %cst_67 : f32 to vector<8x64xf32>
    %99 = arith.cmpf oge, %97, %98 : vector<8x64xf32>
    %cst_68 = arith.constant 0.00999999977 : f32
    %100 = vector.broadcast %cst_68 : f32 to vector<8x64xf32>
    %101 = arith.mulf %100, %97 : vector<8x64xf32>
    %102 = arith.select %99, %97, %101 : vector<8x64xi1>, vector<8x64xf32>
    %c3 = arith.constant 3 : index
    %c0_69 = arith.constant 0 : index
    %c0_70 = arith.constant 0 : index
    %103 = vector.load %arg7[%c3, %c0_69, %c0_70] : memref<8x64x64xf32, #tpu.memory_space<vmem>>, vector<1x64x64xf32>
    %104 = vector.shape_cast %103 : vector<1x64x64xf32> to vector<64x64xf32>
    %cst_71 = arith.constant dense<0.000000e+00> : vector<8x64xf32>
    %105 = tpu.matmul %102, %104, %cst_71 {dimension_numbers = #tpu.dot_dimension_numbers<[1], [0], [0], [1], [0, 0, 1, 1], [], []>} : vector<8x64xf32>, vector<64x64xf32>, vector<8x64xf32> -> vector<8x64xf32>
    %c3_72 = arith.constant 3 : index
    %c0_73 = arith.constant 0 : index
    %c0_74 = arith.constant 0 : index
    %106 = vector.load %arg8[%c3_72, %c0_73, %c0_74] : memref<8x1x64xf32, #tpu.memory_space<vmem>>, vector<1x1x64xf32>
    %107 = vector.shape_cast %106 : vector<1x1x64xf32> to vector<1x64xf32>
    %108 = vector.broadcast %107 : vector<1x64xf32> to vector<8x64xf32>
    %109 = arith.addf %105, %108 : vector<8x64xf32>
    %cst_75 = arith.constant 0.000000e+00 : f32
    %110 = vector.broadcast %cst_75 : f32 to vector<8x64xf32>
    %111 = arith.cmpf oge, %109, %110 : vector<8x64xf32>
    %cst_76 = arith.constant 0.00999999977 : f32
    %112 = vector.broadcast %cst_76 : f32 to vector<8x64xf32>
    %113 = arith.mulf %112, %109 : vector<8x64xf32>
    %114 = arith.select %111, %109, %113 : vector<8x64xi1>, vector<8x64xf32>
    %c1_77 = arith.constant 1 : index
    %c0_78 = arith.constant 0 : index
    %c0_79 = arith.constant 0 : index
    %115 = vector.load %arg9[%c1_77, %c0_78, %c0_79] : memref<4x64x136xf32, #tpu.memory_space<vmem>>, vector<1x64x136xf32>
    %116 = vector.shape_cast %115 : vector<1x64x136xf32> to vector<64x136xf32>
    %cst_80 = arith.constant dense<0.000000e+00> : vector<8x136xf32>
    %117 = tpu.matmul %114, %116, %cst_80 {dimension_numbers = #tpu.dot_dimension_numbers<[1], [0], [0], [1], [0, 0, 1, 1], [], []>} : vector<8x64xf32>, vector<64x136xf32>, vector<8x136xf32> -> vector<8x136xf32>
    %c1_81 = arith.constant 1 : index
    %c0_82 = arith.constant 0 : index
    %c0_83 = arith.constant 0 : index
    %118 = vector.load %arg10[%c1_81, %c0_82, %c0_83] : memref<4x1x136xf32, #tpu.memory_space<vmem>>, vector<1x1x136xf32>
    %119 = vector.shape_cast %118 : vector<1x1x136xf32> to vector<1x136xf32>
    %120 = vector.broadcast %119 : vector<1x136xf32> to vector<8x136xf32>
    %121 = arith.addf %117, %120 : vector<8x136xf32>
    %122 = vector.extract_strided_slice %121 {offsets = [0, 0], sizes = [8, 8], strides = [1, 1]} : vector<8x136xf32> to vector<8x8xf32>
    %123 = math.tanh %122 : vector<8x8xf32>
    %124 = vector.extract_strided_slice %121 {offsets = [0, 128], sizes = [8, 8], strides = [1, 1]} : vector<8x136xf32> to vector<8x8xf32>
    %125 = math.exp %123 : vector<8x8xf32>
    %126 = arith.mulf %23, %125 : vector<8x8xf32>
    %127 = arith.addf %126, %124 : vector<8x8xf32>
    %128 = arith.addf %78, %123 : vector<8x8xf32>
    %c0_84 = arith.constant 0 : index
    %c0_85 = arith.constant 0 : index
    %c0_86 = arith.constant 0 : index
    %129 = vector.load %arg11[%c0_84, %c0_85, %c0_86] : memref<8x8x8xf32, #tpu.memory_space<vmem>>, vector<1x8x8xf32>
    %130 = vector.shape_cast %129 : vector<1x8x8xf32> to vector<8x8xf32>
    %c1_87 = arith.constant 1 : index
    %c0_88 = arith.constant 0 : index
    %c0_89 = arith.constant 0 : index
    %131 = vector.load %arg11[%c1_87, %c0_88, %c0_89] : memref<8x8x8xf32, #tpu.memory_space<vmem>>, vector<1x8x8xf32>
    %132 = vector.shape_cast %131 : vector<1x8x8xf32> to vector<8x8xf32>
    %c2_90 = arith.constant 2 : index
    %c0_91 = arith.constant 0 : index
    %c0_92 = arith.constant 0 : index
    %133 = vector.load %arg11[%c2_90, %c0_91, %c0_92] : memref<8x8x8xf32, #tpu.memory_space<vmem>>, vector<1x8x8xf32>
    %134 = vector.shape_cast %133 : vector<1x8x8xf32> to vector<8x8xf32>
    %c3_93 = arith.constant 3 : index
    %c0_94 = arith.constant 0 : index
    %c0_95 = arith.constant 0 : index
    %135 = vector.load %arg11[%c3_93, %c0_94, %c0_95] : memref<8x8x8xf32, #tpu.memory_space<vmem>>, vector<1x8x8xf32>
    %136 = vector.shape_cast %135 : vector<1x8x8xf32> to vector<8x8xf32>
    %cst_96 = arith.constant dense<0.000000e+00> : vector<8x8xf32>
    %137 = tpu.matmul %77, %130, %cst_96 {dimension_numbers = #tpu.dot_dimension_numbers<[1], [0], [0], [1], [0, 0, 1, 1], [], []>} : vector<8x8xf32>, vector<8x8xf32>, vector<8x8xf32> -> vector<8x8xf32>
    %cst_97 = arith.constant dense<0.000000e+00> : vector<8x8xf32>
    %138 = tpu.matmul %127, %134, %cst_97 {dimension_numbers = #tpu.dot_dimension_numbers<[1], [0], [0], [1], [0, 0, 1, 1], [], []>} : vector<8x8xf32>, vector<8x8xf32>, vector<8x8xf32> -> vector<8x8xf32>
    %139 = arith.addf %137, %138 : vector<8x8xf32>
    %cst_98 = arith.constant dense<0.000000e+00> : vector<8x8xf32>
    %140 = tpu.matmul %77, %132, %cst_98 {dimension_numbers = #tpu.dot_dimension_numbers<[1], [0], [0], [1], [0, 0, 1, 1], [], []>} : vector<8x8xf32>, vector<8x8xf32>, vector<8x8xf32> -> vector<8x8xf32>
    %cst_99 = arith.constant dense<0.000000e+00> : vector<8x8xf32>
    %141 = tpu.matmul %127, %136, %cst_99 {dimension_numbers = #tpu.dot_dimension_numbers<[1], [0], [0], [1], [0, 0, 1, 1], [], []>} : vector<8x8xf32>, vector<8x8xf32>, vector<8x8xf32> -> vector<8x8xf32>
    %142 = arith.addf %140, %141 : vector<8x8xf32>
    %c2_100 = arith.constant 2 : index
    %c0_101 = arith.constant 0 : index
    %c0_102 = arith.constant 0 : index
    %143 = vector.load %arg4[%c2_100, %c0_101, %c0_102] : memref<4x1x8xf32, #tpu.memory_space<vmem>>, vector<1x1x8xf32>
    %144 = vector.shape_cast %143 : vector<1x1x8xf32> to vector<1x8xf32>
    %c2_103 = arith.constant 2 : index
    %c0_104 = arith.constant 0 : index
    %c0_105 = arith.constant 0 : index
    %145 = vector.load %arg3[%c2_103, %c0_104, %c0_105] : memref<4x1x8xf32, #tpu.memory_space<vmem>>, vector<1x1x8xf32>
    %146 = vector.shape_cast %145 : vector<1x1x8xf32> to vector<1x8xf32>
    %147 = vector.broadcast %146 : vector<1x8xf32> to vector<8x8xf32>
    %148 = arith.addf %139, %147 : vector<8x8xf32>
    %149 = vector.broadcast %144 : vector<1x8xf32> to vector<8x8xf32>
    %150 = arith.mulf %149, %148 : vector<8x8xf32>
    %c3_106 = arith.constant 3 : index
    %c0_107 = arith.constant 0 : index
    %c0_108 = arith.constant 0 : index
    %151 = vector.load %arg4[%c3_106, %c0_107, %c0_108] : memref<4x1x8xf32, #tpu.memory_space<vmem>>, vector<1x1x8xf32>
    %152 = vector.shape_cast %151 : vector<1x1x8xf32> to vector<1x8xf32>
    %c3_109 = arith.constant 3 : index
    %c0_110 = arith.constant 0 : index
    %c0_111 = arith.constant 0 : index
    %153 = vector.load %arg3[%c3_109, %c0_110, %c0_111] : memref<4x1x8xf32, #tpu.memory_space<vmem>>, vector<1x1x8xf32>
    %154 = vector.shape_cast %153 : vector<1x1x8xf32> to vector<1x8xf32>
    %155 = vector.broadcast %154 : vector<1x8xf32> to vector<8x8xf32>
    %156 = arith.addf %142, %155 : vector<8x8xf32>
    %157 = vector.broadcast %152 : vector<1x8xf32> to vector<8x8xf32>
    %158 = arith.mulf %157, %156 : vector<8x8xf32>
    %cst_112 = arith.constant 0.000000e+00 : f32
    %159 = vector.broadcast %cst_112 : f32 to vector<8x8xf32>
    %160 = arith.cmpf oge, %150, %159 : vector<8x8xf32>
    %cst_113 = arith.constant 0.949999988 : f32
    %161 = vector.broadcast %cst_113 : f32 to vector<8x8xf32>
    %162 = arith.mulf %161, %150 : vector<8x8xf32>
    %163 = arith.select %160, %150, %162 : vector<8x8xi1>, vector<8x8xf32>
    %cst_114 = arith.constant 0.000000e+00 : f32
    %164 = vector.broadcast %cst_114 : f32 to vector<8x8xf32>
    %165 = arith.cmpf oge, %158, %164 : vector<8x8xf32>
    %cst_115 = arith.constant 0.949999988 : f32
    %166 = vector.broadcast %cst_115 : f32 to vector<8x8xf32>
    %167 = arith.mulf %166, %158 : vector<8x8xf32>
    %168 = arith.select %165, %158, %167 : vector<8x8xi1>, vector<8x8xf32>
    %c2_116 = arith.constant 2 : index
    %c0_117 = arith.constant 0 : index
    %c0_118 = arith.constant 0 : index
    %169 = vector.load %arg5[%c2_116, %c0_117, %c0_118] : memref<4x8x64xf32, #tpu.memory_space<vmem>>, vector<1x8x64xf32>
    %170 = vector.shape_cast %169 : vector<1x8x64xf32> to vector<8x64xf32>
    %cst_119 = arith.constant dense<0.000000e+00> : vector<8x64xf32>
    %171 = tpu.matmul %163, %170, %cst_119 {dimension_numbers = #tpu.dot_dimension_numbers<[1], [0], [0], [1], [0, 0, 1, 1], [], []>} : vector<8x8xf32>, vector<8x64xf32>, vector<8x64xf32> -> vector<8x64xf32>
    %c2_120 = arith.constant 2 : index
    %c0_121 = arith.constant 0 : index
    %c0_122 = arith.constant 0 : index
    %172 = vector.load %arg6[%c2_120, %c0_121, %c0_122] : memref<4x1x64xf32, #tpu.memory_space<vmem>>, vector<1x1x64xf32>
    %173 = vector.shape_cast %172 : vector<1x1x64xf32> to vector<1x64xf32>
    %174 = vector.broadcast %173 : vector<1x64xf32> to vector<8x64xf32>
    %175 = arith.addf %171, %174 : vector<8x64xf32>
    %cst_123 = arith.constant 0.000000e+00 : f32
    %176 = vector.broadcast %cst_123 : f32 to vector<8x64xf32>
    %177 = arith.cmpf oge, %175, %176 : vector<8x64xf32>
    %cst_124 = arith.constant 0.00999999977 : f32
    %178 = vector.broadcast %cst_124 : f32 to vector<8x64xf32>
    %179 = arith.mulf %178, %175 : vector<8x64xf32>
    %180 = arith.select %177, %175, %179 : vector<8x64xi1>, vector<8x64xf32>
    %c4 = arith.constant 4 : index
    %c0_125 = arith.constant 0 : index
    %c0_126 = arith.constant 0 : index
    %181 = vector.load %arg7[%c4, %c0_125, %c0_126] : memref<8x64x64xf32, #tpu.memory_space<vmem>>, vector<1x64x64xf32>
    %182 = vector.shape_cast %181 : vector<1x64x64xf32> to vector<64x64xf32>
    %cst_127 = arith.constant dense<0.000000e+00> : vector<8x64xf32>
    %183 = tpu.matmul %180, %182, %cst_127 {dimension_numbers = #tpu.dot_dimension_numbers<[1], [0], [0], [1], [0, 0, 1, 1], [], []>} : vector<8x64xf32>, vector<64x64xf32>, vector<8x64xf32> -> vector<8x64xf32>
    %c4_128 = arith.constant 4 : index
    %c0_129 = arith.constant 0 : index
    %c0_130 = arith.constant 0 : index
    %184 = vector.load %arg8[%c4_128, %c0_129, %c0_130] : memref<8x1x64xf32, #tpu.memory_space<vmem>>, vector<1x1x64xf32>
    %185 = vector.shape_cast %184 : vector<1x1x64xf32> to vector<1x64xf32>
    %186 = vector.broadcast %185 : vector<1x64xf32> to vector<8x64xf32>
    %187 = arith.addf %183, %186 : vector<8x64xf32>
    %cst_131 = arith.constant 0.000000e+00 : f32
    %188 = vector.broadcast %cst_131 : f32 to vector<8x64xf32>
    %189 = arith.cmpf oge, %187, %188 : vector<8x64xf32>
    %cst_132 = arith.constant 0.00999999977 : f32
    %190 = vector.broadcast %cst_132 : f32 to vector<8x64xf32>
    %191 = arith.mulf %190, %187 : vector<8x64xf32>
    %192 = arith.select %189, %187, %191 : vector<8x64xi1>, vector<8x64xf32>
    %c5 = arith.constant 5 : index
    %c0_133 = arith.constant 0 : index
    %c0_134 = arith.constant 0 : index
    %193 = vector.load %arg7[%c5, %c0_133, %c0_134] : memref<8x64x64xf32, #tpu.memory_space<vmem>>, vector<1x64x64xf32>
    %194 = vector.shape_cast %193 : vector<1x64x64xf32> to vector<64x64xf32>
    %cst_135 = arith.constant dense<0.000000e+00> : vector<8x64xf32>
    %195 = tpu.matmul %192, %194, %cst_135 {dimension_numbers = #tpu.dot_dimension_numbers<[1], [0], [0], [1], [0, 0, 1, 1], [], []>} : vector<8x64xf32>, vector<64x64xf32>, vector<8x64xf32> -> vector<8x64xf32>
    %c5_136 = arith.constant 5 : index
    %c0_137 = arith.constant 0 : index
    %c0_138 = arith.constant 0 : index
    %196 = vector.load %arg8[%c5_136, %c0_137, %c0_138] : memref<8x1x64xf32, #tpu.memory_space<vmem>>, vector<1x1x64xf32>
    %197 = vector.shape_cast %196 : vector<1x1x64xf32> to vector<1x64xf32>
    %198 = vector.broadcast %197 : vector<1x64xf32> to vector<8x64xf32>
    %199 = arith.addf %195, %198 : vector<8x64xf32>
    %cst_139 = arith.constant 0.000000e+00 : f32
    %200 = vector.broadcast %cst_139 : f32 to vector<8x64xf32>
    %201 = arith.cmpf oge, %199, %200 : vector<8x64xf32>
    %cst_140 = arith.constant 0.00999999977 : f32
    %202 = vector.broadcast %cst_140 : f32 to vector<8x64xf32>
    %203 = arith.mulf %202, %199 : vector<8x64xf32>
    %204 = arith.select %201, %199, %203 : vector<8x64xi1>, vector<8x64xf32>
    %c2_141 = arith.constant 2 : index
    %c0_142 = arith.constant 0 : index
    %c0_143 = arith.constant 0 : index
    %205 = vector.load %arg9[%c2_141, %c0_142, %c0_143] : memref<4x64x136xf32, #tpu.memory_space<vmem>>, vector<1x64x136xf32>
    %206 = vector.shape_cast %205 : vector<1x64x136xf32> to vector<64x136xf32>
    %cst_144 = arith.constant dense<0.000000e+00> : vector<8x136xf32>
    %207 = tpu.matmul %204, %206, %cst_144 {dimension_numbers = #tpu.dot_dimension_numbers<[1], [0], [0], [1], [0, 0, 1, 1], [], []>} : vector<8x64xf32>, vector<64x136xf32>, vector<8x136xf32> -> vector<8x136xf32>
    %c2_145 = arith.constant 2 : index
    %c0_146 = arith.constant 0 : index
    %c0_147 = arith.constant 0 : index
    %208 = vector.load %arg10[%c2_145, %c0_146, %c0_147] : memref<4x1x136xf32, #tpu.memory_space<vmem>>, vector<1x1x136xf32>
    %209 = vector.shape_cast %208 : vector<1x1x136xf32> to vector<1x136xf32>
    %210 = vector.broadcast %209 : vector<1x136xf32> to vector<8x136xf32>
    %211 = arith.addf %207, %210 : vector<8x136xf32>
    %212 = vector.extract_strided_slice %211 {offsets = [0, 0], sizes = [8, 8], strides = [1, 1]} : vector<8x136xf32> to vector<8x8xf32>
    %213 = math.tanh %212 : vector<8x8xf32>
    %214 = vector.extract_strided_slice %211 {offsets = [0, 128], sizes = [8, 8], strides = [1, 1]} : vector<8x136xf32> to vector<8x8xf32>
    %215 = math.exp %213 : vector<8x8xf32>
    %216 = arith.mulf %168, %215 : vector<8x8xf32>
    %217 = arith.addf %216, %214 : vector<8x8xf32>
    %218 = arith.addf %128, %213 : vector<8x8xf32>
    %c3_148 = arith.constant 3 : index
    %c0_149 = arith.constant 0 : index
    %c0_150 = arith.constant 0 : index
    %219 = vector.load %arg5[%c3_148, %c0_149, %c0_150] : memref<4x8x64xf32, #tpu.memory_space<vmem>>, vector<1x8x64xf32>
    %220 = vector.shape_cast %219 : vector<1x8x64xf32> to vector<8x64xf32>
    %cst_151 = arith.constant dense<0.000000e+00> : vector<8x64xf32>
    %221 = tpu.matmul %217, %220, %cst_151 {dimension_numbers = #tpu.dot_dimension_numbers<[1], [0], [0], [1], [0, 0, 1, 1], [], []>} : vector<8x8xf32>, vector<8x64xf32>, vector<8x64xf32> -> vector<8x64xf32>
    %c3_152 = arith.constant 3 : index
    %c0_153 = arith.constant 0 : index
    %c0_154 = arith.constant 0 : index
    %222 = vector.load %arg6[%c3_152, %c0_153, %c0_154] : memref<4x1x64xf32, #tpu.memory_space<vmem>>, vector<1x1x64xf32>
    %223 = vector.shape_cast %222 : vector<1x1x64xf32> to vector<1x64xf32>
    %224 = vector.broadcast %223 : vector<1x64xf32> to vector<8x64xf32>
    %225 = arith.addf %221, %224 : vector<8x64xf32>
    %cst_155 = arith.constant 0.000000e+00 : f32
    %226 = vector.broadcast %cst_155 : f32 to vector<8x64xf32>
    %227 = arith.cmpf oge, %225, %226 : vector<8x64xf32>
    %cst_156 = arith.constant 0.00999999977 : f32
    %228 = vector.broadcast %cst_156 : f32 to vector<8x64xf32>
    %229 = arith.mulf %228, %225 : vector<8x64xf32>
    %230 = arith.select %227, %225, %229 : vector<8x64xi1>, vector<8x64xf32>
    %c6 = arith.constant 6 : index
    %c0_157 = arith.constant 0 : index
    %c0_158 = arith.constant 0 : index
    %231 = vector.load %arg7[%c6, %c0_157, %c0_158] : memref<8x64x64xf32, #tpu.memory_space<vmem>>, vector<1x64x64xf32>
    %232 = vector.shape_cast %231 : vector<1x64x64xf32> to vector<64x64xf32>
    %cst_159 = arith.constant dense<0.000000e+00> : vector<8x64xf32>
    %233 = tpu.matmul %230, %232, %cst_159 {dimension_numbers = #tpu.dot_dimension_numbers<[1], [0], [0], [1], [0, 0, 1, 1], [], []>} : vector<8x64xf32>, vector<64x64xf32>, vector<8x64xf32> -> vector<8x64xf32>
    %c6_160 = arith.constant 6 : index
    %c0_161 = arith.constant 0 : index
    %c0_162 = arith.constant 0 : index
    %234 = vector.load %arg8[%c6_160, %c0_161, %c0_162] : memref<8x1x64xf32, #tpu.memory_space<vmem>>, vector<1x1x64xf32>
    %235 = vector.shape_cast %234 : vector<1x1x64xf32> to vector<1x64xf32>
    %236 = vector.broadcast %235 : vector<1x64xf32> to vector<8x64xf32>
    %237 = arith.addf %233, %236 : vector<8x64xf32>
    %cst_163 = arith.constant 0.000000e+00 : f32
    %238 = vector.broadcast %cst_163 : f32 to vector<8x64xf32>
    %239 = arith.cmpf oge, %237, %238 : vector<8x64xf32>
    %cst_164 = arith.constant 0.00999999977 : f32
    %240 = vector.broadcast %cst_164 : f32 to vector<8x64xf32>
    %241 = arith.mulf %240, %237 : vector<8x64xf32>
    %242 = arith.select %239, %237, %241 : vector<8x64xi1>, vector<8x64xf32>
    %c7 = arith.constant 7 : index
    %c0_165 = arith.constant 0 : index
    %c0_166 = arith.constant 0 : index
    %243 = vector.load %arg7[%c7, %c0_165, %c0_166] : memref<8x64x64xf32, #tpu.memory_space<vmem>>, vector<1x64x64xf32>
    %244 = vector.shape_cast %243 : vector<1x64x64xf32> to vector<64x64xf32>
    %cst_167 = arith.constant dense<0.000000e+00> : vector<8x64xf32>
    %245 = tpu.matmul %242, %244, %cst_167 {dimension_numbers = #tpu.dot_dimension_numbers<[1], [0], [0], [1], [0, 0, 1, 1], [], []>} : vector<8x64xf32>, vector<64x64xf32>, vector<8x64xf32> -> vector<8x64xf32>
    %c7_168 = arith.constant 7 : index
    %c0_169 = arith.constant 0 : index
    %c0_170 = arith.constant 0 : index
    %246 = vector.load %arg8[%c7_168, %c0_169, %c0_170] : memref<8x1x64xf32, #tpu.memory_space<vmem>>, vector<1x1x64xf32>
    %247 = vector.shape_cast %246 : vector<1x1x64xf32> to vector<1x64xf32>
    %248 = vector.broadcast %247 : vector<1x64xf32> to vector<8x64xf32>
    %249 = arith.addf %245, %248 : vector<8x64xf32>
    %cst_171 = arith.constant 0.000000e+00 : f32
    %250 = vector.broadcast %cst_171 : f32 to vector<8x64xf32>
    %251 = arith.cmpf oge, %249, %250 : vector<8x64xf32>
    %cst_172 = arith.constant 0.00999999977 : f32
    %252 = vector.broadcast %cst_172 : f32 to vector<8x64xf32>
    %253 = arith.mulf %252, %249 : vector<8x64xf32>
    %254 = arith.select %251, %249, %253 : vector<8x64xi1>, vector<8x64xf32>
    %c3_173 = arith.constant 3 : index
    %c0_174 = arith.constant 0 : index
    %c0_175 = arith.constant 0 : index
    %255 = vector.load %arg9[%c3_173, %c0_174, %c0_175] : memref<4x64x136xf32, #tpu.memory_space<vmem>>, vector<1x64x136xf32>
    %256 = vector.shape_cast %255 : vector<1x64x136xf32> to vector<64x136xf32>
    %cst_176 = arith.constant dense<0.000000e+00> : vector<8x136xf32>
    %257 = tpu.matmul %254, %256, %cst_176 {dimension_numbers = #tpu.dot_dimension_numbers<[1], [0], [0], [1], [0, 0, 1, 1], [], []>} : vector<8x64xf32>, vector<64x136xf32>, vector<8x136xf32> -> vector<8x136xf32>
    %c3_177 = arith.constant 3 : index
    %c0_178 = arith.constant 0 : index
    %c0_179 = arith.constant 0 : index
    %258 = vector.load %arg10[%c3_177, %c0_178, %c0_179] : memref<4x1x136xf32, #tpu.memory_space<vmem>>, vector<1x1x136xf32>
    %259 = vector.shape_cast %258 : vector<1x1x136xf32> to vector<1x136xf32>
    %260 = vector.broadcast %259 : vector<1x136xf32> to vector<8x136xf32>
    %261 = arith.addf %257, %260 : vector<8x136xf32>
    %262 = vector.extract_strided_slice %261 {offsets = [0, 0], sizes = [8, 8], strides = [1, 1]} : vector<8x136xf32> to vector<8x8xf32>
    %263 = math.tanh %262 : vector<8x8xf32>
    %264 = vector.extract_strided_slice %261 {offsets = [0, 128], sizes = [8, 8], strides = [1, 1]} : vector<8x136xf32> to vector<8x8xf32>
    %265 = math.exp %263 : vector<8x8xf32>
    %266 = arith.mulf %163, %265 : vector<8x8xf32>
    %267 = arith.addf %266, %264 : vector<8x8xf32>
    %268 = arith.addf %218, %263 : vector<8x8xf32>
    %c4_180 = arith.constant 4 : index
    %c0_181 = arith.constant 0 : index
    %c0_182 = arith.constant 0 : index
    %269 = vector.load %arg11[%c4_180, %c0_181, %c0_182] : memref<8x8x8xf32, #tpu.memory_space<vmem>>, vector<1x8x8xf32>
    %270 = vector.shape_cast %269 : vector<1x8x8xf32> to vector<8x8xf32>
    %c5_183 = arith.constant 5 : index
    %c0_184 = arith.constant 0 : index
    %c0_185 = arith.constant 0 : index
    %271 = vector.load %arg11[%c5_183, %c0_184, %c0_185] : memref<8x8x8xf32, #tpu.memory_space<vmem>>, vector<1x8x8xf32>
    %272 = vector.shape_cast %271 : vector<1x8x8xf32> to vector<8x8xf32>
    %c6_186 = arith.constant 6 : index
    %c0_187 = arith.constant 0 : index
    %c0_188 = arith.constant 0 : index
    %273 = vector.load %arg11[%c6_186, %c0_187, %c0_188] : memref<8x8x8xf32, #tpu.memory_space<vmem>>, vector<1x8x8xf32>
    %274 = vector.shape_cast %273 : vector<1x8x8xf32> to vector<8x8xf32>
    %c7_189 = arith.constant 7 : index
    %c0_190 = arith.constant 0 : index
    %c0_191 = arith.constant 0 : index
    %275 = vector.load %arg11[%c7_189, %c0_190, %c0_191] : memref<8x8x8xf32, #tpu.memory_space<vmem>>, vector<1x8x8xf32>
    %276 = vector.shape_cast %275 : vector<1x8x8xf32> to vector<8x8xf32>
    %cst_192 = arith.constant dense<0.000000e+00> : vector<8x8xf32>
    %277 = tpu.matmul %217, %270, %cst_192 {dimension_numbers = #tpu.dot_dimension_numbers<[1], [0], [0], [1], [0, 0, 1, 1], [], []>} : vector<8x8xf32>, vector<8x8xf32>, vector<8x8xf32> -> vector<8x8xf32>
    %cst_193 = arith.constant dense<0.000000e+00> : vector<8x8xf32>
    %278 = tpu.matmul %267, %274, %cst_193 {dimension_numbers = #tpu.dot_dimension_numbers<[1], [0], [0], [1], [0, 0, 1, 1], [], []>} : vector<8x8xf32>, vector<8x8xf32>, vector<8x8xf32> -> vector<8x8xf32>
    %279 = arith.addf %277, %278 : vector<8x8xf32>
    %cst_194 = arith.constant dense<0.000000e+00> : vector<8x8xf32>
    %280 = tpu.matmul %217, %272, %cst_194 {dimension_numbers = #tpu.dot_dimension_numbers<[1], [0], [0], [1], [0, 0, 1, 1], [], []>} : vector<8x8xf32>, vector<8x8xf32>, vector<8x8xf32> -> vector<8x8xf32>
    %cst_195 = arith.constant dense<0.000000e+00> : vector<8x8xf32>
    %281 = tpu.matmul %267, %276, %cst_195 {dimension_numbers = #tpu.dot_dimension_numbers<[1], [0], [0], [1], [0, 0, 1, 1], [], []>} : vector<8x8xf32>, vector<8x8xf32>, vector<8x8xf32> -> vector<8x8xf32>
    %282 = arith.addf %280, %281 : vector<8x8xf32>
    %283 = tpu.concatenate %279, %282 in 1 : vector<8x8xf32>, vector<8x8xf32> -> vector<8x16xf32>
    %c0_196 = arith.constant 0 : index
    %c0_197 = arith.constant 0 : index
    %284 = vector.load %arg12[%c0_196, %c0_197] : memref<8x16xf32, #tpu.memory_space<vmem>>, vector<8x16xf32>
    tpu.vector_store %arg12[%c0_196, %c0_197], %283 {strides = array<i32>} : memref<8x16xf32, #tpu.memory_space<vmem>>, vector<8x16xf32>,
    %cst_198 = arith.constant dense<0.000000e+00> : vector<8xf32>
    %285 = vector.multi_reduction <add>, %268, %cst_198 [1] : vector<8x8xf32> to vector<8xf32>
    %286 = vector.shape_cast %285 : vector<8xf32> to vector<8x1xf32>
    %287 = vector.shape_cast %286 : vector<8x1xf32> to vector<8x1xf32>
    %288 = vector.broadcast %287 : vector<8x1xf32> to vector<8x128xf32>
    %c0_199 = arith.constant 0 : index
    %c0_200 = arith.constant 0 : index
    %289 = vector.load %arg13[%c0_199, %c0_200] : memref<8x128xf32, #tpu.memory_space<vmem>>, vector<8x128xf32>
    tpu.vector_store %arg13[%c0_199, %c0_200], %288 {strides = array<i32>} : memref<8x128xf32, #tpu.memory_space<vmem>>, vector<8x128xf32>,
    return
  }
  func.func @transform_0(%arg0: i32) -> (i32, i32) {
    %c0_i32 = arith.constant 0 : i32
    %c0_i32_0 = arith.constant 0 : i32
    return %arg0, %c0_i32 : i32, i32
  }
  func.func @transform_1(%arg0: i32) -> (i32, i32) {
    %c0_i32 = arith.constant 0 : i32
    %c0_i32_0 = arith.constant 0 : i32
    return %arg0, %c0_i32 : i32, i32
  }
  func.func @transform_2(%arg0: i32) -> (i32, i32, i32) {
    %c0_i32 = arith.constant 0 : i32
    %c0_i32_0 = arith.constant 0 : i32
    %c0_i32_1 = arith.constant 0 : i32
    %c0_i32_2 = arith.constant 0 : i32
    return %c0_i32, %c0_i32_0, %c0_i32_1 : i32, i32, i32
  }
  func.func @transform_3(%arg0: i32) -> (i32, i32, i32) {
    %c0_i32 = arith.constant 0 : i32
    %c0_i32_0 = arith.constant 0 : i32
    %c0_i32_1 = arith.constant 0 : i32
    %c0_i32_2 = arith.constant 0 : i32
    return %c0_i32, %c0_i32_0, %c0_i32_1 : i32, i32, i32
  }
  func.func @transform_4(%arg0: i32) -> (i32, i32, i32) {
    %c0_i32 = arith.constant 0 : i32
    %c0_i32_0 = arith.constant 0 : i32
    %c0_i32_1 = arith.constant 0 : i32
    %c0_i32_2 = arith.constant 0 : i32
    return %c0_i32, %c0_i32_0, %c0_i32_1 : i32, i32, i32
  }
  func.func @transform_5(%arg0: i32) -> (i32, i32, i32) {
    %c0_i32 = arith.constant 0 : i32
    %c0_i32_0 = arith.constant 0 : i32
    %c0_i32_1 = arith.constant 0 : i32
    %c0_i32_2 = arith.constant 0 : i32
    return %c0_i32, %c0_i32_0, %c0_i32_1 : i32, i32, i32
  }
  func.func @transform_6(%arg0: i32) -> (i32, i32, i32) {
    %c0_i32 = arith.constant 0 : i32
    %c0_i32_0 = arith.constant 0 : i32
    %c0_i32_1 = arith.constant 0 : i32
    %c0_i32_2 = arith.constant 0 : i32
    return %c0_i32, %c0_i32_0, %c0_i32_1 : i32, i32, i32
  }
  func.func @transform_7(%arg0: i32) -> (i32, i32, i32) {
    %c0_i32 = arith.constant 0 : i32
    %c0_i32_0 = arith.constant 0 : i32
    %c0_i32_1 = arith.constant 0 : i32
    %c0_i32_2 = arith.constant 0 : i32
    return %c0_i32, %c0_i32_0, %c0_i32_1 : i32, i32, i32
  }
  func.func @transform_8(%arg0: i32) -> (i32, i32, i32) {
    %c0_i32 = arith.constant 0 : i32
    %c0_i32_0 = arith.constant 0 : i32
    %c0_i32_1 = arith.constant 0 : i32
    %c0_i32_2 = arith.constant 0 : i32
    return %c0_i32, %c0_i32_0, %c0_i32_1 : i32, i32, i32
  }
  func.func @transform_9(%arg0: i32) -> (i32, i32, i32) {
    %c0_i32 = arith.constant 0 : i32
    %c0_i32_0 = arith.constant 0 : i32
    %c0_i32_1 = arith.constant 0 : i32
    %c0_i32_2 = arith.constant 0 : i32
    return %c0_i32, %c0_i32_0, %c0_i32_1 : i32, i32, i32
  }
  func.func @transform_10(%arg0: i32) -> (i32, i32, i32) {
    %c0_i32 = arith.constant 0 : i32
    %c0_i32_0 = arith.constant 0 : i32
    %c0_i32_1 = arith.constant 0 : i32
    %c0_i32_2 = arith.constant 0 : i32
    return %c0_i32, %c0_i32_0, %c0_i32_1 : i32, i32, i32
  }
  func.func @transform_11(%arg0: i32) -> (i32, i32) {
    %c0_i32 = arith.constant 0 : i32
    %c0_i32_0 = arith.constant 0 : i32
    return %arg0, %c0_i32 : i32, i32
  }
  func.func @transform_12(%arg0: i32) -> (i32, i32) {
    %c0_i32 = arith.constant 0 : i32
    %c0_i32_0 = arith.constant 0 : i32
    return %arg0, %c0_i32 : i32, i32
  }
}

module attributes {stable_mosaic.version = 11 : i64} {
  func.func @_flow_kernel(%arg0: i32, %arg1: memref<8x8xf32, #tpu.memory_space<vmem>>, %arg2: memref<8x8xf32, #tpu.memory_space<vmem>>, %arg3: memref<4x1x8xf32, #tpu.memory_space<vmem>>, %arg4: memref<4x1x8xf32, #tpu.memory_space<vmem>>, %arg5: memref<4x8x64xf32, #tpu.memory_space<vmem>>, %arg6: memref<4x1x64xf32, #tpu.memory_space<vmem>>, %arg7: memref<8x64x64xf32, #tpu.memory_space<vmem>>, %arg8: memref<8x1x64xf32, #tpu.memory_space<vmem>>, %arg9: memref<4x64x136xf32, #tpu.memory_space<vmem>>, %arg10: memref<4x1x136xf32, #tpu.memory_space<vmem>>, %arg11: memref<8x8x8xf32, #tpu.memory_space<vmem>>, %arg12: memref<8x16xf32, #tpu.memory_space<vmem>>, %arg13: memref<8x128xf32, #tpu.memory_space<vmem>>) attributes {dimension_semantics = [#tpu.dimension_semantics<parallel>], iteration_bounds = array<i64: 1>, scalar_prefetch = 0 : i64, scratch_operands = 0 : i64, tpu.core_type = #tpu.core_type<tc>, window_params = [{transform_indices = @transform_0, window_bounds = array<i64: 8, 8>}, {transform_indices = @transform_1, window_bounds = array<i64: 8, 8>}, {pipeline_mode = #tpu.pipeline_mode<synchronous>, transform_indices = @transform_2, window_bounds = array<i64: 4, 1, 8>}, {pipeline_mode = #tpu.pipeline_mode<synchronous>, transform_indices = @transform_3, window_bounds = array<i64: 4, 1, 8>}, {pipeline_mode = #tpu.pipeline_mode<synchronous>, transform_indices = @transform_4, window_bounds = array<i64: 4, 8, 64>}, {pipeline_mode = #tpu.pipeline_mode<synchronous>, transform_indices = @transform_5, window_bounds = array<i64: 4, 1, 64>}, {pipeline_mode = #tpu.pipeline_mode<synchronous>, transform_indices = @transform_6, window_bounds = array<i64: 8, 64, 64>}, {pipeline_mode = #tpu.pipeline_mode<synchronous>, transform_indices = @transform_7, window_bounds = array<i64: 8, 1, 64>}, {pipeline_mode = #tpu.pipeline_mode<synchronous>, transform_indices = @transform_8, window_bounds = array<i64: 4, 64, 136>}, {pipeline_mode = #tpu.pipeline_mode<synchronous>, transform_indices = @transform_9, window_bounds = array<i64: 4, 1, 136>}, {pipeline_mode = #tpu.pipeline_mode<synchronous>, transform_indices = @transform_10, window_bounds = array<i64: 8, 8, 8>}, {transform_indices = @transform_11, window_bounds = array<i64: 8, 16>}, {transform_indices = @transform_12, window_bounds = array<i64: 8, 128>}]} {
    %c0 = arith.constant 0 : index
    %c0_0 = arith.constant 0 : index
    %0 = vector.load %arg1[%c0, %c0_0] : memref<8x8xf32, #tpu.memory_space<vmem>>, vector<8x8xf32>
    %c0_1 = arith.constant 0 : index
    %c0_2 = arith.constant 0 : index
    %1 = vector.load %arg2[%c0_1, %c0_2] : memref<8x8xf32, #tpu.memory_space<vmem>>, vector<8x8xf32>
    %cst = arith.constant 0.000000e+00 : f32
    %2 = vector.broadcast %cst : f32 to vector<8x8xf32>
    %c0_3 = arith.constant 0 : index
    %c0_4 = arith.constant 0 : index
    %c0_5 = arith.constant 0 : index
    %3 = vector.load %arg4[%c0_3, %c0_4, %c0_5] : memref<4x1x8xf32, #tpu.memory_space<vmem>>, vector<1x1x8xf32>
    %4 = vector.shape_cast %3 : vector<1x1x8xf32> to vector<1x8xf32>
    %c0_6 = arith.constant 0 : index
    %c0_7 = arith.constant 0 : index
    %c0_8 = arith.constant 0 : index
    %5 = vector.load %arg3[%c0_6, %c0_7, %c0_8] : memref<4x1x8xf32, #tpu.memory_space<vmem>>, vector<1x1x8xf32>
    %6 = vector.shape_cast %5 : vector<1x1x8xf32> to vector<1x8xf32>
    %7 = vector.broadcast %6 : vector<1x8xf32> to vector<8x8xf32>
    %8 = arith.addf %0, %7 : vector<8x8xf32>
    %9 = vector.broadcast %4 : vector<1x8xf32> to vector<8x8xf32>
    %10 = arith.mulf %9, %8 : vector<8x8xf32>
    %c1 = arith.constant 1 : index
    %c0_9 = arith.constant 0 : index
    %c0_10 = arith.constant 0 : index
    %11 = vector.load %arg4[%c1, %c0_9, %c0_10] : memref<4x1x8xf32, #tpu.memory_space<vmem>>, vector<1x1x8xf32>
    %12 = vector.shape_cast %11 : vector<1x1x8xf32> to vector<1x8xf32>
    %c1_11 = arith.constant 1 : index
    %c0_12 = arith.constant 0 : index
    %c0_13 = arith.constant 0 : index
    %13 = vector.load %arg3[%c1_11, %c0_12, %c0_13] : memref<4x1x8xf32, #tpu.memory_space<vmem>>, vector<1x1x8xf32>
    %14 = vector.shape_cast %13 : vector<1x1x8xf32> to vector<1x8xf32>
    %15 = vector.broadcast %14 : vector<1x8xf32> to vector<8x8xf32>
    %16 = arith.addf %1, %15 : vector<8x8xf32>
    %17 = vector.broadcast %12 : vector<1x8xf32> to vector<8x8xf32>
    %18 = arith.mulf %17, %16 : vector<8x8xf32>
    %cst_14 = arith.constant 0.000000e+00 : f32
    %19 = vector.broadcast %cst_14 : f32 to vector<8x8xf32>
    %20 = arith.cmpf oge, %10, %19 : vector<8x8xf32>
    %cst_15 = arith.constant 0.949999988 : f32
    %21 = vector.broadcast %cst_15 : f32 to vector<8x8xf32>
    %22 = arith.mulf %21, %10 : vector<8x8xf32>
    %23 = arith.select %20, %10, %22 : vector<8x8xi1>, vector<8x8xf32>
    %cst_16 = arith.constant 0.000000e+00 : f32
    %24 = vector.broadcast %cst_16 : f32 to vector<8x8xf32>
    %25 = arith.cmpf oge, %18, %24 : vector<8x8xf32>
    %cst_17 = arith.constant 0.949999988 : f32
    %26 = vector.broadcast %cst_17 : f32 to vector<8x8xf32>
    %27 = arith.mulf %26, %18 : vector<8x8xf32>
    %28 = arith.select %25, %18, %27 : vector<8x8xi1>, vector<8x8xf32>
    %c0_18 = arith.constant 0 : index
    %c0_19 = arith.constant 0 : index
    %c0_20 = arith.constant 0 : index
    %29 = vector.load %arg5[%c0_18, %c0_19, %c0_20] : memref<4x8x64xf32, #tpu.memory_space<vmem>>, vector<1x8x64xf32>
    %30 = vector.shape_cast %29 : vector<1x8x64xf32> to vector<8x64xf32>
    %cst_21 = arith.constant dense<0.000000e+00> : vector<8x64xf32>
    %31 = tpu.matmul %23, %30, %cst_21 {dimension_numbers = #tpu.dot_dimension_numbers<[1], [0], [0], [1], [0, 0, 1, 1], [], []>} : vector<8x8xf32>, vector<8x64xf32>, vector<8x64xf32> -> vector<8x64xf32>
    %c0_22 = arith.constant 0 : index
    %c0_23 = arith.constant 0 : index
    %c0_24 = arith.constant 0 : index
    %32 = vector.load %arg6[%c0_22, %c0_23, %c0_24] : memref<4x1x64xf32, #tpu.memory_space<vmem>>, vector<1x1x64xf32>
    %33 = vector.shape_cast %32 : vector<1x1x64xf32> to vector<1x64xf32>
    %34 = vector.broadcast %33 : vector<1x64xf32> to vector<8x64xf32>
    %35 = arith.addf %31, %34 : vector<8x64xf32>
    %cst_25 = arith.constant 0.000000e+00 : f32
    %36 = vector.broadcast %cst_25 : f32 to vector<8x64xf32>
    %37 = arith.cmpf oge, %35, %36 : vector<8x64xf32>
    %cst_26 = arith.constant 0.00999999977 : f32
    %38 = vector.broadcast %cst_26 : f32 to vector<8x64xf32>
    %39 = arith.mulf %38, %35 : vector<8x64xf32>
    %40 = arith.select %37, %35, %39 : vector<8x64xi1>, vector<8x64xf32>
    %c0_27 = arith.constant 0 : index
    %c0_28 = arith.constant 0 : index
    %c0_29 = arith.constant 0 : index
    %41 = vector.load %arg7[%c0_27, %c0_28, %c0_29] : memref<8x64x64xf32, #tpu.memory_space<vmem>>, vector<1x64x64xf32>
    %42 = vector.shape_cast %41 : vector<1x64x64xf32> to vector<64x64xf32>
    %cst_30 = arith.constant dense<0.000000e+00> : vector<8x64xf32>
    %43 = tpu.matmul %40, %42, %cst_30 {dimension_numbers = #tpu.dot_dimension_numbers<[1], [0], [0], [1], [0, 0, 1, 1], [], []>} : vector<8x64xf32>, vector<64x64xf32>, vector<8x64xf32> -> vector<8x64xf32>
    %c0_31 = arith.constant 0 : index
    %c0_32 = arith.constant 0 : index
    %c0_33 = arith.constant 0 : index
    %44 = vector.load %arg8[%c0_31, %c0_32, %c0_33] : memref<8x1x64xf32, #tpu.memory_space<vmem>>, vector<1x1x64xf32>
    %45 = vector.shape_cast %44 : vector<1x1x64xf32> to vector<1x64xf32>
    %46 = vector.broadcast %45 : vector<1x64xf32> to vector<8x64xf32>
    %47 = arith.addf %43, %46 : vector<8x64xf32>
    %cst_34 = arith.constant 0.000000e+00 : f32
    %48 = vector.broadcast %cst_34 : f32 to vector<8x64xf32>
    %49 = arith.cmpf oge, %47, %48 : vector<8x64xf32>
    %cst_35 = arith.constant 0.00999999977 : f32
    %50 = vector.broadcast %cst_35 : f32 to vector<8x64xf32>
    %51 = arith.mulf %50, %47 : vector<8x64xf32>
    %52 = arith.select %49, %47, %51 : vector<8x64xi1>, vector<8x64xf32>
    %c1_36 = arith.constant 1 : index
    %c0_37 = arith.constant 0 : index
    %c0_38 = arith.constant 0 : index
    %53 = vector.load %arg7[%c1_36, %c0_37, %c0_38] : memref<8x64x64xf32, #tpu.memory_space<vmem>>, vector<1x64x64xf32>
    %54 = vector.shape_cast %53 : vector<1x64x64xf32> to vector<64x64xf32>
    %cst_39 = arith.constant dense<0.000000e+00> : vector<8x64xf32>
    %55 = tpu.matmul %52, %54, %cst_39 {dimension_numbers = #tpu.dot_dimension_numbers<[1], [0], [0], [1], [0, 0, 1, 1], [], []>} : vector<8x64xf32>, vector<64x64xf32>, vector<8x64xf32> -> vector<8x64xf32>
    %c1_40 = arith.constant 1 : index
    %c0_41 = arith.constant 0 : index
    %c0_42 = arith.constant 0 : index
    %56 = vector.load %arg8[%c1_40, %c0_41, %c0_42] : memref<8x1x64xf32, #tpu.memory_space<vmem>>, vector<1x1x64xf32>
    %57 = vector.shape_cast %56 : vector<1x1x64xf32> to vector<1x64xf32>
    %58 = vector.broadcast %57 : vector<1x64xf32> to vector<8x64xf32>
    %59 = arith.addf %55, %58 : vector<8x64xf32>
    %cst_43 = arith.constant 0.000000e+00 : f32
    %60 = vector.broadcast %cst_43 : f32 to vector<8x64xf32>
    %61 = arith.cmpf oge, %59, %60 : vector<8x64xf32>
    %cst_44 = arith.constant 0.00999999977 : f32
    %62 = vector.broadcast %cst_44 : f32 to vector<8x64xf32>
    %63 = arith.mulf %62, %59 : vector<8x64xf32>
    %64 = arith.select %61, %59, %63 : vector<8x64xi1>, vector<8x64xf32>
    %c0_45 = arith.constant 0 : index
    %c0_46 = arith.constant 0 : index
    %c0_47 = arith.constant 0 : index
    %65 = vector.load %arg9[%c0_45, %c0_46, %c0_47] : memref<4x64x136xf32, #tpu.memory_space<vmem>>, vector<1x64x136xf32>
    %66 = vector.shape_cast %65 : vector<1x64x136xf32> to vector<64x136xf32>
    %cst_48 = arith.constant dense<0.000000e+00> : vector<8x136xf32>
    %67 = tpu.matmul %64, %66, %cst_48 {dimension_numbers = #tpu.dot_dimension_numbers<[1], [0], [0], [1], [0, 0, 1, 1], [], []>} : vector<8x64xf32>, vector<64x136xf32>, vector<8x136xf32> -> vector<8x136xf32>
    %c0_49 = arith.constant 0 : index
    %c0_50 = arith.constant 0 : index
    %c0_51 = arith.constant 0 : index
    %68 = vector.load %arg10[%c0_49, %c0_50, %c0_51] : memref<4x1x136xf32, #tpu.memory_space<vmem>>, vector<1x1x136xf32>
    %69 = vector.shape_cast %68 : vector<1x1x136xf32> to vector<1x136xf32>
    %70 = vector.broadcast %69 : vector<1x136xf32> to vector<8x136xf32>
    %71 = arith.addf %67, %70 : vector<8x136xf32>
    %72 = vector.extract_strided_slice %71 {offsets = [0, 0], sizes = [8, 8], strides = [1, 1]} : vector<8x136xf32> to vector<8x8xf32>
    %73 = math.tanh %72 : vector<8x8xf32>
    %74 = vector.extract_strided_slice %71 {offsets = [0, 128], sizes = [8, 8], strides = [1, 1]} : vector<8x136xf32> to vector<8x8xf32>
    %75 = math.exp %73 : vector<8x8xf32>
    %76 = arith.mulf %28, %75 : vector<8x8xf32>
    %77 = arith.addf %76, %74 : vector<8x8xf32>
    %78 = arith.addf %2, %73 : vector<8x8xf32>
    %c1_52 = arith.constant 1 : index
    %c0_53 = arith.constant 0 : index
    %c0_54 = arith.constant 0 : index
    %79 = vector.load %arg5[%c1_52, %c0_53, %c0_54] : memref<4x8x64xf32, #tpu.memory_space<vmem>>, vector<1x8x64xf32>
    %80 = vector.shape_cast %79 : vector<1x8x64xf32> to vector<8x64xf32>
    %cst_55 = arith.constant dense<0.000000e+00> : vector<8x64xf32>
    %81 = tpu.matmul %77, %80, %cst_55 {dimension_numbers = #tpu.dot_dimension_numbers<[1], [0], [0], [1], [0, 0, 1, 1], [], []>} : vector<8x8xf32>, vector<8x64xf32>, vector<8x64xf32> -> vector<8x64xf32>
    %c1_56 = arith.constant 1 : index
    %c0_57 = arith.constant 0 : index
    %c0_58 = arith.constant 0 : index
    %82 = vector.load %arg6[%c1_56, %c0_57, %c0_58] : memref<4x1x64xf32, #tpu.memory_space<vmem>>, vector<1x1x64xf32>
    %83 = vector.shape_cast %82 : vector<1x1x64xf32> to vector<1x64xf32>
    %84 = vector.broadcast %83 : vector<1x64xf32> to vector<8x64xf32>
    %85 = arith.addf %81, %84 : vector<8x64xf32>
    %cst_59 = arith.constant 0.000000e+00 : f32
    %86 = vector.broadcast %cst_59 : f32 to vector<8x64xf32>
    %87 = arith.cmpf oge, %85, %86 : vector<8x64xf32>
    %cst_60 = arith.constant 0.00999999977 : f32
    %88 = vector.broadcast %cst_60 : f32 to vector<8x64xf32>
    %89 = arith.mulf %88, %85 : vector<8x64xf32>
    %90 = arith.select %87, %85, %89 : vector<8x64xi1>, vector<8x64xf32>
    %c2 = arith.constant 2 : index
    %c0_61 = arith.constant 0 : index
    %c0_62 = arith.constant 0 : index
    %91 = vector.load %arg7[%c2, %c0_61, %c0_62] : memref<8x64x64xf32, #tpu.memory_space<vmem>>, vector<1x64x64xf32>
    %92 = vector.shape_cast %91 : vector<1x64x64xf32> to vector<64x64xf32>
    %cst_63 = arith.constant dense<0.000000e+00> : vector<8x64xf32>
    %93 = tpu.matmul %90, %92, %cst_63 {dimension_numbers = #tpu.dot_dimension_numbers<[1], [0], [0], [1], [0, 0, 1, 1], [], []>} : vector<8x64xf32>, vector<64x64xf32>, vector<8x64xf32> -> vector<8x64xf32>
    %c2_64 = arith.constant 2 : index
    %c0_65 = arith.constant 0 : index
    %c0_66 = arith.constant 0 : index
    %94 = vector.load %arg8[%c2_64, %c0_65, %c0_66] : memref<8x1x64xf32, #tpu.memory_space<vmem>>, vector<1x1x64xf32>
    %95 = vector.shape_cast %94 : vector<1x1x64xf32> to vector<1x64xf32>
    %96 = vector.broadcast %95 : vector<1x64xf32> to vector<8x64xf32>
    %97 = arith.addf %93, %96 : vector<8x64xf32>
    %cst_67 = arith.constant 0.000000e+00 : f32
    %98 = vector.broadcast %cst_67 : f32 to vector<8x64xf32>
    %99 = arith.cmpf oge, %97, %98 : vector<8x64xf32>
    %cst_68 = arith.constant 0.00999999977 : f32
    %100 = vector.broadcast %cst_68 : f32 to vector<8x64xf32>
    %101 = arith.mulf %100, %97 : vector<8x64xf32>
    %102 = arith.select %99, %97, %101 : vector<8x64xi1>, vector<8x64xf32>
    %c3 = arith.constant 3 : index
    %c0_69 = arith.constant 0 : index
    %c0_70 = arith.constant 0 : index
    %103 = vector.load %arg7[%c3, %c0_69, %c0_70] : memref<8x64x64xf32, #tpu.memory_space<vmem>>, vector<1x64x64xf32>
    %104 = vector.shape_cast %103 : vector<1x64x64xf32> to vector<64x64xf32>
    %cst_71 = arith.constant dense<0.000000e+00> : vector<8x64xf32>
    %105 = tpu.matmul %102, %104, %cst_71 {dimension_numbers = #tpu.dot_dimension_numbers<[1], [0], [0], [1], [0, 0, 1, 1], [], []>} : vector<8x64xf32>, vector<64x64xf32>, vector<8x64xf32> -> vector<8x64xf32>
    %c3_72 = arith.constant 3 : index
    %c0_73 = arith.constant 0 : index
    %c0_74 = arith.constant 0 : index
    %106 = vector.load %arg8[%c3_72, %c0_73, %c0_74] : memref<8x1x64xf32, #tpu.memory_space<vmem>>, vector<1x1x64xf32>
    %107 = vector.shape_cast %106 : vector<1x1x64xf32> to vector<1x64xf32>
    %108 = vector.broadcast %107 : vector<1x64xf32> to vector<8x64xf32>
    %109 = arith.addf %105, %108 : vector<8x64xf32>
    %cst_75 = arith.constant 0.000000e+00 : f32
    %110 = vector.broadcast %cst_75 : f32 to vector<8x64xf32>
    %111 = arith.cmpf oge, %109, %110 : vector<8x64xf32>
    %cst_76 = arith.constant 0.00999999977 : f32
    %112 = vector.broadcast %cst_76 : f32 to vector<8x64xf32>
    %113 = arith.mulf %112, %109 : vector<8x64xf32>
    %114 = arith.select %111, %109, %113 : vector<8x64xi1>, vector<8x64xf32>
    %c1_77 = arith.constant 1 : index
    %c0_78 = arith.constant 0 : index
    %c0_79 = arith.constant 0 : index
    %115 = vector.load %arg9[%c1_77, %c0_78, %c0_79] : memref<4x64x136xf32, #tpu.memory_space<vmem>>, vector<1x64x136xf32>
    %116 = vector.shape_cast %115 : vector<1x64x136xf32> to vector<64x136xf32>
    %cst_80 = arith.constant dense<0.000000e+00> : vector<8x136xf32>
    %117 = tpu.matmul %114, %116, %cst_80 {dimension_numbers = #tpu.dot_dimension_numbers<[1], [0], [0], [1], [0, 0, 1, 1], [], []>} : vector<8x64xf32>, vector<64x136xf32>, vector<8x136xf32> -> vector<8x136xf32>
    %c1_81 = arith.constant 1 : index
    %c0_82 = arith.constant 0 : index
    %c0_83 = arith.constant 0 : index
    %118 = vector.load %arg10[%c1_81, %c0_82, %c0_83] : memref<4x1x136xf32, #tpu.memory_space<vmem>>, vector<1x1x136xf32>
    %119 = vector.shape_cast %118 : vector<1x1x136xf32> to vector<1x136xf32>
    %120 = vector.broadcast %119 : vector<1x136xf32> to vector<8x136xf32>
    %121 = arith.addf %117, %120 : vector<8x136xf32>
    %122 = vector.extract_strided_slice %121 {offsets = [0, 0], sizes = [8, 8], strides = [1, 1]} : vector<8x136xf32> to vector<8x8xf32>
    %123 = math.tanh %122 : vector<8x8xf32>
    %124 = vector.extract_strided_slice %121 {offsets = [0, 128], sizes = [8, 8], strides = [1, 1]} : vector<8x136xf32> to vector<8x8xf32>
    %125 = math.exp %123 : vector<8x8xf32>
    %126 = arith.mulf %23, %125 : vector<8x8xf32>
    %127 = arith.addf %126, %124 : vector<8x8xf32>
    %128 = arith.addf %78, %123 : vector<8x8xf32>
    %c0_84 = arith.constant 0 : index
    %c0_85 = arith.constant 0 : index
    %c0_86 = arith.constant 0 : index
    %129 = vector.load %arg11[%c0_84, %c0_85, %c0_86] : memref<8x8x8xf32, #tpu.memory_space<vmem>>, vector<1x8x8xf32>
    %130 = vector.shape_cast %129 : vector<1x8x8xf32> to vector<8x8xf32>
    %c1_87 = arith.constant 1 : index
    %c0_88 = arith.constant 0 : index
    %c0_89 = arith.constant 0 : index
    %131 = vector.load %arg11[%c1_87, %c0_88, %c0_89] : memref<8x8x8xf32, #tpu.memory_space<vmem>>, vector<1x8x8xf32>
    %132 = vector.shape_cast %131 : vector<1x8x8xf32> to vector<8x8xf32>
    %c2_90 = arith.constant 2 : index
    %c0_91 = arith.constant 0 : index
    %c0_92 = arith.constant 0 : index
    %133 = vector.load %arg11[%c2_90, %c0_91, %c0_92] : memref<8x8x8xf32, #tpu.memory_space<vmem>>, vector<1x8x8xf32>
    %134 = vector.shape_cast %133 : vector<1x8x8xf32> to vector<8x8xf32>
    %c3_93 = arith.constant 3 : index
    %c0_94 = arith.constant 0 : index
    %c0_95 = arith.constant 0 : index
    %135 = vector.load %arg11[%c3_93, %c0_94, %c0_95] : memref<8x8x8xf32, #tpu.memory_space<vmem>>, vector<1x8x8xf32>
    %136 = vector.shape_cast %135 : vector<1x8x8xf32> to vector<8x8xf32>
    %cst_96 = arith.constant dense<0.000000e+00> : vector<8x8xf32>
    %137 = tpu.matmul %77, %130, %cst_96 {dimension_numbers = #tpu.dot_dimension_numbers<[1], [0], [0], [1], [0, 0, 1, 1], [], []>} : vector<8x8xf32>, vector<8x8xf32>, vector<8x8xf32> -> vector<8x8xf32>
    %cst_97 = arith.constant dense<0.000000e+00> : vector<8x8xf32>
    %138 = tpu.matmul %127, %134, %cst_97 {dimension_numbers = #tpu.dot_dimension_numbers<[1], [0], [0], [1], [0, 0, 1, 1], [], []>} : vector<8x8xf32>, vector<8x8xf32>, vector<8x8xf32> -> vector<8x8xf32>
    %139 = arith.addf %137, %138 : vector<8x8xf32>
    %cst_98 = arith.constant dense<0.000000e+00> : vector<8x8xf32>
    %140 = tpu.matmul %77, %132, %cst_98 {dimension_numbers = #tpu.dot_dimension_numbers<[1], [0], [0], [1], [0, 0, 1, 1], [], []>} : vector<8x8xf32>, vector<8x8xf32>, vector<8x8xf32> -> vector<8x8xf32>
    %cst_99 = arith.constant dense<0.000000e+00> : vector<8x8xf32>
    %141 = tpu.matmul %127, %136, %cst_99 {dimension_numbers = #tpu.dot_dimension_numbers<[1], [0], [0], [1], [0, 0, 1, 1], [], []>} : vector<8x8xf32>, vector<8x8xf32>, vector<8x8xf32> -> vector<8x8xf32>
    %142 = arith.addf %140, %141 : vector<8x8xf32>
    %c2_100 = arith.constant 2 : index
    %c0_101 = arith.constant 0 : index
    %c0_102 = arith.constant 0 : index
    %143 = vector.load %arg4[%c2_100, %c0_101, %c0_102] : memref<4x1x8xf32, #tpu.memory_space<vmem>>, vector<1x1x8xf32>
    %144 = vector.shape_cast %143 : vector<1x1x8xf32> to vector<1x8xf32>
    %c2_103 = arith.constant 2 : index
    %c0_104 = arith.constant 0 : index
    %c0_105 = arith.constant 0 : index
    %145 = vector.load %arg3[%c2_103, %c0_104, %c0_105] : memref<4x1x8xf32, #tpu.memory_space<vmem>>, vector<1x1x8xf32>
    %146 = vector.shape_cast %145 : vector<1x1x8xf32> to vector<1x8xf32>
    %147 = vector.broadcast %146 : vector<1x8xf32> to vector<8x8xf32>
    %148 = arith.addf %139, %147 : vector<8x8xf32>
    %149 = vector.broadcast %144 : vector<1x8xf32> to vector<8x8xf32>
    %150 = arith.mulf %149, %148 : vector<8x8xf32>
    %c3_106 = arith.constant 3 : index
    %c0_107 = arith.constant 0 : index
    %c0_108 = arith.constant 0 : index
    %151 = vector.load %arg4[%c3_106, %c0_107, %c0_108] : memref<4x1x8xf32, #tpu.memory_space<vmem>>, vector<1x1x8xf32>
    %152 = vector.shape_cast %151 : vector<1x1x8xf32> to vector<1x8xf32>
    %c3_109 = arith.constant 3 : index
    %c0_110 = arith.constant 0 : index
    %c0_111 = arith.constant 0 : index
    %153 = vector.load %arg3[%c3_109, %c0_110, %c0_111] : memref<4x1x8xf32, #tpu.memory_space<vmem>>, vector<1x1x8xf32>
    %154 = vector.shape_cast %153 : vector<1x1x8xf32> to vector<1x8xf32>
    %155 = vector.broadcast %154 : vector<1x8xf32> to vector<8x8xf32>
    %156 = arith.addf %142, %155 : vector<8x8xf32>
    %157 = vector.broadcast %152 : vector<1x8xf32> to vector<8x8xf32>
    %158 = arith.mulf %157, %156 : vector<8x8xf32>
    %cst_112 = arith.constant 0.000000e+00 : f32
    %159 = vector.broadcast %cst_112 : f32 to vector<8x8xf32>
    %160 = arith.cmpf oge, %150, %159 : vector<8x8xf32>
    %cst_113 = arith.constant 0.949999988 : f32
    %161 = vector.broadcast %cst_113 : f32 to vector<8x8xf32>
    %162 = arith.mulf %161, %150 : vector<8x8xf32>
    %163 = arith.select %160, %150, %162 : vector<8x8xi1>, vector<8x8xf32>
    %cst_114 = arith.constant 0.000000e+00 : f32
    %164 = vector.broadcast %cst_114 : f32 to vector<8x8xf32>
    %165 = arith.cmpf oge, %158, %164 : vector<8x8xf32>
    %cst_115 = arith.constant 0.949999988 : f32
    %166 = vector.broadcast %cst_115 : f32 to vector<8x8xf32>
    %167 = arith.mulf %166, %158 : vector<8x8xf32>
    %168 = arith.select %165, %158, %167 : vector<8x8xi1>, vector<8x8xf32>
    %c2_116 = arith.constant 2 : index
    %c0_117 = arith.constant 0 : index
    %c0_118 = arith.constant 0 : index
    %169 = vector.load %arg5[%c2_116, %c0_117, %c0_118] : memref<4x8x64xf32, #tpu.memory_space<vmem>>, vector<1x8x64xf32>
    %170 = vector.shape_cast %169 : vector<1x8x64xf32> to vector<8x64xf32>
    %cst_119 = arith.constant dense<0.000000e+00> : vector<8x64xf32>
    %171 = tpu.matmul %163, %170, %cst_119 {dimension_numbers = #tpu.dot_dimension_numbers<[1], [0], [0], [1], [0, 0, 1, 1], [], []>} : vector<8x8xf32>, vector<8x64xf32>, vector<8x64xf32> -> vector<8x64xf32>
    %c2_120 = arith.constant 2 : index
    %c0_121 = arith.constant 0 : index
    %c0_122 = arith.constant 0 : index
    %172 = vector.load %arg6[%c2_120, %c0_121, %c0_122] : memref<4x1x64xf32, #tpu.memory_space<vmem>>, vector<1x1x64xf32>
    %173 = vector.shape_cast %172 : vector<1x1x64xf32> to vector<1x64xf32>
    %174 = vector.broadcast %173 : vector<1x64xf32> to vector<8x64xf32>
    %175 = arith.addf %171, %174 : vector<8x64xf32>
    %cst_123 = arith.constant 0.000000e+00 : f32
    %176 = vector.broadcast %cst_123 : f32 to vector<8x64xf32>
    %177 = arith.cmpf oge, %175, %176 : vector<8x64xf32>
    %cst_124 = arith.constant 0.00999999977 : f32
    %178 = vector.broadcast %cst_124 : f32 to vector<8x64xf32>
    %179 = arith.mulf %178, %175 : vector<8x64xf32>
    %180 = arith.select %177, %175, %179 : vector<8x64xi1>, vector<8x64xf32>
    %c4 = arith.constant 4 : index
    %c0_125 = arith.constant 0 : index
    %c0_126 = arith.constant 0 : index
    %181 = vector.load %arg7[%c4, %c0_125, %c0_126] : memref<8x64x64xf32, #tpu.memory_space<vmem>>, vector<1x64x64xf32>
    %182 = vector.shape_cast %181 : vector<1x64x64xf32> to vector<64x64xf32>
    %cst_127 = arith.constant dense<0.000000e+00> : vector<8x64xf32>
    %183 = tpu.matmul %180, %182, %cst_127 {dimension_numbers = #tpu.dot_dimension_numbers<[1], [0], [0], [1], [0, 0, 1, 1], [], []>} : vector<8x64xf32>, vector<64x64xf32>, vector<8x64xf32> -> vector<8x64xf32>
    %c4_128 = arith.constant 4 : index
    %c0_129 = arith.constant 0 : index
    %c0_130 = arith.constant 0 : index
    %184 = vector.load %arg8[%c4_128, %c0_129, %c0_130] : memref<8x1x64xf32, #tpu.memory_space<vmem>>, vector<1x1x64xf32>
    %185 = vector.shape_cast %184 : vector<1x1x64xf32> to vector<1x64xf32>
    %186 = vector.broadcast %185 : vector<1x64xf32> to vector<8x64xf32>
    %187 = arith.addf %183, %186 : vector<8x64xf32>
    %cst_131 = arith.constant 0.000000e+00 : f32
    %188 = vector.broadcast %cst_131 : f32 to vector<8x64xf32>
    %189 = arith.cmpf oge, %187, %188 : vector<8x64xf32>
    %cst_132 = arith.constant 0.00999999977 : f32
    %190 = vector.broadcast %cst_132 : f32 to vector<8x64xf32>
    %191 = arith.mulf %190, %187 : vector<8x64xf32>
    %192 = arith.select %189, %187, %191 : vector<8x64xi1>, vector<8x64xf32>
    %c5 = arith.constant 5 : index
    %c0_133 = arith.constant 0 : index
    %c0_134 = arith.constant 0 : index
    %193 = vector.load %arg7[%c5, %c0_133, %c0_134] : memref<8x64x64xf32, #tpu.memory_space<vmem>>, vector<1x64x64xf32>
    %194 = vector.shape_cast %193 : vector<1x64x64xf32> to vector<64x64xf32>
    %cst_135 = arith.constant dense<0.000000e+00> : vector<8x64xf32>
    %195 = tpu.matmul %192, %194, %cst_135 {dimension_numbers = #tpu.dot_dimension_numbers<[1], [0], [0], [1], [0, 0, 1, 1], [], []>} : vector<8x64xf32>, vector<64x64xf32>, vector<8x64xf32> -> vector<8x64xf32>
    %c5_136 = arith.constant 5 : index
    %c0_137 = arith.constant 0 : index
    %c0_138 = arith.constant 0 : index
    %196 = vector.load %arg8[%c5_136, %c0_137, %c0_138] : memref<8x1x64xf32, #tpu.memory_space<vmem>>, vector<1x1x64xf32>
    %197 = vector.shape_cast %196 : vector<1x1x64xf32> to vector<1x64xf32>
    %198 = vector.broadcast %197 : vector<1x64xf32> to vector<8x64xf32>
    %199 = arith.addf %195, %198 : vector<8x64xf32>
    %cst_139 = arith.constant 0.000000e+00 : f32
    %200 = vector.broadcast %cst_139 : f32 to vector<8x64xf32>
    %201 = arith.cmpf oge, %199, %200 : vector<8x64xf32>
    %cst_140 = arith.constant 0.00999999977 : f32
    %202 = vector.broadcast %cst_140 : f32 to vector<8x64xf32>
    %203 = arith.mulf %202, %199 : vector<8x64xf32>
    %204 = arith.select %201, %199, %203 : vector<8x64xi1>, vector<8x64xf32>
    %c2_141 = arith.constant 2 : index
    %c0_142 = arith.constant 0 : index
    %c0_143 = arith.constant 0 : index
    %205 = vector.load %arg9[%c2_141, %c0_142, %c0_143] : memref<4x64x136xf32, #tpu.memory_space<vmem>>, vector<1x64x136xf32>
    %206 = vector.shape_cast %205 : vector<1x64x136xf32> to vector<64x136xf32>
    %cst_144 = arith.constant dense<0.000000e+00> : vector<8x136xf32>
    %207 = tpu.matmul %204, %206, %cst_144 {dimension_numbers = #tpu.dot_dimension_numbers<[1], [0], [0], [1], [0, 0, 1, 1], [], []>} : vector<8x64xf32>, vector<64x136xf32>, vector<8x136xf32> -> vector<8x136xf32>
    %c2_145 = arith.constant 2 : index
    %c0_146 = arith.constant 0 : index
    %c0_147 = arith.constant 0 : index
    %208 = vector.load %arg10[%c2_145, %c0_146, %c0_147] : memref<4x1x136xf32, #tpu.memory_space<vmem>>, vector<1x1x136xf32>
    %209 = vector.shape_cast %208 : vector<1x1x136xf32> to vector<1x136xf32>
    %210 = vector.broadcast %209 : vector<1x136xf32> to vector<8x136xf32>
    %211 = arith.addf %207, %210 : vector<8x136xf32>
    %212 = vector.extract_strided_slice %211 {offsets = [0, 0], sizes = [8, 8], strides = [1, 1]} : vector<8x136xf32> to vector<8x8xf32>
    %213 = math.tanh %212 : vector<8x8xf32>
    %214 = vector.extract_strided_slice %211 {offsets = [0, 128], sizes = [8, 8], strides = [1, 1]} : vector<8x136xf32> to vector<8x8xf32>
    %215 = math.exp %213 : vector<8x8xf32>
    %216 = arith.mulf %168, %215 : vector<8x8xf32>
    %217 = arith.addf %216, %214 : vector<8x8xf32>
    %218 = arith.addf %128, %213 : vector<8x8xf32>
    %c3_148 = arith.constant 3 : index
    %c0_149 = arith.constant 0 : index
    %c0_150 = arith.constant 0 : index
    %219 = vector.load %arg5[%c3_148, %c0_149, %c0_150] : memref<4x8x64xf32, #tpu.memory_space<vmem>>, vector<1x8x64xf32>
    %220 = vector.shape_cast %219 : vector<1x8x64xf32> to vector<8x64xf32>
    %cst_151 = arith.constant dense<0.000000e+00> : vector<8x64xf32>
    %221 = tpu.matmul %217, %220, %cst_151 {dimension_numbers = #tpu.dot_dimension_numbers<[1], [0], [0], [1], [0, 0, 1, 1], [], []>} : vector<8x8xf32>, vector<8x64xf32>, vector<8x64xf32> -> vector<8x64xf32>
    %c3_152 = arith.constant 3 : index
    %c0_153 = arith.constant 0 : index
    %c0_154 = arith.constant 0 : index
    %222 = vector.load %arg6[%c3_152, %c0_153, %c0_154] : memref<4x1x64xf32, #tpu.memory_space<vmem>>, vector<1x1x64xf32>
    %223 = vector.shape_cast %222 : vector<1x1x64xf32> to vector<1x64xf32>
    %224 = vector.broadcast %223 : vector<1x64xf32> to vector<8x64xf32>
    %225 = arith.addf %221, %224 : vector<8x64xf32>
    %cst_155 = arith.constant 0.000000e+00 : f32
    %226 = vector.broadcast %cst_155 : f32 to vector<8x64xf32>
    %227 = arith.cmpf oge, %225, %226 : vector<8x64xf32>
    %cst_156 = arith.constant 0.00999999977 : f32
    %228 = vector.broadcast %cst_156 : f32 to vector<8x64xf32>
    %229 = arith.mulf %228, %225 : vector<8x64xf32>
    %230 = arith.select %227, %225, %229 : vector<8x64xi1>, vector<8x64xf32>
    %c6 = arith.constant 6 : index
    %c0_157 = arith.constant 0 : index
    %c0_158 = arith.constant 0 : index
    %231 = vector.load %arg7[%c6, %c0_157, %c0_158] : memref<8x64x64xf32, #tpu.memory_space<vmem>>, vector<1x64x64xf32>
    %232 = vector.shape_cast %231 : vector<1x64x64xf32> to vector<64x64xf32>
    %cst_159 = arith.constant dense<0.000000e+00> : vector<8x64xf32>
    %233 = tpu.matmul %230, %232, %cst_159 {dimension_numbers = #tpu.dot_dimension_numbers<[1], [0], [0], [1], [0, 0, 1, 1], [], []>} : vector<8x64xf32>, vector<64x64xf32>, vector<8x64xf32> -> vector<8x64xf32>
    %c6_160 = arith.constant 6 : index
    %c0_161 = arith.constant 0 : index
    %c0_162 = arith.constant 0 : index
    %234 = vector.load %arg8[%c6_160, %c0_161, %c0_162] : memref<8x1x64xf32, #tpu.memory_space<vmem>>, vector<1x1x64xf32>
    %235 = vector.shape_cast %234 : vector<1x1x64xf32> to vector<1x64xf32>
    %236 = vector.broadcast %235 : vector<1x64xf32> to vector<8x64xf32>
    %237 = arith.addf %233, %236 : vector<8x64xf32>
    %cst_163 = arith.constant 0.000000e+00 : f32
    %238 = vector.broadcast %cst_163 : f32 to vector<8x64xf32>
    %239 = arith.cmpf oge, %237, %238 : vector<8x64xf32>
    %cst_164 = arith.constant 0.00999999977 : f32
    %240 = vector.broadcast %cst_164 : f32 to vector<8x64xf32>
    %241 = arith.mulf %240, %237 : vector<8x64xf32>
    %242 = arith.select %239, %237, %241 : vector<8x64xi1>, vector<8x64xf32>
    %c7 = arith.constant 7 : index
    %c0_165 = arith.constant 0 : index
    %c0_166 = arith.constant 0 : index
    %243 = vector.load %arg7[%c7, %c0_165, %c0_166] : memref<8x64x64xf32, #tpu.memory_space<vmem>>, vector<1x64x64xf32>
    %244 = vector.shape_cast %243 : vector<1x64x64xf32> to vector<64x64xf32>
    %cst_167 = arith.constant dense<0.000000e+00> : vector<8x64xf32>
    %245 = tpu.matmul %242, %244, %cst_167 {dimension_numbers = #tpu.dot_dimension_numbers<[1], [0], [0], [1], [0, 0, 1, 1], [], []>} : vector<8x64xf32>, vector<64x64xf32>, vector<8x64xf32> -> vector<8x64xf32>
    %c7_168 = arith.constant 7 : index
    %c0_169 = arith.constant 0 : index
    %c0_170 = arith.constant 0 : index
    %246 = vector.load %arg8[%c7_168, %c0_169, %c0_170] : memref<8x1x64xf32, #tpu.memory_space<vmem>>, vector<1x1x64xf32>
    %247 = vector.shape_cast %246 : vector<1x1x64xf32> to vector<1x64xf32>
    %248 = vector.broadcast %247 : vector<1x64xf32> to vector<8x64xf32>
    %249 = arith.addf %245, %248 : vector<8x64xf32>
    %cst_171 = arith.constant 0.000000e+00 : f32
    %250 = vector.broadcast %cst_171 : f32 to vector<8x64xf32>
    %251 = arith.cmpf oge, %249, %250 : vector<8x64xf32>
    %cst_172 = arith.constant 0.00999999977 : f32
    %252 = vector.broadcast %cst_172 : f32 to vector<8x64xf32>
    %253 = arith.mulf %252, %249 : vector<8x64xf32>
    %254 = arith.select %251, %249, %253 : vector<8x64xi1>, vector<8x64xf32>
    %c3_173 = arith.constant 3 : index
    %c0_174 = arith.constant 0 : index
    %c0_175 = arith.constant 0 : index
    %255 = vector.load %arg9[%c3_173, %c0_174, %c0_175] : memref<4x64x136xf32, #tpu.memory_space<vmem>>, vector<1x64x136xf32>
    %256 = vector.shape_cast %255 : vector<1x64x136xf32> to vector<64x136xf32>
    %cst_176 = arith.constant dense<0.000000e+00> : vector<8x136xf32>
    %257 = tpu.matmul %254, %256, %cst_176 {dimension_numbers = #tpu.dot_dimension_numbers<[1], [0], [0], [1], [0, 0, 1, 1], [], []>} : vector<8x64xf32>, vector<64x136xf32>, vector<8x136xf32> -> vector<8x136xf32>
    %c3_177 = arith.constant 3 : index
    %c0_178 = arith.constant 0 : index
    %c0_179 = arith.constant 0 : index
    %258 = vector.load %arg10[%c3_177, %c0_178, %c0_179] : memref<4x1x136xf32, #tpu.memory_space<vmem>>, vector<1x1x136xf32>
    %259 = vector.shape_cast %258 : vector<1x1x136xf32> to vector<1x136xf32>
    %260 = vector.broadcast %259 : vector<1x136xf32> to vector<8x136xf32>
    %261 = arith.addf %257, %260 : vector<8x136xf32>
    %262 = vector.extract_strided_slice %261 {offsets = [0, 0], sizes = [8, 8], strides = [1, 1]} : vector<8x136xf32> to vector<8x8xf32>
    %263 = math.tanh %262 : vector<8x8xf32>
    %264 = vector.extract_strided_slice %261 {offsets = [0, 128], sizes = [8, 8], strides = [1, 1]} : vector<8x136xf32> to vector<8x8xf32>
    %265 = math.exp %263 : vector<8x8xf32>
    %266 = arith.mulf %163, %265 : vector<8x8xf32>
    %267 = arith.addf %266, %264 : vector<8x8xf32>
    %268 = arith.addf %218, %263 : vector<8x8xf32>
    %c4_180 = arith.constant 4 : index
    %c0_181 = arith.constant 0 : index
    %c0_182 = arith.constant 0 : index
    %269 = vector.load %arg11[%c4_180, %c0_181, %c0_182] : memref<8x8x8xf32, #tpu.memory_space<vmem>>, vector<1x8x8xf32>
    %270 = vector.shape_cast %269 : vector<1x8x8xf32> to vector<8x8xf32>
    %c5_183 = arith.constant 5 : index
    %c0_184 = arith.constant 0 : index
    %c0_185 = arith.constant 0 : index
    %271 = vector.load %arg11[%c5_183, %c0_184, %c0_185] : memref<8x8x8xf32, #tpu.memory_space<vmem>>, vector<1x8x8xf32>
    %272 = vector.shape_cast %271 : vector<1x8x8xf32> to vector<8x8xf32>
    %c6_186 = arith.constant 6 : index
    %c0_187 = arith.constant 0 : index
    %c0_188 = arith.constant 0 : index
    %273 = vector.load %arg11[%c6_186, %c0_187, %c0_188] : memref<8x8x8xf32, #tpu.memory_space<vmem>>, vector<1x8x8xf32>
    %274 = vector.shape_cast %273 : vector<1x8x8xf32> to vector<8x8xf32>
    %c7_189 = arith.constant 7 : index
    %c0_190 = arith.constant 0 : index
    %c0_191 = arith.constant 0 : index
    %275 = vector.load %arg11[%c7_189, %c0_190, %c0_191] : memref<8x8x8xf32, #tpu.memory_space<vmem>>, vector<1x8x8xf32>
    %276 = vector.shape_cast %275 : vector<1x8x8xf32> to vector<8x8xf32>
    %cst_192 = arith.constant dense<0.000000e+00> : vector<8x8xf32>
    %277 = tpu.matmul %217, %270, %cst_192 {dimension_numbers = #tpu.dot_dimension_numbers<[1], [0], [0], [1], [0, 0, 1, 1], [], []>} : vector<8x8xf32>, vector<8x8xf32>, vector<8x8xf32> -> vector<8x8xf32>
    %cst_193 = arith.constant dense<0.000000e+00> : vector<8x8xf32>
    %278 = tpu.matmul %267, %274, %cst_193 {dimension_numbers = #tpu.dot_dimension_numbers<[1], [0], [0], [1], [0, 0, 1, 1], [], []>} : vector<8x8xf32>, vector<8x8xf32>, vector<8x8xf32> -> vector<8x8xf32>
    %279 = arith.addf %277, %278 : vector<8x8xf32>
    %cst_194 = arith.constant dense<0.000000e+00> : vector<8x8xf32>
    %280 = tpu.matmul %217, %272, %cst_194 {dimension_numbers = #tpu.dot_dimension_numbers<[1], [0], [0], [1], [0, 0, 1, 1], [], []>} : vector<8x8xf32>, vector<8x8xf32>, vector<8x8xf32> -> vector<8x8xf32>
    %cst_195 = arith.constant dense<0.000000e+00> : vector<8x8xf32>
    %281 = tpu.matmul %267, %276, %cst_195 {dimension_numbers = #tpu.dot_dimension_numbers<[1], [0], [0], [1], [0, 0, 1, 1], [], []>} : vector<8x8xf32>, vector<8x8xf32>, vector<8x8xf32> -> vector<8x8xf32>
    %282 = arith.addf %280, %281 : vector<8x8xf32>
    %283 = tpu.concatenate %279, %282 in 1 : vector<8x8xf32>, vector<8x8xf32> -> vector<8x16xf32>
    %c0_196 = arith.constant 0 : index
    %c0_197 = arith.constant 0 : index
    %284 = vector.load %arg12[%c0_196, %c0_197] : memref<8x16xf32, #tpu.memory_space<vmem>>, vector<8x16xf32>
    tpu.vector_store %arg12[%c0_196, %c0_197], %283 {strides = array<i32>} : memref<8x16xf32, #tpu.memory_space<vmem>>, vector<8x16xf32>,
    %cst_198 = arith.constant dense<0.000000e+00> : vector<8xf32>
    %285 = vector.multi_reduction <add>, %268, %cst_198 [1] : vector<8x8xf32> to vector<8xf32>
    %286 = vector.shape_cast %285 : vector<8xf32> to vector<8x1xf32>
    %287 = vector.shape_cast %286 : vector<8x1xf32> to vector<8x1xf32>
    %288 = vector.broadcast %287 : vector<8x1xf32> to vector<8x128xf32>
    %c0_199 = arith.constant 0 : index
    %c0_200 = arith.constant 0 : index
    %289 = vector.load %arg13[%c0_199, %c0_200] : memref<8x128xf32, #tpu.memory_space<vmem>>, vector<8x128xf32>
    tpu.vector_store %arg13[%c0_199, %c0_200], %288 {strides = array<i32>} : memref<8x128xf32, #tpu.memory_space<vmem>>, vector<8x128xf32>,
    return
  }
  func.func @transform_0(%arg0: i32) -> (i32, i32) {
    %c0_i32 = arith.constant 0 : i32
    %c0_i32_0 = arith.constant 0 : i32
    return %arg0, %c0_i32 : i32, i32
  }
  func.func @transform_1(%arg0: i32) -> (i32, i32) {
    %c0_i32 = arith.constant 0 : i32
    %c0_i32_0 = arith.constant 0 : i32
    return %arg0, %c0_i32 : i32, i32
  }
  func.func @transform_2(%arg0: i32) -> (i32, i32, i32) {
    %c0_i32 = arith.constant 0 : i32
    %c0_i32_0 = arith.constant 0 : i32
    %c0_i32_1 = arith.constant 0 : i32
    %c0_i32_2 = arith.constant 0 : i32
    return %c0_i32, %c0_i32_0, %c0_i32_1 : i32, i32, i32
  }
  func.func @transform_3(%arg0: i32) -> (i32, i32, i32) {
    %c0_i32 = arith.constant 0 : i32
    %c0_i32_0 = arith.constant 0 : i32
    %c0_i32_1 = arith.constant 0 : i32
    %c0_i32_2 = arith.constant 0 : i32
    return %c0_i32, %c0_i32_0, %c0_i32_1 : i32, i32, i32
  }
  func.func @transform_4(%arg0: i32) -> (i32, i32, i32) {
    %c0_i32 = arith.constant 0 : i32
    %c0_i32_0 = arith.constant 0 : i32
    %c0_i32_1 = arith.constant 0 : i32
    %c0_i32_2 = arith.constant 0 : i32
    return %c0_i32, %c0_i32_0, %c0_i32_1 : i32, i32, i32
  }
  func.func @transform_5(%arg0: i32) -> (i32, i32, i32) {
    %c0_i32 = arith.constant 0 : i32
    %c0_i32_0 = arith.constant 0 : i32
    %c0_i32_1 = arith.constant 0 : i32
    %c0_i32_2 = arith.constant 0 : i32
    return %c0_i32, %c0_i32_0, %c0_i32_1 : i32, i32, i32
  }
  func.func @transform_6(%arg0: i32) -> (i32, i32, i32) {
    %c0_i32 = arith.constant 0 : i32
    %c0_i32_0 = arith.constant 0 : i32
    %c0_i32_1 = arith.constant 0 : i32
    %c0_i32_2 = arith.constant 0 : i32
    return %c0_i32, %c0_i32_0, %c0_i32_1 : i32, i32, i32
  }
  func.func @transform_7(%arg0: i32) -> (i32, i32, i32) {
    %c0_i32 = arith.constant 0 : i32
    %c0_i32_0 = arith.constant 0 : i32
    %c0_i32_1 = arith.constant 0 : i32
    %c0_i32_2 = arith.constant 0 : i32
    return %c0_i32, %c0_i32_0, %c0_i32_1 : i32, i32, i32
  }
  func.func @transform_8(%arg0: i32) -> (i32, i32, i32) {
    %c0_i32 = arith.constant 0 : i32
    %c0_i32_0 = arith.constant 0 : i32
    %c0_i32_1 = arith.constant 0 : i32
    %c0_i32_2 = arith.constant 0 : i32
    return %c0_i32, %c0_i32_0, %c0_i32_1 : i32, i32, i32
  }
  func.func @transform_9(%arg0: i32) -> (i32, i32, i32) {
    %c0_i32 = arith.constant 0 : i32
    %c0_i32_0 = arith.constant 0 : i32
    %c0_i32_1 = arith.constant 0 : i32
    %c0_i32_2 = arith.constant 0 : i32
    return %c0_i32, %c0_i32_0, %c0_i32_1 : i32, i32, i32
  }
  func.func @transform_10(%arg0: i32) -> (i32, i32, i32) {
    %c0_i32 = arith.constant 0 : i32
    %c0_i32_0 = arith.constant 0 : i32
    %c0_i32_1 = arith.constant 0 : i32
    %c0_i32_2 = arith.constant 0 : i32
    return %c0_i32, %c0_i32_0, %c0_i32_1 : i32, i32, i32
  }
  func.func @transform_11(%arg0: i32) -> (i32, i32) {
    %c0_i32 = arith.constant 0 : i32
    %c0_i32_0 = arith.constant 0 : i32
    return %arg0, %c0_i32 : i32, i32
  }
  func.func @transform_12(%arg0: i32) -> (i32, i32) {
    %c0_i32 = arith.constant 0 : i32
    %c0_i32_0 = arith.constant 0 : i32
    return %arg0, %c0_i32 : i32, i32
  }
}

</mosaic_0001>

<llo_original>
// kernel: _flow_forward_impl.1
$region0: #{_flow_forward_impl.1}
  #allocation0 [shape = 'u32[]', space=smem, size = 0x4, offset = 0x4, fixed_abs, tag = 'smem constant byte address 0x4 - core index']
  #allocation1 [shape = 'u32[144,128]{1,0:T(1,128)}', space=vmem, size = 0x12000, scoped, tag = 'internal scratch']
  %s0 = inlined_call_operand.vmem [shape: f32[8,8], index: 0, kind: input, shape index: {}]
  %s1 = inlined_call_operand.vmem [shape: f32[8,8], index: 1, kind: input, shape index: {}]
  %s2 = inlined_call_operand.vmem [shape: f32[4,1,8], index: 2, kind: input, shape index: {}]
  %s3 = inlined_call_operand.hbm [shape: f32[4,1,8], index: 3, kind: input, shape index: {}]
  %s4 = inlined_call_operand.vmem [shape: f32[4,8,64], index: 4, kind: input, shape index: {}]
  %s5 = inlined_call_operand.vmem [shape: f32[4,1,64], index: 5, kind: input, shape index: {}]
  %s6 = inlined_call_operand.hbm [shape: f32[8,64,64], index: 6, kind: input, shape index: {}]
  %s7 = inlined_call_operand.vmem [shape: f32[8,1,64], index: 7, kind: input, shape index: {}]
  %s8 = inlined_call_operand.hbm [shape: f32[4,64,136], index: 8, kind: input, shape index: {}]
  %s9 = inlined_call_operand.vmem [shape: f32[4,1,136], index: 9, kind: input, shape index: {}]
  %s10 = inlined_call_operand.hbm [shape: f32[8,8,8], index: 10, kind: input, shape index: {}]
  %s11 = inlined_call_operand.hbm [shape: f32[8,16], index: 11, kind: output, shape index: {0}]
  %s12 = inlined_call_operand.vmem [shape: f32[8,128], index: 12, kind: output, shape index: {1}]
  %13 = xla_tuple %s11, %s12
  %s14 = sld [smem:[#allocation0]]
  $region78: #{_flow_forward_impl.1} parent=0
    _
  %s16 = ssub.s32 1, %s14
  %s17 = scalar_select 0, %s16, %s14
  $region1: #{_flow_forward_impl.1} parent=0
    #allocation2 [shape = 'u8[2048]{0}', space=vmem, size = 0x800, scoped, tag = 'input window, operand 3, single buffered']
    #allocation3 [shape = 's32[1]{0}', space=sflag, size = 0x4, scoped, tag = 'scoped memory for _flow_forward_impl.1']
    #allocation4 [shape = 's32[1]{0}', space=sflag, size = 0x4, scoped, tag = 'scoped memory for _flow_forward_impl.1']
    #allocation5 [shape = 'u8[262144]{0}', space=vmem, size = 0x40000, scoped, tag = 'input window, operand 6, single buffered']
    #allocation6 [shape = 's32[1]{0}', space=sflag, size = 0x4, scoped, tag = 'scoped memory for _flow_forward_impl.1']
    #allocation7 [shape = 'u8[262144]{0}', space=vmem, size = 0x40000, scoped, tag = 'input window, operand 8, single buffered']
    #allocation8 [shape = 'u8[32768]{0}', space=vmem, size = 0x8000, scoped, tag = 'input window, operand 10, single buffered']
    #allocation9 [shape = 's32[1]{0}', space=sflag, size = 0x4, scoped, tag = 'scoped memory for _flow_forward_impl.1']
    #allocation10 [shape = 'u8[4096]{0}', space=vmem, size = 0x1000, scoped, tag = 'output window, operand 0, single buffered']
    %18 = vsyncpa [#allocation3], 0
    %19 = vsyncpa [#allocation6], 0
    %20 = vsyncpa [#allocation9], 0
    %21 = vsyncpa [#allocation4], 0
    // Predicated region
    $region2: #{_flow_forward_impl.1} parent=1 // pred_check
      _
    $region3: #{_flow_forward_impl.1} parent=1 // pred_check_branch
      %23 = sbr.rel (0) target = $region5
    $region4: #{_flow_forward_impl.1} parent=1 // pred_region
      _
    $region5: #{_flow_forward_impl.1} parent=1 // pred_fallthru
      _
    // Predicated region
    $region6: #{_flow_forward_impl.1} parent=1 // pred_check
      _
    $region7: #{_flow_forward_impl.1} parent=1 // pred_check_branch
      %25 = sbr.rel (0) target = $region9
    $region8: #{_flow_forward_impl.1} parent=1 // pred_region
      _
    $region9: #{_flow_forward_impl.1} parent=1 // pred_fallthru
      _
    // Predicated region
    $region10: #{_flow_forward_impl.1} parent=1 // pred_check
      _
    $region11: #{_flow_forward_impl.1} parent=1 // pred_check_branch
      %27 = sbr.rel (0) target = $region13
    $region12: #{_flow_forward_impl.1} parent=1 // pred_region
      _
    $region13: #{_flow_forward_impl.1} parent=1 // pred_fallthru
      _
    // Predicated region
    $region14: #{_flow_forward_impl.1} parent=1 // pred_check
      _
    $region15: #{_flow_forward_impl.1} parent=1 // pred_check_branch
      %29 = sbr.rel (0) target = $region17
    $region16: #{_flow_forward_impl.1} parent=1 // pred_region
      %s31 = ssub.s32 64, 64
      %32 = vsyncadd [#allocation3], %s31
      %s33 = sshll.u32 [#allocation2], 4
      %s34 = int_to_ptr.vmem [resolvable:$true] %s33
      %39 = dma.hbm_to_vmem [thread:$0]  %s3, 64, %s34, [#allocation3], 16, 16, 1
    $region17: #{_flow_forward_impl.1} parent=1 // pred_fallthru
      _
    // Predicated region
    $region18: #{_flow_forward_impl.1} parent=1 // pred_check
      _
    $region19: #{_flow_forward_impl.1} parent=1 // pred_check_branch
      %41 = sbr.rel (0) target = $region21
    $region20: #{_flow_forward_impl.1} parent=1 // pred_region
      _
    $region21: #{_flow_forward_impl.1} parent=1 // pred_fallthru
      _
    // Predicated region
    $region22: #{_flow_forward_impl.1} parent=1 // pred_check
      _
    $region23: #{_flow_forward_impl.1} parent=1 // pred_check_branch
      %43 = sbr.rel (0) target = $region25
    $region24: #{_flow_forward_impl.1} parent=1 // pred_region
      _
    $region25: #{_flow_forward_impl.1} parent=1 // pred_fallthru
      _
    // Predicated region
    $region26: #{_flow_forward_impl.1} parent=1 // pred_check
      _
    $region27: #{_flow_forward_impl.1} parent=1 // pred_check_branch
      %45 = sbr.rel (0) target = $region29
    $region28: #{_flow_forward_impl.1} parent=1 // pred_region
      %s47 = ssub.s32 8192, 8192
      %48 = vsyncadd [#allocation6], %s47
      %s49 = sshll.u32 [#allocation5], 4
      %s50 = int_to_ptr.vmem [resolvable:$true] %s49
      %55 = dma.hbm_to_vmem [thread:$0]  %s6, 8192, %s50, [#allocation6], 128, 128, 8
    $region29: #{_flow_forward_impl.1} parent=1 // pred_fallthru
      _
    // Predicated region
    $region30: #{_flow_forward_impl.1} parent=1 // pred_check
      _
    $region31: #{_flow_forward_impl.1} parent=1 // pred_check_branch
      %57 = sbr.rel (0) target = $region33
    $region32: #{_flow_forward_impl.1} parent=1 // pred_region
      _
    $region33: #{_flow_forward_impl.1} parent=1 // pred_fallthru
      _
    // Predicated region
    $region34: #{_flow_forward_impl.1} parent=1 // pred_check
      _
    $region35: #{_flow_forward_impl.1} parent=1 // pred_check_branch
      %59 = sbr.rel (0) target = $region37
    $region36: #{_flow_forward_impl.1} parent=1 // pred_region
      %s61 = ssub.s32 8192, 8192
      %62 = vsyncadd [#allocation6], %s61
      %s63 = sshll.u32 [#allocation7], 4
      %s64 = int_to_ptr.vmem [resolvable:$true] %s63
      %69 = dma.hbm_to_vmem [thread:$0]  %s8, 8192, %s64, [#allocation6], 256, 256, 16
    $region37: #{_flow_forward_impl.1} parent=1 // pred_fallthru
      _
    // Predicated region
    $region38: #{_flow_forward_impl.1} parent=1 // pred_check
      _
    $region39: #{_flow_forward_impl.1} parent=1 // pred_check_branch
      %71 = sbr.rel (0) target = $region41
    $region40: #{_flow_forward_impl.1} parent=1 // pred_region
      _
    $region41: #{_flow_forward_impl.1} parent=1 // pred_fallthru
      _
    // Predicated region
    $region42: #{_flow_forward_impl.1} parent=1 // pred_check
      _
    $region43: #{_flow_forward_impl.1} parent=1 // pred_check_branch
      %73 = sbr.rel (0) target = $region45
    $region44: #{_flow_forward_impl.1} parent=1 // pred_region
      %s75 = ssub.s32 1024, 1024
      %76 = vsyncadd [#allocation9], %s75
      %s77 = sshll.u32 [#allocation8], 4
      %s78 = int_to_ptr.vmem [resolvable:$true] %s77
      %83 = dma.hbm_to_vmem [thread:$0]  %s10, 1024, %s78, [#allocation9], 128, 128, 8
    $region45: #{_flow_forward_impl.1} parent=1 // pred_fallthru
      _
    // Predicated region
    $region46: #{_flow_forward_impl.1} parent=1 // pred_check
      _
    $region47: #{_flow_forward_impl.1} parent=1 // pred_check_branch
      %85 = sbr.rel (0) target = $region49
    $region48: #{_flow_forward_impl.1} parent=1 // pred_region
      %86 = dma.done [#allocation3], 64
    $region49: #{_flow_forward_impl.1} parent=1 // pred_fallthru
      _
    // Predicated region
    $region50: #{_flow_forward_impl.1} parent=1 // pred_check
      _
    $region51: #{_flow_forward_impl.1} parent=1 // pred_check_branch
      %88 = sbr.rel (0) target = $region53
    $region52: #{_flow_forward_impl.1} parent=1 // pred_region
      %89 = dma.done [#allocation6], 8192
    $region53: #{_flow_forward_impl.1} parent=1 // pred_fallthru
      _
    // Predicated region
    $region54: #{_flow_forward_impl.1} parent=1 // pred_check
      _
    $region55: #{_flow_forward_impl.1} parent=1 // pred_check_branch
      %91 = sbr.rel (0) target = $region57
    $region56: #{_flow_forward_impl.1} parent=1 // pred_region
      %92 = dma.done [#allocation6], 8192
    $region57: #{_flow_forward_impl.1} parent=1 // pred_fallthru
      _
    // Predicated region
    $region58: #{_flow_forward_impl.1} parent=1 // pred_check
      _
    $region59: #{_flow_forward_impl.1} parent=1 // pred_check_branch
      %94 = sbr.rel (0) target = $region61
    $region60: #{_flow_forward_impl.1} parent=1 // pred_region
      %95 = dma.done [#allocation9], 1024
    $region61: #{_flow_forward_impl.1} parent=1 // pred_fallthru
      _
    %v96 = vld [vmem:[%s0] sm:$0xff]
    %v97 = vld [vmem:[%s1] sm:$0xff]
    %v98 = vld [vmem:[#allocation2] sm:$0x1]
    %v99 = vld [vmem:[%s2] sm:$0x1]
    %v101 = vlaneseq
    %v102 = vshrl.u32 %v101, 7
    %v103 = vsub.s32 0, %v102
    %v104 = vrot.slane %v99, %v103
    %v106 = vadd.f32 %v96, %v104
    %v108 = vlaneseq
    %v109 = vshrl.u32 %v108, 7
    %v110 = vsub.s32 0, %v109
    %v111 = vrot.slane %v98, %v110
    %v113 = vmul.f32 %v111, %v106
    %s114 = scalar_lea.vmem [#allocation2], 1
    %v115 = vld [vmem:[%s114] sm:$0x1]
    %s116 = scalar_lea.vmem %s2, 1
    %v117 = vld [vmem:[%s116] sm:$0x1]
    %v119 = vlaneseq
    %v120 = vshrl.u32 %v119, 7
    %v121 = vsub.s32 0, %v120
    %v122 = vrot.slane %v117, %v121
    %v124 = vadd.f32 %v97, %v122
    %v126 = vlaneseq
    %v127 = vshrl.u32 %v126, 7
    %v128 = vsub.s32 0, %v127
    %v129 = vrot.slane %v115, %v128
    %v131 = vmul.f32 %v129, %v124
    %vm132 = vcmp.ge.f32.partialorder %v113, 0.0
    %v133 = vmul.f32 %v113, 0.95
    %v134 = vsel %vm132, %v113, %v133
    %vm135 = vcmp.ge.f32.partialorder %v131, 0.0
    %v136 = vmul.f32 %v131, 0.95
    %v137 = vsel %vm135, %v131, %v136
    %v138 = vld [vmem:[%s4] sm:$0xff]
    %v139 = vld [vmem:[%s5] sm:$0x1]
    %v141 = vlaneseq
    %v142 = vshrl.u32 %v141, 7
    %v143 = vsub.s32 0, %v142
    %v144 = vrot.slane %v139, %v143
    %vm146 = vcmask 64512
    %v148 = vsel %vm146, %v134, 0
    %150 = vmatprep.subr.mxu0 0.0
    %151 = vmatpush1.msra.mxu0 %v138
    %152 = vmatprep.subr.mxu0 0.0
    %153 = vmatpush1.msra.mxu0 0.0
    %154 = vmatprep.subr.mxu0 0.0
    %155 = vmatpush1.msra.mxu0 0.0
    %156 = vmatprep.subr.mxu0 0.0
    %157 = vmatpush1.msra.mxu0 0.0
    %158 = vmatprep.subr.mxu0 0.0
    %159 = vmatpush1.msra.mxu0 0.0
    %160 = vmatprep.subr.mxu0 0.0
    %161 = vmatpush1.msra.mxu0 0.0
    %162 = vmatprep.subr.mxu0 0.0
    %163 = vmatpush1.msra.mxu0 0.0
    %164 = vmatprep.subr.mxu0 0.0
    %165 = vmatpush1.msra.mxu0 0.0
    %166 = vmatprep.subr.mxu0 0.0
    %167 = vmatpush1.msra.mxu0 0.0
    %168 = vmatprep.subr.mxu0 0.0
    %169 = vmatpush1.msra.mxu0 0.0
    %170 = vmatprep.subr.mxu0 0.0
    %171 = vmatpush1.msra.mxu0 0.0
    %172 = vmatprep.subr.mxu0 0.0
    %173 = vmatpush1.msra.mxu0 0.0
    %174 = vmatprep.subr.mxu0 0.0
    %175 = vmatpush1.msra.mxu0 0.0
    %176 = vmatprep.subr.mxu0 0.0
    %177 = vmatpush1.msra.mxu0 0.0
    %178 = vmatprep.subr.mxu0 0.0
    %179 = vmatpush1.msra.mxu0 0.0
    %180 = vmatprep.subr.mxu0 0.0
    %181 = vmatpush1.msra.mxu0 0.0
    %182 = vmatprep.subr.mxu0 0.0
    %183 = vmatpush1.msra.mxu0 0.0
    %184 = vmatprep.subr.mxu0 0.0
    %185 = vmatpush1.msra.mxu0 0.0
    %186 = vmatprep.subr.mxu0 0.0
    %187 = vmatpush1.msra.mxu0 0.0
    %188 = vmatprep.subr.mxu0 0.0
    %189 = vmatpush1.msra.mxu0 0.0
    %190 = vmatprep.subr.mxu0 0.0
    %191 = vmatpush1.msra.mxu0 0.0
    %192 = vmatprep.subr.mxu0 0.0
    %193 = vmatpush1.msra.mxu0 0.0
    %194 = vmatprep.subr.mxu0 0.0
    %195 = vmatpush1.msra.mxu0 0.0
    %196 = vmatprep.subr.mxu0 0.0
    %197 = vmatpush1.msra.mxu0 0.0
    %198 = vmatprep.subr.mxu0 0.0
    %199 = vmatpush1.msra.mxu0 0.0
    %200 = vmatprep.subr.mxu0 0.0
    %201 = vmatpush1.msra.mxu0 0.0
    %202 = vmatprep.subr.mxu0 0.0
    %203 = vmatpush1.msra.mxu0 0.0
    %204 = vmatprep.subr.mxu0 0.0
    %205 = vmatpush1.msra.mxu0 0.0
    %206 = vmatprep.subr.mxu0 0.0
    %207 = vmatpush1.msra.mxu0 0.0
    %208 = vmatprep.subr.mxu0 0.0
    %209 = vmatpush1.msra.mxu0 0.0
    %210 = vmatprep.subr.mxu0 0.0
    %211 = vmatpush1.msra.mxu0 0.0
    %212 = vmatprep.subr.mxu0 0.0
    %213 = vmatpush1.msra.mxu0 0.0
    %214 = vmatprep.mubr.f32.mxu0 0.0
    %215 = vmatmul.mubr.f32.gmra.mrb[0].mxu0 %v148
    %v216 = vpop.f32.mrb[0].mxu0
    %v217 = vadd.f32 %v144, %v216
    %v218 = vpop.f32.mrb[0].mxu0
    %219 = vdwg.mxu0
    %vm220 = vcmp.ge.f32.partialorder %v217, 0.0
    %v221 = vmul.f32 %v217, 0.01
    %v222 = vsel %vm220, %v217, %v221
    %v223 = vld [vmem:[#allocation5] sm:$0xff]
    %v224 = vld [vmem:[#allocation5 + $0x8] sm:$0xff]
    %v225 = vld [vmem:[#allocation5 + $0x10] sm:$0xff]
    %v226 = vld [vmem:[#allocation5 + $0x18] sm:$0xff]
    %v227 = vld [vmem:[#allocation5 + $0x20] sm:$0xff]
    %v228 = vld [vmem:[#allocation5 + $0x28] sm:$0xff]
    %v229 = vld [vmem:[#allocation5 + $0x30] sm:$0xff]
    %v230 = vld [vmem:[#allocation5 + $0x38] sm:$0xff]
    %v231 = vld [vmem:[%s7] sm:$0x1]
    %v233 = vlaneseq
    %v234 = vshrl.u32 %v233, 7
    %v235 = vsub.s32 0, %v234
    %v236 = vrot.slane %v231, %v235
    %vm238 = vcmask 523264
    %v240 = vsel %vm238, %v222, 0
    %242 = vmatprep.subr.mxu0 0.0
    %243 = vmatpush1.msra.mxu0 %v223
    %244 = vmatprep.subr.mxu0 0.0
    %245 = vmatpush1.msra.mxu0 %v224
    %246 = vmatprep.subr.mxu0 0.0
    %247 = vmatpush1.msra.mxu0 %v225
    %248 = vmatprep.subr.mxu0 0.0
    %249 = vmatpush1.msra.mxu0 %v226
    %250 = vmatprep.subr.mxu0 0.0
    %251 = vmatpush1.msra.mxu0 %v227
    %252 = vmatprep.subr.mxu0 0.0
    %253 = vmatpush1.msra.mxu0 %v228
    %254 = vmatprep.subr.mxu0 0.0
    %255 = vmatpush1.msra.mxu0 %v229
    %256 = vmatprep.subr.mxu0 0.0
    %257 = vmatpush1.msra.mxu0 %v230
    %258 = vmatprep.subr.mxu0 0.0
    %259 = vmatpush1.msra.mxu0 0.0
    %260 = vmatprep.subr.mxu0 0.0
    %261 = vmatpush1.msra.mxu0 0.0
    %262 = vmatprep.subr.mxu0 0.0
    %263 = vmatpush1.msra.mxu0 0.0
    %264 = vmatprep.subr.mxu0 0.0
    %265 = vmatpush1.msra.mxu0 0.0
    %266 = vmatprep.subr.mxu0 0.0
    %267 = vmatpush1.msra.mxu0 0.0
    %268 = vmatprep.subr.mxu0 0.0
    %269 = vmatpush1.msra.mxu0 0.0
    %270 = vmatprep.subr.mxu0 0.0
    %271 = vmatpush1.msra.mxu0 0.0
    %272 = vmatprep.subr.mxu0 0.0
    %273 = vmatpush1.msra.mxu0 0.0
    %274 = vmatprep.subr.mxu0 0.0
    %275 = vmatpush1.msra.mxu0 0.0
    %276 = vmatprep.subr.mxu0 0.0
    %277 = vmatpush1.msra.mxu0 0.0
    %278 = vmatprep.subr.mxu0 0.0
    %279 = vmatpush1.msra.mxu0 0.0
    %280 = vmatprep.subr.mxu0 0.0
    %281 = vmatpush1.msra.mxu0 0.0
    %282 = vmatprep.subr.mxu0 0.0
    %283 = vmatpush1.msra.mxu0 0.0
    %284 = vmatprep.subr.mxu0 0.0
    %285 = vmatpush1.msra.mxu0 0.0
    %286 = vmatprep.subr.mxu0 0.0
    %287 = vmatpush1.msra.mxu0 0.0
    %288 = vmatprep.subr.mxu0 0.0
    %289 = vmatpush1.msra.mxu0 0.0
    %290 = vmatprep.subr.mxu0 0.0
    %291 = vmatpush1.msra.mxu0 0.0
    %292 = vmatprep.subr.mxu0 0.0
    %293 = vmatpush1.msra.mxu0 0.0
    %294 = vmatprep.subr.mxu0 0.0
    %295 = vmatpush1.msra.mxu0 0.0
    %296 = vmatprep.subr.mxu0 0.0
    %297 = vmatpush1.msra.mxu0 0.0
    %298 = vmatprep.subr.mxu0 0.0
    %299 = vmatpush1.msra.mxu0 0.0
    %300 = vmatprep.subr.mxu0 0.0
    %301 = vmatpush1.msra.mxu0 0.0
    %302 = vmatprep.subr.mxu0 0.0
    %303 = vmatpush1.msra.mxu0 0.0
    %304 = vmatprep.subr.mxu0 0.0
    %305 = vmatpush1.msra.mxu0 0.0
    %306 = vmatprep.mubr.f32.mxu0 0.0
    %307 = vmatmul.mubr.f32.gmra.mrb[0].mxu0 %v240
    %v308 = vpop.f32.mrb[0].mxu0
    %v309 = vadd.f32 %v236, %v308
    %v310 = vpop.f32.mrb[0].mxu0
    %311 = vdwg.mxu0
    %vm312 = vcmp.ge.f32.partialorder %v309, 0.0
    %v313 = vmul.f32 %v309, 0.01
    %v314 = vsel %vm312, %v309, %v313
    %s315 = scalar_lea.vmem [#allocation5], 64
    %v316 = vld [vmem:[%s315] sm:$0xff]
    %v317 = vld [vmem:[%s315 + $0x8] sm:$0xff]
    %v318 = vld [vmem:[%s315 + $0x10] sm:$0xff]
    %v319 = vld [vmem:[%s315 + $0x18] sm:$0xff]
    %v320 = vld [vmem:[%s315 + $0x20] sm:$0xff]
    %v321 = vld [vmem:[%s315 + $0x28] sm:$0xff]
    %v322 = vld [vmem:[%s315 + $0x30] sm:$0xff]
    %v323 = vld [vmem:[%s315 + $0x38] sm:$0xff]
    %s324 = scalar_lea.vmem %s7, 1
    %v325 = vld [vmem:[%s324] sm:$0x1]
    %v327 = vlaneseq
    %v328 = vshrl.u32 %v327, 7
    %v329 = vsub.s32 0, %v328
    %v330 = vrot.slane %v325, %v329
    %v333 = vsel %vm238, %v314, 0
    %335 = vmatprep.subr.mxu0 0.0
    %336 = vmatpush1.msra.mxu0 %v316
    %337 = vmatprep.subr.mxu0 0.0
    %338 = vmatpush1.msra.mxu0 %v317
    %339 = vmatprep.subr.mxu0 0.0
    %340 = vmatpush1.msra.mxu0 %v318
    %341 = vmatprep.subr.mxu0 0.0
    %342 = vmatpush1.msra.mxu0 %v319
    %343 = vmatprep.subr.mxu0 0.0
    %344 = vmatpush1.msra.mxu0 %v320
    %345 = vmatprep.subr.mxu0 0.0
    %346 = vmatpush1.msra.mxu0 %v321
    %347 = vmatprep.subr.mxu0 0.0
    %348 = vmatpush1.msra.mxu0 %v322
    %349 = vmatprep.subr.mxu0 0.0
    %350 = vmatpush1.msra.mxu0 %v323
    %351 = vmatprep.subr.mxu0 0.0
    %352 = vmatpush1.msra.mxu0 0.0
    %353 = vmatprep.subr.mxu0 0.0
    %354 = vmatpush1.msra.mxu0 0.0
    %355 = vmatprep.subr.mxu0 0.0
    %356 = vmatpush1.msra.mxu0 0.0
    %357 = vmatprep.subr.mxu0 0.0
    %358 = vmatpush1.msra.mxu0 0.0
    %359 = vmatprep.subr.mxu0 0.0
    %360 = vmatpush1.msra.mxu0 0.0
    %361 = vmatprep.subr.mxu0 0.0
    %362 = vmatpush1.msra.mxu0 0.0
    %363 = vmatprep.subr.mxu0 0.0
    %364 = vmatpush1.msra.mxu0 0.0
    %365 = vmatprep.subr.mxu0 0.0
    %366 = vmatpush1.msra.mxu0 0.0
    %367 = vmatprep.subr.mxu0 0.0
    %368 = vmatpush1.msra.mxu0 0.0
    %369 = vmatprep.subr.mxu0 0.0
    %370 = vmatpush1.msra.mxu0 0.0
    %371 = vmatprep.subr.mxu0 0.0
    %372 = vmatpush1.msra.mxu0 0.0
    %373 = vmatprep.subr.mxu0 0.0
    %374 = vmatpush1.msra.mxu0 0.0
    %375 = vmatprep.subr.mxu0 0.0
    %376 = vmatpush1.msra.mxu0 0.0
    %377 = vmatprep.subr.mxu0 0.0
    %378 = vmatpush1.msra.mxu0 0.0
    %379 = vmatprep.subr.mxu0 0.0
    %380 = vmatpush1.msra.mxu0 0.0
    %381 = vmatprep.subr.mxu0 0.0
    %382 = vmatpush1.msra.mxu0 0.0
    %383 = vmatprep.subr.mxu0 0.0
    %384 = vmatpush1.msra.mxu0 0.0
    %385 = vmatprep.subr.mxu0 0.0
    %386 = vmatpush1.msra.mxu0 0.0
    %387 = vmatprep.subr.mxu0 0.0
    %388 = vmatpush1.msra.mxu0 0.0
    %389 = vmatprep.subr.mxu0 0.0
    %390 = vmatpush1.msra.mxu0 0.0
    %391 = vmatprep.subr.mxu0 0.0
    %392 = vmatpush1.msra.mxu0 0.0
    %393 = vmatprep.subr.mxu0 0.0
    %394 = vmatpush1.msra.mxu0 0.0
    %395 = vmatprep.subr.mxu0 0.0
    %396 = vmatpush1.msra.mxu0 0.0
    %397 = vmatprep.subr.mxu0 0.0
    %398 = vmatpush1.msra.mxu0 0.0
    %399 = vmatprep.mubr.f32.mxu0 0.0
    %400 = vmatmul.mubr.f32.gmra.mrb[0].mxu0 %v333
    %v401 = vpop.f32.mrb[0].mxu0
    %v402 = vadd.f32 %v330, %v401
    %v403 = vpop.f32.mrb[0].mxu0
    %404 = vdwg.mxu0
    %vm405 = vcmp.ge.f32.partialorder %v402, 0.0
    %v406 = vmul.f32 %v402, 0.01
    %v407 = vsel %vm405, %v402, %v406
    %v408 = vld [vmem:[#allocation7] sm:$0xff]
    %v409 = vld [vmem:[#allocation7 + $0x8] sm:$0xff]
    %v410 = vld [vmem:[#allocation7 + $0x10] sm:$0xff]
    %v411 = vld [vmem:[#allocation7 + $0x18] sm:$0xff]
    %v412 = vld [vmem:[#allocation7 + $0x20] sm:$0xff]
    %v413 = vld [vmem:[#allocation7 + $0x28] sm:$0xff]
    %v414 = vld [vmem:[#allocation7 + $0x30] sm:$0xff]
    %v415 = vld [vmem:[#allocation7 + $0x38] sm:$0xff]
    %v416 = vld [vmem:[#allocation7 + $0x40] sm:$0xff]
    %v417 = vld [vmem:[#allocation7 + $0x48] sm:$0xff]
    %v418 = vld [vmem:[#allocation7 + $0x50] sm:$0xff]
    %v419 = vld [vmem:[#allocation7 + $0x58] sm:$0xff]
    %v420 = vld [vmem:[#allocation7 + $0x60] sm:$0xff]
    %v421 = vld [vmem:[#allocation7 + $0x68] sm:$0xff]
    %v422 = vld [vmem:[#allocation7 + $0x70] sm:$0xff]
    %v423 = vld [vmem:[#allocation7 + $0x78] sm:$0xff]
    %v424 = vld [vmem:[%s9] sm:$0x3]
    %v426 = vlaneseq
    %v427 = vshrl.u32 %v426, 7
    %v428 = vsub.s32 0, %v427
    %v429 = vrot.slane %v424, %v428
    %v430 = vlaneseq
    %v431 = vshrl.u32 %v430, 7
    %v432 = vsub.s32 1, %v431
    %v433 = vrot.slane %v424, %v432
    %v437 = vsel %vm238, %v407, 0
    %439 = vmatprep.subr.mxu0 %v409
    %440 = vmatpush1.msra.mxu0 %v408
    %441 = vmatprep.subr.mxu0 %v411
    %442 = vmatpush1.msra.mxu0 %v410
    %443 = vmatprep.subr.mxu0 %v413
    %444 = vmatpush1.msra.mxu0 %v412
    %445 = vmatprep.subr.mxu0 %v415
    %446 = vmatpush1.msra.mxu0 %v414
    %447 = vmatprep.subr.mxu0 %v417
    %448 = vmatpush1.msra.mxu0 %v416
    %449 = vmatprep.subr.mxu0 %v419
    %450 = vmatpush1.msra.mxu0 %v418
    %451 = vmatprep.subr.mxu0 %v421
    %452 = vmatpush1.msra.mxu0 %v420
    %453 = vmatprep.subr.mxu0 %v423
    %454 = vmatpush1.msra.mxu0 %v422
    %455 = vmatprep.subr.mxu0 0.0
    %456 = vmatpush1.msra.mxu0 0.0
    %457 = vmatprep.subr.mxu0 0.0
    %458 = vmatpush1.msra.mxu0 0.0
    %459 = vmatprep.subr.mxu0 0.0
    %460 = vmatpush1.msra.mxu0 0.0
    %461 = vmatprep.subr.mxu0 0.0
    %462 = vmatpush1.msra.mxu0 0.0
    %463 = vmatprep.subr.mxu0 0.0
    %464 = vmatpush1.msra.mxu0 0.0
    %465 = vmatprep.subr.mxu0 0.0
    %466 = vmatpush1.msra.mxu0 0.0
    %467 = vmatprep.subr.mxu0 0.0
    %468 = vmatpush1.msra.mxu0 0.0
    %469 = vmatprep.subr.mxu0 0.0
    %470 = vmatpush1.msra.mxu0 0.0
    %471 = vmatprep.subr.mxu0 0.0
    %472 = vmatpush1.msra.mxu0 0.0
    %473 = vmatprep.subr.mxu0 0.0
    %474 = vmatpush1.msra.mxu0 0.0
    %475 = vmatprep.subr.mxu0 0.0
    %476 = vmatpush1.msra.mxu0 0.0
    %477 = vmatprep.subr.mxu0 0.0
    %478 = vmatpush1.msra.mxu0 0.0
    %479 = vmatprep.subr.mxu0 0.0
    %480 = vmatpush1.msra.mxu0 0.0
    %481 = vmatprep.subr.mxu0 0.0
    %482 = vmatpush1.msra.mxu0 0.0
    %483 = vmatprep.subr.mxu0 0.0
    %484 = vmatpush1.msra.mxu0 0.0
    %485 = vmatprep.subr.mxu0 0.0
    %486 = vmatpush1.msra.mxu0 0.0
    %487 = vmatprep.subr.mxu0 0.0
    %488 = vmatpush1.msra.mxu0 0.0
    %489 = vmatprep.subr.mxu0 0.0
    %490 = vmatpush1.msra.mxu0 0.0
    %491 = vmatprep.subr.mxu0 0.0
    %492 = vmatpush1.msra.mxu0 0.0
    %493 = vmatprep.subr.mxu0 0.0
    %494 = vmatpush1.msra.mxu0 0.0
    %495 = vmatprep.subr.mxu0 0.0
    %496 = vmatpush1.msra.mxu0 0.0
    %497 = vmatprep.subr.mxu0 0.0
    %498 = vmatpush1.msra.mxu0 0.0
    %499 = vmatprep.subr.mxu0 0.0
    %500 = vmatpush1.msra.mxu0 0.0
    %501 = vmatprep.subr.mxu0 0.0
    %502 = vmatpush1.msra.mxu0 0.0
    %503 = vmatprep.mubr.f32.mxu0 0.0
    %504 = vmatmul.mubr.f32.gmra.mrb[0].mxu0 %v437
    %v505 = vpop.f32.mrb[0].mxu0
    %v506 = vadd.f32 %v429, %v505
    %v507 = vpop.f32.mrb[0].mxu0
    %v508 = vadd.f32 %v433, %v507
    %509 = vdwg.mxu0
    %v510 = vtanh.pop %v506
    %v511 = vmul.f32 %v510, 1.442695
    %v512 = vpow.pop %v511
    %v513 = vmul.f32 %v137, %v512
    %v514 = vadd.f32 %v513, %v508
    %v515 = vadd.f32 %v510, 0.0
    %s516 = scalar_lea.vmem %s4, 8
    %v517 = vld [vmem:[%s516] sm:$0xff]
    %s518 = scalar_lea.vmem %s5, 1
    %v519 = vld [vmem:[%s518] sm:$0x1]
    %v521 = vlaneseq
    %v522 = vshrl.u32 %v521, 7
    %v523 = vsub.s32 0, %v522
    %v524 = vrot.slane %v519, %v523
    %v527 = vsel %vm146, %v514, 0
    %529 = vmatprep.subr.mxu0 0.0
    %530 = vmatpush1.msra.mxu0 %v517
    %531 = vmatprep.subr.mxu0 0.0
    %532 = vmatpush1.msra.mxu0 0.0
    %533 = vmatprep.subr.mxu0 0.0
    %534 = vmatpush1.msra.mxu0 0.0
    %535 = vmatprep.subr.mxu0 0.0
    %536 = vmatpush1.msra.mxu0 0.0
    %537 = vmatprep.subr.mxu0 0.0
    %538 = vmatpush1.msra.mxu0 0.0
    %539 = vmatprep.subr.mxu0 0.0
    %540 = vmatpush1.msra.mxu0 0.0
    %541 = vmatprep.subr.mxu0 0.0
    %542 = vmatpush1.msra.mxu0 0.0
    %543 = vmatprep.subr.mxu0 0.0
    %544 = vmatpush1.msra.mxu0 0.0
    %545 = vmatprep.subr.mxu0 0.0
    %546 = vmatpush1.msra.mxu0 0.0
    %547 = vmatprep.subr.mxu0 0.0
    %548 = vmatpush1.msra.mxu0 0.0
    %549 = vmatprep.subr.mxu0 0.0
    %550 = vmatpush1.msra.mxu0 0.0
    %551 = vmatprep.subr.mxu0 0.0
    %552 = vmatpush1.msra.mxu0 0.0
    %553 = vmatprep.subr.mxu0 0.0
    %554 = vmatpush1.msra.mxu0 0.0
    %555 = vmatprep.subr.mxu0 0.0
    %556 = vmatpush1.msra.mxu0 0.0
    %557 = vmatprep.subr.mxu0 0.0
    %558 = vmatpush1.msra.mxu0 0.0
    %559 = vmatprep.subr.mxu0 0.0
    %560 = vmatpush1.msra.mxu0 0.0
    %561 = vmatprep.subr.mxu0 0.0
    %562 = vmatpush1.msra.mxu0 0.0
    %563 = vmatprep.subr.mxu0 0.0
    %564 = vmatpush1.msra.mxu0 0.0
    %565 = vmatprep.subr.mxu0 0.0
    %566 = vmatpush1.msra.mxu0 0.0
    %567 = vmatprep.subr.mxu0 0.0
    %568 = vmatpush1.msra.mxu0 0.0
    %569 = vmatprep.subr.mxu0 0.0
    %570 = vmatpush1.msra.mxu0 0.0
    %571 = vmatprep.subr.mxu0 0.0
    %572 = vmatpush1.msra.mxu0 0.0
    %573 = vmatprep.subr.mxu0 0.0
    %574 = vmatpush1.msra.mxu0 0.0
    %575 = vmatprep.subr.mxu0 0.0
    %576 = vmatpush1.msra.mxu0 0.0
    %577 = vmatprep.subr.mxu0 0.0
    %578 = vmatpush1.msra.mxu0 0.0
    %579 = vmatprep.subr.mxu0 0.0
    %580 = vmatpush1.msra.mxu0 0.0
    %581 = vmatprep.subr.mxu0 0.0
    %582 = vmatpush1.msra.mxu0 0.0
    %583 = vmatprep.subr.mxu0 0.0
    %584 = vmatpush1.msra.mxu0 0.0
    %585 = vmatprep.subr.mxu0 0.0
    %586 = vmatpush1.msra.mxu0 0.0
    %587 = vmatprep.subr.mxu0 0.0
    %588 = vmatpush1.msra.mxu0 0.0
    %589 = vmatprep.subr.mxu0 0.0
    %590 = vmatpush1.msra.mxu0 0.0
    %591 = vmatprep.subr.mxu0 0.0
    %592 = vmatpush1.msra.mxu0 0.0
    %593 = vmatprep.mubr.f32.mxu0 0.0
    %594 = vmatmul.mubr.f32.gmra.mrb[0].mxu0 %v527
    %v595 = vpop.f32.mrb[0].mxu0
    %v596 = vadd.f32 %v524, %v595
    %v597 = vpop.f32.mrb[0].mxu0
    %598 = vdwg.mxu0
    %vm599 = vcmp.ge.f32.partialorder %v596, 0.0
    %v600 = vmul.f32 %v596, 0.01
    %v601 = vsel %vm599, %v596, %v600
    %s602 = scalar_lea.vmem [#allocation5], 128
    %v603 = vld [vmem:[%s602] sm:$0xff]
    %v604 = vld [vmem:[%s602 + $0x8] sm:$0xff]
    %v605 = vld [vmem:[%s602 + $0x10] sm:$0xff]
    %v606 = vld [vmem:[%s602 + $0x18] sm:$0xff]
    %v607 = vld [vmem:[%s602 + $0x20] sm:$0xff]
    %v608 = vld [vmem:[%s602 + $0x28] sm:$0xff]
    %v609 = vld [vmem:[%s602 + $0x30] sm:$0xff]
    %v610 = vld [vmem:[%s602 + $0x38] sm:$0xff]
    %s611 = scalar_lea.vmem %s7, 2
    %v612 = vld [vmem:[%s611] sm:$0x1]
    %v614 = vlaneseq
    %v615 = vshrl.u32 %v614, 7
    %v616 = vsub.s32 0, %v615
    %v617 = vrot.slane %v612, %v616
    %v620 = vsel %vm238, %v601, 0
    %622 = vmatprep.subr.mxu0 0.0
    %623 = vmatpush1.msra.mxu0 %v603
    %624 = vmatprep.subr.mxu0 0.0
    %625 = vmatpush1.msra.mxu0 %v604
    %626 = vmatprep.subr.mxu0 0.0
    %627 = vmatpush1.msra.mxu0 %v605
    %628 = vmatprep.subr.mxu0 0.0
    %629 = vmatpush1.msra.mxu0 %v606
    %630 = vmatprep.subr.mxu0 0.0
    %631 = vmatpush1.msra.mxu0 %v607
    %632 = vmatprep.subr.mxu0 0.0
    %633 = vmatpush1.msra.mxu0 %v608
    %634 = vmatprep.subr.mxu0 0.0
    %635 = vmatpush1.msra.mxu0 %v609
    %636 = vmatprep.subr.mxu0 0.0
    %637 = vmatpush1.msra.mxu0 %v610
    %638 = vmatprep.subr.mxu0 0.0
    %639 = vmatpush1.msra.mxu0 0.0
    %640 = vmatprep.subr.mxu0 0.0
    %641 = vmatpush1.msra.mxu0 0.0
    %642 = vmatprep.subr.mxu0 0.0
    %643 = vmatpush1.msra.mxu0 0.0
    %644 = vmatprep.subr.mxu0 0.0
    %645 = vmatpush1.msra.mxu0 0.0
    %646 = vmatprep.subr.mxu0 0.0
    %647 = vmatpush1.msra.mxu0 0.0
    %648 = vmatprep.subr.mxu0 0.0
    %649 = vmatpush1.msra.mxu0 0.0
    %650 = vmatprep.subr.mxu0 0.0
    %651 = vmatpush1.msra.mxu0 0.0
    %652 = vmatprep.subr.mxu0 0.0
    %653 = vmatpush1.msra.mxu0 0.0
    %654 = vmatprep.subr.mxu0 0.0
    %655 = vmatpush1.msra.mxu0 0.0
    %656 = vmatprep.subr.mxu0 0.0
    %657 = vmatpush1.msra.mxu0 0.0
    %658 = vmatprep.subr.mxu0 0.0
    %659 = vmatpush1.msra.mxu0 0.0
    %660 = vmatprep.subr.mxu0 0.0
    %661 = vmatpush1.msra.mxu0 0.0
    %662 = vmatprep.subr.mxu0 0.0
    %663 = vmatpush1.msra.mxu0 0.0
    %664 = vmatprep.subr.mxu0 0.0
    %665 = vmatpush1.msra.mxu0 0.0
    %666 = vmatprep.subr.mxu0 0.0
    %667 = vmatpush1.msra.mxu0 0.0
    %668 = vmatprep.subr.mxu0 0.0
    %669 = vmatpush1.msra.mxu0 0.0
    %670 = vmatprep.subr.mxu0 0.0
    %671 = vmatpush1.msra.mxu0 0.0
    %672 = vmatprep.subr.mxu0 0.0
    %673 = vmatpush1.msra.mxu0 0.0
    %674 = vmatprep.subr.mxu0 0.0
    %675 = vmatpush1.msra.mxu0 0.0
    %676 = vmatprep.subr.mxu0 0.0
    %677 = vmatpush1.msra.mxu0 0.0
    %678 = vmatprep.subr.mxu0 0.0
    %679 = vmatpush1.msra.mxu0 0.0
    %680 = vmatprep.subr.mxu0 0.0
    %681 = vmatpush1.msra.mxu0 0.0
    %682 = vmatprep.subr.mxu0 0.0
    %683 = vmatpush1.msra.mxu0 0.0
    %684 = vmatprep.subr.mxu0 0.0
    %685 = vmatpush1.msra.mxu0 0.0
    %686 = vmatprep.mubr.f32.mxu0 0.0
    %687 = vmatmul.mubr.f32.gmra.mrb[0].mxu0 %v620
    %v688 = vpop.f32.mrb[0].mxu0
    %v689 = vadd.f32 %v617, %v688
    %v690 = vpop.f32.mrb[0].mxu0
    %691 = vdwg.mxu0
    %vm692 = vcmp.ge.f32.partialorder %v689, 0.0
    %v693 = vmul.f32 %v689, 0.01
    %v694 = vsel %vm692, %v689, %v693
    %s695 = scalar_lea.vmem [#allocation5], 192
    %v696 = vld [vmem:[%s695] sm:$0xff]
    %v697 = vld [vmem:[%s695 + $0x8] sm:$0xff]
    %v698 = vld [vmem:[%s695 + $0x10] sm:$0xff]
    %v699 = vld [vmem:[%s695 + $0x18] sm:$0xff]
    %v700 = vld [vmem:[%s695 + $0x20] sm:$0xff]
    %v701 = vld [vmem:[%s695 + $0x28] sm:$0xff]
    %v702 = vld [vmem:[%s695 + $0x30] sm:$0xff]
    %v703 = vld [vmem:[%s695 + $0x38] sm:$0xff]
    %s704 = scalar_lea.vmem %s7, 3
    %v705 = vld [vmem:[%s704] sm:$0x1]
    %v707 = vlaneseq
    %v708 = vshrl.u32 %v707, 7
    %v709 = vsub.s32 0, %v708
    %v710 = vrot.slane %v705, %v709
    %v713 = vsel %vm238, %v694, 0
    %715 = vmatprep.subr.mxu0 0.0
    %716 = vmatpush1.msra.mxu0 %v696
    %717 = vmatprep.subr.mxu0 0.0
    %718 = vmatpush1.msra.mxu0 %v697
    %719 = vmatprep.subr.mxu0 0.0
    %720 = vmatpush1.msra.mxu0 %v698
    %721 = vmatprep.subr.mxu0 0.0
    %722 = vmatpush1.msra.mxu0 %v699
    %723 = vmatprep.subr.mxu0 0.0
    %724 = vmatpush1.msra.mxu0 %v700
    %725 = vmatprep.subr.mxu0 0.0
    %726 = vmatpush1.msra.mxu0 %v701
    %727 = vmatprep.subr.mxu0 0.0
    %728 = vmatpush1.msra.mxu0 %v702
    %729 = vmatprep.subr.mxu0 0.0
    %730 = vmatpush1.msra.mxu0 %v703
    %731 = vmatprep.subr.mxu0 0.0
    %732 = vmatpush1.msra.mxu0 0.0
    %733 = vmatprep.subr.mxu0 0.0
    %734 = vmatpush1.msra.mxu0 0.0
    %735 = vmatprep.subr.mxu0 0.0
    %736 = vmatpush1.msra.mxu0 0.0
    %737 = vmatprep.subr.mxu0 0.0
    %738 = vmatpush1.msra.mxu0 0.0
    %739 = vmatprep.subr.mxu0 0.0
    %740 = vmatpush1.msra.mxu0 0.0
    %741 = vmatprep.subr.mxu0 0.0
    %742 = vmatpush1.msra.mxu0 0.0
    %743 = vmatprep.subr.mxu0 0.0
    %744 = vmatpush1.msra.mxu0 0.0
    %745 = vmatprep.subr.mxu0 0.0
    %746 = vmatpush1.msra.mxu0 0.0
    %747 = vmatprep.subr.mxu0 0.0
    %748 = vmatpush1.msra.mxu0 0.0
    %749 = vmatprep.subr.mxu0 0.0
    %750 = vmatpush1.msra.mxu0 0.0
    %751 = vmatprep.subr.mxu0 0.0
    %752 = vmatpush1.msra.mxu0 0.0
    %753 = vmatprep.subr.mxu0 0.0
    %754 = vmatpush1.msra.mxu0 0.0
    %755 = vmatprep.subr.mxu0 0.0
    %756 = vmatpush1.msra.mxu0 0.0
    %757 = vmatprep.subr.mxu0 0.0
    %758 = vmatpush1.msra.mxu0 0.0
    %759 = vmatprep.subr.mxu0 0.0
    %760 = vmatpush1.msra.mxu0 0.0
    %761 = vmatprep.subr.mxu0 0.0
    %762 = vmatpush1.msra.mxu0 0.0
    %763 = vmatprep.subr.mxu0 0.0
    %764 = vmatpush1.msra.mxu0 0.0
    %765 = vmatprep.subr.mxu0 0.0
    %766 = vmatpush1.msra.mxu0 0.0
    %767 = vmatprep.subr.mxu0 0.0
    %768 = vmatpush1.msra.mxu0 0.0
    %769 = vmatprep.subr.mxu0 0.0
    %770 = vmatpush1.msra.mxu0 0.0
    %771 = vmatprep.subr.mxu0 0.0
    %772 = vmatpush1.msra.mxu0 0.0
    %773 = vmatprep.subr.mxu0 0.0
    %774 = vmatpush1.msra.mxu0 0.0
    %775 = vmatprep.subr.mxu0 0.0
    %776 = vmatpush1.msra.mxu0 0.0
    %777 = vmatprep.subr.mxu0 0.0
    %778 = vmatpush1.msra.mxu0 0.0
    %779 = vmatprep.mubr.f32.mxu0 0.0
    %780 = vmatmul.mubr.f32.gmra.mrb[0].mxu0 %v713
    %v781 = vpop.f32.mrb[0].mxu0
    %v782 = vadd.f32 %v710, %v781
    %v783 = vpop.f32.mrb[0].mxu0
    %784 = vdwg.mxu0
    %vm785 = vcmp.ge.f32.partialorder %v782, 0.0
    %v786 = vmul.f32 %v782, 0.01
    %v787 = vsel %vm785, %v782, %v786
    %s788 = scalar_lea.vmem [#allocation7], 128
    %v789 = vld [vmem:[%s788] sm:$0xff]
    %v790 = vld [vmem:[%s788 + $0x8] sm:$0xff]
    %v791 = vld [vmem:[%s788 + $0x10] sm:$0xff]
    %v792 = vld [vmem:[%s788 + $0x18] sm:$0xff]
    %v793 = vld [vmem:[%s788 + $0x20] sm:$0xff]
    %v794 = vld [vmem:[%s788 + $0x28] sm:$0xff]
    %v795 = vld [vmem:[%s788 + $0x30] sm:$0xff]
    %v796 = vld [vmem:[%s788 + $0x38] sm:$0xff]
    %v797 = vld [vmem:[%s788 + $0x40] sm:$0xff]
    %v798 = vld [vmem:[%s788 + $0x48] sm:$0xff]
    %v799 = vld [vmem:[%s788 + $0x50] sm:$0xff]
    %v800 = vld [vmem:[%s788 + $0x58] sm:$0xff]
    %v801 = vld [vmem:[%s788 + $0x60] sm:$0xff]
    %v802 = vld [vmem:[%s788 + $0x68] sm:$0xff]
    %v803 = vld [vmem:[%s788 + $0x70] sm:$0xff]
    %v804 = vld [vmem:[%s788 + $0x78] sm:$0xff]
    %s805 = scalar_lea.vmem %s9, 2
    %v806 = vld [vmem:[%s805] sm:$0x3]
    %v808 = vlaneseq
    %v809 = vshrl.u32 %v808, 7
    %v810 = vsub.s32 0, %v809
    %v811 = vrot.slane %v806, %v810
    %v812 = vlaneseq
    %v813 = vshrl.u32 %v812, 7
    %v814 = vsub.s32 1, %v813
    %v815 = vrot.slane %v806, %v814
    %v819 = vsel %vm238, %v787, 0
    %821 = vmatprep.subr.mxu0 %v790
    %822 = vmatpush1.msra.mxu0 %v789
    %823 = vmatprep.subr.mxu0 %v792
    %824 = vmatpush1.msra.mxu0 %v791
    %825 = vmatprep.subr.mxu0 %v794
    %826 = vmatpush1.msra.mxu0 %v793
    %827 = vmatprep.subr.mxu0 %v796
    %828 = vmatpush1.msra.mxu0 %v795
    %829 = vmatprep.subr.mxu0 %v798
    %830 = vmatpush1.msra.mxu0 %v797
    %831 = vmatprep.subr.mxu0 %v800
    %832 = vmatpush1.msra.mxu0 %v799
    %833 = vmatprep.subr.mxu0 %v802
    %834 = vmatpush1.msra.mxu0 %v801
    %835 = vmatprep.subr.mxu0 %v804
    %836 = vmatpush1.msra.mxu0 %v803
    %837 = vmatprep.subr.mxu0 0.0
    %838 = vmatpush1.msra.mxu0 0.0
    %839 = vmatprep.subr.mxu0 0.0
    %840 = vmatpush1.msra.mxu0 0.0
    %841 = vmatprep.subr.mxu0 0.0
    %842 = vmatpush1.msra.mxu0 0.0
    %843 = vmatprep.subr.mxu0 0.0
    %844 = vmatpush1.msra.mxu0 0.0
    %845 = vmatprep.subr.mxu0 0.0
    %846 = vmatpush1.msra.mxu0 0.0
    %847 = vmatprep.subr.mxu0 0.0
    %848 = vmatpush1.msra.mxu0 0.0
    %849 = vmatprep.subr.mxu0 0.0
    %850 = vmatpush1.msra.mxu0 0.0
    %851 = vmatprep.subr.mxu0 0.0
    %852 = vmatpush1.msra.mxu0 0.0
    %853 = vmatprep.subr.mxu0 0.0
    %854 = vmatpush1.msra.mxu0 0.0
    %855 = vmatprep.subr.mxu0 0.0
    %856 = vmatpush1.msra.mxu0 0.0
    %857 = vmatprep.subr.mxu0 0.0
    %858 = vmatpush1.msra.mxu0 0.0
    %859 = vmatprep.subr.mxu0 0.0
    %860 = vmatpush1.msra.mxu0 0.0
    %861 = vmatprep.subr.mxu0 0.0
    %862 = vmatpush1.msra.mxu0 0.0
    %863 = vmatprep.subr.mxu0 0.0
    %864 = vmatpush1.msra.mxu0 0.0
    %865 = vmatprep.subr.mxu0 0.0
    %866 = vmatpush1.msra.mxu0 0.0
    %867 = vmatprep.subr.mxu0 0.0
    %868 = vmatpush1.msra.mxu0 0.0
    %869 = vmatprep.subr.mxu0 0.0
    %870 = vmatpush1.msra.mxu0 0.0
    %871 = vmatprep.subr.mxu0 0.0
    %872 = vmatpush1.msra.mxu0 0.0
    %873 = vmatprep.subr.mxu0 0.0
    %874 = vmatpush1.msra.mxu0 0.0
    %875 = vmatprep.subr.mxu0 0.0
    %876 = vmatpush1.msra.mxu0 0.0
    %877 = vmatprep.subr.mxu0 0.0
    %878 = vmatpush1.msra.mxu0 0.0
    %879 = vmatprep.subr.mxu0 0.0
    %880 = vmatpush1.msra.mxu0 0.0
    %881 = vmatprep.subr.mxu0 0.0
    %882 = vmatpush1.msra.mxu0 0.0
    %883 = vmatprep.subr.mxu0 0.0
    %884 = vmatpush1.msra.mxu0 0.0
    %885 = vmatprep.mubr.f32.mxu0 0.0
    %886 = vmatmul.mubr.f32.gmra.mrb[0].mxu0 %v819
    %v887 = vpop.f32.mrb[0].mxu0
    %v888 = vadd.f32 %v811, %v887
    %v889 = vpop.f32.mrb[0].mxu0
    %v890 = vadd.f32 %v815, %v889
    %891 = vdwg.mxu0
    %v892 = vtanh.pop %v888
    %v893 = vmul.f32 %v892, 1.442695
    %v894 = vpow.pop %v893
    %v895 = vmul.f32 %v134, %v894
    %v896 = vadd.f32 %v895, %v890
    %v897 = vadd.f32 %v515, %v892
    %v898 = vld [vmem:[#allocation8] sm:$0xff]
    %s899 = scalar_lea.vmem [#allocation8], 8
    %v900 = vld [vmem:[%s899] sm:$0xff]
    %s901 = scalar_lea.vmem [#allocation8], 16
    %v902 = vld [vmem:[%s901] sm:$0xff]
    %s903 = scalar_lea.vmem [#allocation8], 24
    %v904 = vld [vmem:[%s903] sm:$0xff]
    %v906 = vsel %vm146, %v896, 0
    %908 = vmatprep.subr.mxu0 0.0
    %909 = vmatpush1.msra.mxu0 %v902
    %910 = vmatprep.subr.mxu0 0.0
    %911 = vmatpush1.msra.mxu0 0.0
    %912 = vmatprep.subr.mxu0 0.0
    %913 = vmatpush1.msra.mxu0 0.0
    %914 = vmatprep.subr.mxu0 0.0
    %915 = vmatpush1.msra.mxu0 0.0
    %916 = vmatprep.subr.mxu0 0.0
    %917 = vmatpush1.msra.mxu0 0.0
    %918 = vmatprep.subr.mxu0 0.0
    %919 = vmatpush1.msra.mxu0 0.0
    %920 = vmatprep.subr.mxu0 0.0
    %921 = vmatpush1.msra.mxu0 0.0
    %922 = vmatprep.subr.mxu0 0.0
    %923 = vmatpush1.msra.mxu0 0.0
    %924 = vmatprep.subr.mxu0 0.0
    %925 = vmatpush1.msra.mxu0 0.0
    %926 = vmatprep.subr.mxu0 0.0
    %927 = vmatpush1.msra.mxu0 0.0
    %928 = vmatprep.subr.mxu0 0.0
    %929 = vmatpush1.msra.mxu0 0.0
    %930 = vmatprep.subr.mxu0 0.0
    %931 = vmatpush1.msra.mxu0 0.0
    %932 = vmatprep.subr.mxu0 0.0
    %933 = vmatpush1.msra.mxu0 0.0
    %934 = vmatprep.subr.mxu0 0.0
    %935 = vmatpush1.msra.mxu0 0.0
    %936 = vmatprep.subr.mxu0 0.0
    %937 = vmatpush1.msra.mxu0 0.0
    %938 = vmatprep.subr.mxu0 0.0
    %939 = vmatpush1.msra.mxu0 0.0
    %940 = vmatprep.subr.mxu0 0.0
    %941 = vmatpush1.msra.mxu0 0.0
    %942 = vmatprep.subr.mxu0 0.0
    %943 = vmatpush1.msra.mxu0 0.0
    %944 = vmatprep.subr.mxu0 0.0
    %945 = vmatpush1.msra.mxu0 0.0
    %946 = vmatprep.subr.mxu0 0.0
    %947 = vmatpush1.msra.mxu0 0.0
    %948 = vmatprep.subr.mxu0 0.0
    %949 = vmatpush1.msra.mxu0 0.0
    %950 = vmatprep.subr.mxu0 0.0
    %951 = vmatpush1.msra.mxu0 0.0
    %952 = vmatprep.subr.mxu0 0.0
    %953 = vmatpush1.msra.mxu0 0.0
    %954 = vmatprep.subr.mxu0 0.0
    %955 = vmatpush1.msra.mxu0 0.0
    %956 = vmatprep.subr.mxu0 0.0
    %957 = vmatpush1.msra.mxu0 0.0
    %958 = vmatprep.subr.mxu0 0.0
    %959 = vmatpush1.msra.mxu0 0.0
    %960 = vmatprep.subr.mxu0 0.0
    %961 = vmatpush1.msra.mxu0 0.0
    %962 = vmatprep.subr.mxu0 0.0
    %963 = vmatpush1.msra.mxu0 0.0
    %964 = vmatprep.subr.mxu0 0.0
    %965 = vmatpush1.msra.mxu0 0.0
    %966 = vmatprep.subr.mxu0 0.0
    %967 = vmatpush1.msra.mxu0 0.0
    %968 = vmatprep.subr.mxu0 0.0
    %969 = vmatpush1.msra.mxu0 0.0
    %970 = vmatprep.subr.mxu0 0.0
    %971 = vmatpush1.msra.mxu0 0.0
    %972 = vmatprep.mubr.f32.mxu0 0.0
    %973 = vmatmul.mubr.f32.gmra.mrb[0].mxu0 %v906
    %v974 = vpop.f32.mrb[0].mxu0
    %v975 = vadd.f32 0.0, %v974
    %v976 = vpop.f32.mrb[0].mxu0
    %977 = vdwg.mxu0
    %978 = vmatprep.subr.mxu0 0.0
    %979 = vmatpush1.msra.mxu0 %v898
    %980 = vmatprep.subr.mxu0 0.0
    %981 = vmatpush1.msra.mxu0 0.0
    %982 = vmatprep.subr.mxu0 0.0
    %983 = vmatpush1.msra.mxu0 0.0
    %984 = vmatprep.subr.mxu0 0.0
    %985 = vmatpush1.msra.mxu0 0.0
    %986 = vmatprep.subr.mxu0 0.0
    %987 = vmatpush1.msra.mxu0 0.0
    %988 = vmatprep.subr.mxu0 0.0
    %989 = vmatpush1.msra.mxu0 0.0
    %990 = vmatprep.subr.mxu0 0.0
    %991 = vmatpush1.msra.mxu0 0.0
    %992 = vmatprep.subr.mxu0 0.0
    %993 = vmatpush1.msra.mxu0 0.0
    %994 = vmatprep.subr.mxu0 0.0
    %995 = vmatpush1.msra.mxu0 0.0
    %996 = vmatprep.subr.mxu0 0.0
    %997 = vmatpush1.msra.mxu0 0.0
    %998 = vmatprep.subr.mxu0 0.0
    %999 = vmatpush1.msra.mxu0 0.0
    %1000 = vmatprep.subr.mxu0 0.0
    %1001 = vmatpush1.msra.mxu0 0.0
    %1002 = vmatprep.subr.mxu0 0.0
    %1003 = vmatpush1.msra.mxu0 0.0
    %1004 = vmatprep.subr.mxu0 0.0
    %1005 = vmatpush1.msra.mxu0 0.0
    %1006 = vmatprep.subr.mxu0 0.0
    %1007 = vmatpush1.msra.mxu0 0.0
    %1008 = vmatprep.subr.mxu0 0.0
    %1009 = vmatpush1.msra.mxu0 0.0
    %1010 = vmatprep.subr.mxu0 0.0
    %1011 = vmatpush1.msra.mxu0 0.0
    %1012 = vmatprep.subr.mxu0 0.0
    %1013 = vmatpush1.msra.mxu0 0.0
    %1014 = vmatprep.subr.mxu0 0.0
    %1015 = vmatpush1.msra.mxu0 0.0
    %1016 = vmatprep.subr.mxu0 0.0
    %1017 = vmatpush1.msra.mxu0 0.0
    %1018 = vmatprep.subr.mxu0 0.0
    %1019 = vmatpush1.msra.mxu0 0.0
    %1020 = vmatprep.subr.mxu0 0.0
    %1021 = vmatpush1.msra.mxu0 0.0
    %1022 = vmatprep.subr.mxu0 0.0
    %1023 = vmatpush1.msra.mxu0 0.0
    %1024 = vmatprep.subr.mxu0 0.0
    %1025 = vmatpush1.msra.mxu0 0.0
    %1026 = vmatprep.subr.mxu0 0.0
    %1027 = vmatpush1.msra.mxu0 0.0
    %1028 = vmatprep.subr.mxu0 0.0
    %1029 = vmatpush1.msra.mxu0 0.0
    %1030 = vmatprep.subr.mxu0 0.0
    %1031 = vmatpush1.msra.mxu0 0.0
    %1032 = vmatprep.subr.mxu0 0.0
    %1033 = vmatpush1.msra.mxu0 0.0
    %1034 = vmatprep.subr.mxu0 0.0
    %1035 = vmatpush1.msra.mxu0 0.0
    %1036 = vmatprep.subr.mxu0 0.0
    %1037 = vmatpush1.msra.mxu0 0.0
    %1038 = vmatprep.subr.mxu0 0.0
    %1039 = vmatpush1.msra.mxu0 0.0
    %1040 = vmatprep.subr.mxu0 0.0
    %1041 = vmatpush1.msra.mxu0 0.0
    %1042 = vmatprep.mubr.f32.mxu0 0.0
    %1043 = vmatmul.mubr.f32.gmra.mrb[0].mxu0 %v527
    %v1044 = vpop.f32.mrb[0].mxu0
    %v1045 = vadd.f32 %v975, %v1044
    %v1046 = vpop.f32.mrb[0].mxu0
    %1047 = vdwg.mxu0
    %1048 = vmatprep.subr.mxu0 0.0
    %1049 = vmatpush1.msra.mxu0 %v904
    %1050 = vmatprep.subr.mxu0 0.0
    %1051 = vmatpush1.msra.mxu0 0.0
    %1052 = vmatprep.subr.mxu0 0.0
    %1053 = vmatpush1.msra.mxu0 0.0
    %1054 = vmatprep.subr.mxu0 0.0
    %1055 = vmatpush1.msra.mxu0 0.0
    %1056 = vmatprep.subr.mxu0 0.0
    %1057 = vmatpush1.msra.mxu0 0.0
    %1058 = vmatprep.subr.mxu0 0.0
    %1059 = vmatpush1.msra.mxu0 0.0
    %1060 = vmatprep.subr.mxu0 0.0
    %1061 = vmatpush1.msra.mxu0 0.0
    %1062 = vmatprep.subr.mxu0 0.0
    %1063 = vmatpush1.msra.mxu0 0.0
    %1064 = vmatprep.subr.mxu0 0.0
    %1065 = vmatpush1.msra.mxu0 0.0
    %1066 = vmatprep.subr.mxu0 0.0
    %1067 = vmatpush1.msra.mxu0 0.0
    %1068 = vmatprep.subr.mxu0 0.0
    %1069 = vmatpush1.msra.mxu0 0.0
    %1070 = vmatprep.subr.mxu0 0.0
    %1071 = vmatpush1.msra.mxu0 0.0
    %1072 = vmatprep.subr.mxu0 0.0
    %1073 = vmatpush1.msra.mxu0 0.0
    %1074 = vmatprep.subr.mxu0 0.0
    %1075 = vmatpush1.msra.mxu0 0.0
    %1076 = vmatprep.subr.mxu0 0.0
    %1077 = vmatpush1.msra.mxu0 0.0
    %1078 = vmatprep.subr.mxu0 0.0
    %1079 = vmatpush1.msra.mxu0 0.0
    %1080 = vmatprep.subr.mxu0 0.0
    %1081 = vmatpush1.msra.mxu0 0.0
    %1082 = vmatprep.subr.mxu0 0.0
    %1083 = vmatpush1.msra.mxu0 0.0
    %1084 = vmatprep.subr.mxu0 0.0
    %1085 = vmatpush1.msra.mxu0 0.0
    %1086 = vmatprep.subr.mxu0 0.0
    %1087 = vmatpush1.msra.mxu0 0.0
    %1088 = vmatprep.subr.mxu0 0.0
    %1089 = vmatpush1.msra.mxu0 0.0
    %1090 = vmatprep.subr.mxu0 0.0
    %1091 = vmatpush1.msra.mxu0 0.0
    %1092 = vmatprep.subr.mxu0 0.0
    %1093 = vmatpush1.msra.mxu0 0.0
    %1094 = vmatprep.subr.mxu0 0.0
    %1095 = vmatpush1.msra.mxu0 0.0
    %1096 = vmatprep.subr.mxu0 0.0
    %1097 = vmatpush1.msra.mxu0 0.0
    %1098 = vmatprep.subr.mxu0 0.0
    %1099 = vmatpush1.msra.mxu0 0.0
    %1100 = vmatprep.subr.mxu0 0.0
    %1101 = vmatpush1.msra.mxu0 0.0
    %1102 = vmatprep.subr.mxu0 0.0
    %1103 = vmatpush1.msra.mxu0 0.0
    %1104 = vmatprep.subr.mxu0 0.0
    %1105 = vmatpush1.msra.mxu0 0.0
    %1106 = vmatprep.subr.mxu0 0.0
    %1107 = vmatpush1.msra.mxu0 0.0
    %1108 = vmatprep.subr.mxu0 0.0
    %1109 = vmatpush1.msra.mxu0 0.0
    %1110 = vmatprep.subr.mxu0 0.0
    %1111 = vmatpush1.msra.mxu0 0.0
    %1112 = vmatprep.mubr.f32.mxu0 0.0
    %1113 = vmatmul.mubr.f32.gmra.mrb[0].mxu0 %v906
    %v1114 = vpop.f32.mrb[0].mxu0
    %v1115 = vadd.f32 0.0, %v1114
    %v1116 = vpop.f32.mrb[0].mxu0
    %1117 = vdwg.mxu0
    %1118 = vmatprep.subr.mxu0 0.0
    %1119 = vmatpush1.msra.mxu0 %v900
    %1120 = vmatprep.subr.mxu0 0.0
    %1121 = vmatpush1.msra.mxu0 0.0
    %1122 = vmatprep.subr.mxu0 0.0
    %1123 = vmatpush1.msra.mxu0 0.0
    %1124 = vmatprep.subr.mxu0 0.0
    %1125 = vmatpush1.msra.mxu0 0.0
    %1126 = vmatprep.subr.mxu0 0.0
    %1127 = vmatpush1.msra.mxu0 0.0
    %1128 = vmatprep.subr.mxu0 0.0
    %1129 = vmatpush1.msra.mxu0 0.0
    %1130 = vmatprep.subr.mxu0 0.0
    %1131 = vmatpush1.msra.mxu0 0.0
    %1132 = vmatprep.subr.mxu0 0.0
    %1133 = vmatpush1.msra.mxu0 0.0
    %1134 = vmatprep.subr.mxu0 0.0
    %1135 = vmatpush1.msra.mxu0 0.0
    %1136 = vmatprep.subr.mxu0 0.0
    %1137 = vmatpush1.msra.mxu0 0.0
    %1138 = vmatprep.subr.mxu0 0.0
    %1139 = vmatpush1.msra.mxu0 0.0
    %1140 = vmatprep.subr.mxu0 0.0
    %1141 = vmatpush1.msra.mxu0 0.0
    %1142 = vmatprep.subr.mxu0 0.0
    %1143 = vmatpush1.msra.mxu0 0.0
    %1144 = vmatprep.subr.mxu0 0.0
    %1145 = vmatpush1.msra.mxu0 0.0
    %1146 = vmatprep.subr.mxu0 0.0
    %1147 = vmatpush1.msra.mxu0 0.0
    %1148 = vmatprep.subr.mxu0 0.0
    %1149 = vmatpush1.msra.mxu0 0.0
    %1150 = vmatprep.subr.mxu0 0.0
    %1151 = vmatpush1.msra.mxu0 0.0
    %1152 = vmatprep.subr.mxu0 0.0
    %1153 = vmatpush1.msra.mxu0 0.0
    %1154 = vmatprep.subr.mxu0 0.0
    %1155 = vmatpush1.msra.mxu0 0.0
    %1156 = vmatprep.subr.mxu0 0.0
    %1157 = vmatpush1.msra.mxu0 0.0
    %1158 = vmatprep.subr.mxu0 0.0
    %1159 = vmatpush1.msra.mxu0 0.0
    %1160 = vmatprep.subr.mxu0 0.0
    %1161 = vmatpush1.msra.mxu0 0.0
    %1162 = vmatprep.subr.mxu0 0.0
    %1163 = vmatpush1.msra.mxu0 0.0
    %1164 = vmatprep.subr.mxu0 0.0
    %1165 = vmatpush1.msra.mxu0 0.0
    %1166 = vmatprep.subr.mxu0 0.0
    %1167 = vmatpush1.msra.mxu0 0.0
    %1168 = vmatprep.subr.mxu0 0.0
    %1169 = vmatpush1.msra.mxu0 0.0
    %1170 = vmatprep.subr.mxu0 0.0
    %1171 = vmatpush1.msra.mxu0 0.0
    %1172 = vmatprep.subr.mxu0 0.0
    %1173 = vmatpush1.msra.mxu0 0.0
    %1174 = vmatprep.subr.mxu0 0.0
    %1175 = vmatpush1.msra.mxu0 0.0
    %1176 = vmatprep.subr.mxu0 0.0
    %1177 = vmatpush1.msra.mxu0 0.0
    %1178 = vmatprep.subr.mxu0 0.0
    %1179 = vmatpush1.msra.mxu0 0.0
    %1180 = vmatprep.subr.mxu0 0.0
    %1181 = vmatpush1.msra.mxu0 0.0
    %1182 = vmatprep.mubr.f32.mxu0 0.0
    %1183 = vmatmul.mubr.f32.gmra.mrb[0].mxu0 %v527
    %v1184 = vpop.f32.mrb[0].mxu0
    %v1185 = vadd.f32 %v1115, %v1184
    %v1186 = vpop.f32.mrb[0].mxu0
    %1187 = vdwg.mxu0
    %s1188 = scalar_lea.vmem [#allocation2], 2
    %v1189 = vld [vmem:[%s1188] sm:$0x1]
    %s1190 = scalar_lea.vmem %s2, 2
    %v1191 = vld [vmem:[%s1190] sm:$0x1]
    %v1193 = vlaneseq
    %v1194 = vshrl.u32 %v1193, 7
    %v1195 = vsub.s32 0, %v1194
    %v1196 = vrot.slane %v1191, %v1195
    %v1198 = vadd.f32 %v1045, %v1196
    %v1200 = vlaneseq
    %v1201 = vshrl.u32 %v1200, 7
    %v1202 = vsub.s32 0, %v1201
    %v1203 = vrot.slane %v1189, %v1202
    %v1205 = vmul.f32 %v1203, %v1198
    %s1206 = scalar_lea.vmem [#allocation2], 3
    %v1207 = vld [vmem:[%s1206] sm:$0x1]
    %s1208 = scalar_lea.vmem %s2, 3
    %v1209 = vld [vmem:[%s1208] sm:$0x1]
    %v1211 = vlaneseq
    %v1212 = vshrl.u32 %v1211, 7
    %v1213 = vsub.s32 0, %v1212
    %v1214 = vrot.slane %v1209, %v1213
    %v1216 = vadd.f32 %v1185, %v1214
    %v1218 = vlaneseq
    %v1219 = vshrl.u32 %v1218, 7
    %v1220 = vsub.s32 0, %v1219
    %v1221 = vrot.slane %v1207, %v1220
    %v1223 = vmul.f32 %v1221, %v1216
    %vm1224 = vcmp.ge.f32.partialorder %v1205, 0.0
    %v1225 = vmul.f32 %v1205, 0.95
    %v1226 = vsel %vm1224, %v1205, %v1225
    %vm1227 = vcmp.ge.f32.partialorder %v1223, 0.0
    %v1228 = vmul.f32 %v1223, 0.95
    %v1229 = vsel %vm1227, %v1223, %v1228
    %s1230 = scalar_lea.vmem %s4, 16
    %v1231 = vld [vmem:[%s1230] sm:$0xff]
    %s1232 = scalar_lea.vmem %s5, 2
    %v1233 = vld [vmem:[%s1232] sm:$0x1]
    %v1235 = vlaneseq
    %v1236 = vshrl.u32 %v1235, 7
    %v1237 = vsub.s32 0, %v1236
    %v1238 = vrot.slane %v1233, %v1237
    %v1241 = vsel %vm146, %v1226, 0
    %1243 = vmatprep.subr.mxu0 0.0
    %1244 = vmatpush1.msra.mxu0 %v1231
    %1245 = vmatprep.subr.mxu0 0.0
    %1246 = vmatpush1.msra.mxu0 0.0
    %1247 = vmatprep.subr.mxu0 0.0
    %1248 = vmatpush1.msra.mxu0 0.0
    %1249 = vmatprep.subr.mxu0 0.0
    %1250 = vmatpush1.msra.mxu0 0.0
    %1251 = vmatprep.subr.mxu0 0.0
    %1252 = vmatpush1.msra.mxu0 0.0
    %1253 = vmatprep.subr.mxu0 0.0
    %1254 = vmatpush1.msra.mxu0 0.0
    %1255 = vmatprep.subr.mxu0 0.0
    %1256 = vmatpush1.msra.mxu0 0.0
    %1257 = vmatprep.subr.mxu0 0.0
    %1258 = vmatpush1.msra.mxu0 0.0
    %1259 = vmatprep.subr.mxu0 0.0
    %1260 = vmatpush1.msra.mxu0 0.0
    %1261 = vmatprep.subr.mxu0 0.0
    %1262 = vmatpush1.msra.mxu0 0.0
    %1263 = vmatprep.subr.mxu0 0.0
    %1264 = vmatpush1.msra.mxu0 0.0
    %1265 = vmatprep.subr.mxu0 0.0
    %1266 = vmatpush1.msra.mxu0 0.0
    %1267 = vmatprep.subr.mxu0 0.0
    %1268 = vmatpush1.msra.mxu0 0.0
    %1269 = vmatprep.subr.mxu0 0.0
    %1270 = vmatpush1.msra.mxu0 0.0
    %1271 = vmatprep.subr.mxu0 0.0
    %1272 = vmatpush1.msra.mxu0 0.0
    %1273 = vmatprep.subr.mxu0 0.0
    %1274 = vmatpush1.msra.mxu0 0.0
    %1275 = vmatprep.subr.mxu0 0.0
    %1276 = vmatpush1.msra.mxu0 0.0
    %1277 = vmatprep.subr.mxu0 0.0
    %1278 = vmatpush1.msra.mxu0 0.0
    %1279 = vmatprep.subr.mxu0 0.0
    %1280 = vmatpush1.msra.mxu0 0.0
    %1281 = vmatprep.subr.mxu0 0.0
    %1282 = vmatpush1.msra.mxu0 0.0
    %1283 = vmatprep.subr.mxu0 0.0
    %1284 = vmatpush1.msra.mxu0 0.0
    %1285 = vmatprep.subr.mxu0 0.0
    %1286 = vmatpush1.msra.mxu0 0.0
    %1287 = vmatprep.subr.mxu0 0.0
    %1288 = vmatpush1.msra.mxu0 0.0
    %1289 = vmatprep.subr.mxu0 0.0
    %1290 = vmatpush1.msra.mxu0 0.0
    %1291 = vmatprep.subr.mxu0 0.0
    %1292 = vmatpush1.msra.mxu0 0.0
    %1293 = vmatprep.subr.mxu0 0.0
    %1294 = vmatpush1.msra.mxu0 0.0
    %1295 = vmatprep.subr.mxu0 0.0
    %1296 = vmatpush1.msra.mxu0 0.0
    %1297 = vmatprep.subr.mxu0 0.0
    %1298 = vmatpush1.msra.mxu0 0.0
    %1299 = vmatprep.subr.mxu0 0.0
    %1300 = vmatpush1.msra.mxu0 0.0
    %1301 = vmatprep.subr.mxu0 0.0
    %1302 = vmatpush1.msra.mxu0 0.0
    %1303 = vmatprep.subr.mxu0 0.0
    %1304 = vmatpush1.msra.mxu0 0.0
    %1305 = vmatprep.subr.mxu0 0.0
    %1306 = vmatpush1.msra.mxu0 0.0
    %1307 = vmatprep.mubr.f32.mxu0 0.0
    %1308 = vmatmul.mubr.f32.gmra.mrb[0].mxu0 %v1241
    %v1309 = vpop.f32.mrb[0].mxu0
    %v1310 = vadd.f32 %v1238, %v1309
    %v1311 = vpop.f32.mrb[0].mxu0
    %1312 = vdwg.mxu0
    %vm1313 = vcmp.ge.f32.partialorder %v1310, 0.0
    %v1314 = vmul.f32 %v1310, 0.01
    %v1315 = vsel %vm1313, %v1310, %v1314
    %s1316 = scalar_lea.vmem [#allocation5], 256
    %v1317 = vld [vmem:[%s1316] sm:$0xff]
    %v1318 = vld [vmem:[%s1316 + $0x8] sm:$0xff]
    %v1319 = vld [vmem:[%s1316 + $0x10] sm:$0xff]
    %v1320 = vld [vmem:[%s1316 + $0x18] sm:$0xff]
    %v1321 = vld [vmem:[%s1316 + $0x20] sm:$0xff]
    %v1322 = vld [vmem:[%s1316 + $0x28] sm:$0xff]
    %v1323 = vld [vmem:[%s1316 + $0x30] sm:$0xff]
    %v1324 = vld [vmem:[%s1316 + $0x38] sm:$0xff]
    %s1325 = scalar_lea.vmem %s7, 4
    %v1326 = vld [vmem:[%s1325] sm:$0x1]
    %v1328 = vlaneseq
    %v1329 = vshrl.u32 %v1328, 7
    %v1330 = vsub.s32 0, %v1329
    %v1331 = vrot.slane %v1326, %v1330
    %v1334 = vsel %vm238, %v1315, 0
    %1336 = vmatprep.subr.mxu0 0.0
    %1337 = vmatpush1.msra.mxu0 %v1317
    %1338 = vmatprep.subr.mxu0 0.0
    %1339 = vmatpush1.msra.mxu0 %v1318
    %1340 = vmatprep.subr.mxu0 0.0
    %1341 = vmatpush1.msra.mxu0 %v1319
    %1342 = vmatprep.subr.mxu0 0.0
    %1343 = vmatpush1.msra.mxu0 %v1320
    %1344 = vmatprep.subr.mxu0 0.0
    %1345 = vmatpush1.msra.mxu0 %v1321
    %1346 = vmatprep.subr.mxu0 0.0
    %1347 = vmatpush1.msra.mxu0 %v1322
    %1348 = vmatprep.subr.mxu0 0.0
    %1349 = vmatpush1.msra.mxu0 %v1323
    %1350 = vmatprep.subr.mxu0 0.0
    %1351 = vmatpush1.msra.mxu0 %v1324
    %1352 = vmatprep.subr.mxu0 0.0
    %1353 = vmatpush1.msra.mxu0 0.0
    %1354 = vmatprep.subr.mxu0 0.0
    %1355 = vmatpush1.msra.mxu0 0.0
    %1356 = vmatprep.subr.mxu0 0.0
    %1357 = vmatpush1.msra.mxu0 0.0
    %1358 = vmatprep.subr.mxu0 0.0
    %1359 = vmatpush1.msra.mxu0 0.0
    %1360 = vmatprep.subr.mxu0 0.0
    %1361 = vmatpush1.msra.mxu0 0.0
    %1362 = vmatprep.subr.mxu0 0.0
    %1363 = vmatpush1.msra.mxu0 0.0
    %1364 = vmatprep.subr.mxu0 0.0
    %1365 = vmatpush1.msra.mxu0 0.0
    %1366 = vmatprep.subr.mxu0 0.0
    %1367 = vmatpush1.msra.mxu0 0.0
    %1368 = vmatprep.subr.mxu0 0.0
    %1369 = vmatpush1.msra.mxu0 0.0
    %1370 = vmatprep.subr.mxu0 0.0
    %1371 = vmatpush1.msra.mxu0 0.0
    %1372 = vmatprep.subr.mxu0 0.0
    %1373 = vmatpush1.msra.mxu0 0.0
    %1374 = vmatprep.subr.mxu0 0.0
    %1375 = vmatpush1.msra.mxu0 0.0
    %1376 = vmatprep.subr.mxu0 0.0
    %1377 = vmatpush1.msra.mxu0 0.0
    %1378 = vmatprep.subr.mxu0 0.0
    %1379 = vmatpush1.msra.mxu0 0.0
    %1380 = vmatprep.subr.mxu0 0.0
    %1381 = vmatpush1.msra.mxu0 0.0
    %1382 = vmatprep.subr.mxu0 0.0
    %1383 = vmatpush1.msra.mxu0 0.0
    %1384 = vmatprep.subr.mxu0 0.0
    %1385 = vmatpush1.msra.mxu0 0.0
    %1386 = vmatprep.subr.mxu0 0.0
    %1387 = vmatpush1.msra.mxu0 0.0
    %1388 = vmatprep.subr.mxu0 0.0
    %1389 = vmatpush1.msra.mxu0 0.0
    %1390 = vmatprep.subr.mxu0 0.0
    %1391 = vmatpush1.msra.mxu0 0.0
    %1392 = vmatprep.subr.mxu0 0.0
    %1393 = vmatpush1.msra.mxu0 0.0
    %1394 = vmatprep.subr.mxu0 0.0
    %1395 = vmatpush1.msra.mxu0 0.0
    %1396 = vmatprep.subr.mxu0 0.0
    %1397 = vmatpush1.msra.mxu0 0.0
    %1398 = vmatprep.subr.mxu0 0.0
    %1399 = vmatpush1.msra.mxu0 0.0
    %1400 = vmatprep.mubr.f32.mxu0 0.0
    %1401 = vmatmul.mubr.f32.gmra.mrb[0].mxu0 %v1334
    %v1402 = vpop.f32.mrb[0].mxu0
    %v1403 = vadd.f32 %v1331, %v1402
    %v1404 = vpop.f32.mrb[0].mxu0
    %1405 = vdwg.mxu0
    %vm1406 = vcmp.ge.f32.partialorder %v1403, 0.0
    %v1407 = vmul.f32 %v1403, 0.01
    %v1408 = vsel %vm1406, %v1403, %v1407
    %s1409 = scalar_lea.vmem [#allocation5], 320
    %v1410 = vld [vmem:[%s1409] sm:$0xff]
    %v1411 = vld [vmem:[%s1409 + $0x8] sm:$0xff]
    %v1412 = vld [vmem:[%s1409 + $0x10] sm:$0xff]
    %v1413 = vld [vmem:[%s1409 + $0x18] sm:$0xff]
    %v1414 = vld [vmem:[%s1409 + $0x20] sm:$0xff]
    %v1415 = vld [vmem:[%s1409 + $0x28] sm:$0xff]
    %v1416 = vld [vmem:[%s1409 + $0x30] sm:$0xff]
    %v1417 = vld [vmem:[%s1409 + $0x38] sm:$0xff]
    %s1418 = scalar_lea.vmem %s7, 5
    %v1419 = vld [vmem:[%s1418] sm:$0x1]
    %v1421 = vlaneseq
    %v1422 = vshrl.u32 %v1421, 7
    %v1423 = vsub.s32 0, %v1422
    %v1424 = vrot.slane %v1419, %v1423
    %v1427 = vsel %vm238, %v1408, 0
    %1429 = vmatprep.subr.mxu0 0.0
    %1430 = vmatpush1.msra.mxu0 %v1410
    %1431 = vmatprep.subr.mxu0 0.0
    %1432 = vmatpush1.msra.mxu0 %v1411
    %1433 = vmatprep.subr.mxu0 0.0
    %1434 = vmatpush1.msra.mxu0 %v1412
    %1435 = vmatprep.subr.mxu0 0.0
    %1436 = vmatpush1.msra.mxu0 %v1413
    %1437 = vmatprep.subr.mxu0 0.0
    %1438 = vmatpush1.msra.mxu0 %v1414
    %1439 = vmatprep.subr.mxu0 0.0
    %1440 = vmatpush1.msra.mxu0 %v1415
    %1441 = vmatprep.subr.mxu0 0.0
    %1442 = vmatpush1.msra.mxu0 %v1416
    %1443 = vmatprep.subr.mxu0 0.0
    %1444 = vmatpush1.msra.mxu0 %v1417
    %1445 = vmatprep.subr.mxu0 0.0
    %1446 = vmatpush1.msra.mxu0 0.0
    %1447 = vmatprep.subr.mxu0 0.0
    %1448 = vmatpush1.msra.mxu0 0.0
    %1449 = vmatprep.subr.mxu0 0.0
    %1450 = vmatpush1.msra.mxu0 0.0
    %1451 = vmatprep.subr.mxu0 0.0
    %1452 = vmatpush1.msra.mxu0 0.0
    %1453 = vmatprep.subr.mxu0 0.0
    %1454 = vmatpush1.msra.mxu0 0.0
    %1455 = vmatprep.subr.mxu0 0.0
    %1456 = vmatpush1.msra.mxu0 0.0
    %1457 = vmatprep.subr.mxu0 0.0
    %1458 = vmatpush1.msra.mxu0 0.0
    %1459 = vmatprep.subr.mxu0 0.0
    %1460 = vmatpush1.msra.mxu0 0.0
    %1461 = vmatprep.subr.mxu0 0.0
    %1462 = vmatpush1.msra.mxu0 0.0
    %1463 = vmatprep.subr.mxu0 0.0
    %1464 = vmatpush1.msra.mxu0 0.0
    %1465 = vmatprep.subr.mxu0 0.0
    %1466 = vmatpush1.msra.mxu0 0.0
    %1467 = vmatprep.subr.mxu0 0.0
    %1468 = vmatpush1.msra.mxu0 0.0
    %1469 = vmatprep.subr.mxu0 0.0
    %1470 = vmatpush1.msra.mxu0 0.0
    %1471 = vmatprep.subr.mxu0 0.0
    %1472 = vmatpush1.msra.mxu0 0.0
    %1473 = vmatprep.subr.mxu0 0.0
    %1474 = vmatpush1.msra.mxu0 0.0
    %1475 = vmatprep.subr.mxu0 0.0
    %1476 = vmatpush1.msra.mxu0 0.0
    %1477 = vmatprep.subr.mxu0 0.0
    %1478 = vmatpush1.msra.mxu0 0.0
    %1479 = vmatprep.subr.mxu0 0.0
    %1480 = vmatpush1.msra.mxu0 0.0
    %1481 = vmatprep.subr.mxu0 0.0
    %1482 = vmatpush1.msra.mxu0 0.0
    %1483 = vmatprep.subr.mxu0 0.0
    %1484 = vmatpush1.msra.mxu0 0.0
    %1485 = vmatprep.subr.mxu0 0.0
    %1486 = vmatpush1.msra.mxu0 0.0
    %1487 = vmatprep.subr.mxu0 0.0
    %1488 = vmatpush1.msra.mxu0 0.0
    %1489 = vmatprep.subr.mxu0 0.0
    %1490 = vmatpush1.msra.mxu0 0.0
    %1491 = vmatprep.subr.mxu0 0.0
    %1492 = vmatpush1.msra.mxu0 0.0
    %1493 = vmatprep.mubr.f32.mxu0 0.0
    %1494 = vmatmul.mubr.f32.gmra.mrb[0].mxu0 %v1427
    %v1495 = vpop.f32.mrb[0].mxu0
    %v1496 = vadd.f32 %v1424, %v1495
    %v1497 = vpop.f32.mrb[0].mxu0
    %1498 = vdwg.mxu0
    %vm1499 = vcmp.ge.f32.partialorder %v1496, 0.0
    %v1500 = vmul.f32 %v1496, 0.01
    %v1501 = vsel %vm1499, %v1496, %v1500
    %s1502 = scalar_lea.vmem [#allocation7], 256
    %v1503 = vld [vmem:[%s1502] sm:$0xff]
    %v1504 = vld [vmem:[%s1502 + $0x8] sm:$0xff]
    %v1505 = vld [vmem:[%s1502 + $0x10] sm:$0xff]
    %v1506 = vld [vmem:[%s1502 + $0x18] sm:$0xff]
    %v1507 = vld [vmem:[%s1502 + $0x20] sm:$0xff]
    %v1508 = vld [vmem:[%s1502 + $0x28] sm:$0xff]
    %v1509 = vld [vmem:[%s1502 + $0x30] sm:$0xff]
    %v1510 = vld [vmem:[%s1502 + $0x38] sm:$0xff]
    %v1511 = vld [vmem:[%s1502 + $0x40] sm:$0xff]
    %v1512 = vld [vmem:[%s1502 + $0x48] sm:$0xff]
    %v1513 = vld [vmem:[%s1502 + $0x50] sm:$0xff]
    %v1514 = vld [vmem:[%s1502 + $0x58] sm:$0xff]
    %v1515 = vld [vmem:[%s1502 + $0x60] sm:$0xff]
    %v1516 = vld [vmem:[%s1502 + $0x68] sm:$0xff]
    %v1517 = vld [vmem:[%s1502 + $0x70] sm:$0xff]
    %v1518 = vld [vmem:[%s1502 + $0x78] sm:$0xff]
    %s1519 = scalar_lea.vmem %s9, 4
    %v1520 = vld [vmem:[%s1519] sm:$0x3]
    %v1522 = vlaneseq
    %v1523 = vshrl.u32 %v1522, 7
    %v1524 = vsub.s32 0, %v1523
    %v1525 = vrot.slane %v1520, %v1524
    %v1526 = vlaneseq
    %v1527 = vshrl.u32 %v1526, 7
    %v1528 = vsub.s32 1, %v1527
    %v1529 = vrot.slane %v1520, %v1528
    %v1533 = vsel %vm238, %v1501, 0
    %1535 = vmatprep.subr.mxu0 %v1504
    %1536 = vmatpush1.msra.mxu0 %v1503
    %1537 = vmatprep.subr.mxu0 %v1506
    %1538 = vmatpush1.msra.mxu0 %v1505
    %1539 = vmatprep.subr.mxu0 %v1508
    %1540 = vmatpush1.msra.mxu0 %v1507
    %1541 = vmatprep.subr.mxu0 %v1510
    %1542 = vmatpush1.msra.mxu0 %v1509
    %1543 = vmatprep.subr.mxu0 %v1512
    %1544 = vmatpush1.msra.mxu0 %v1511
    %1545 = vmatprep.subr.mxu0 %v1514
    %1546 = vmatpush1.msra.mxu0 %v1513
    %1547 = vmatprep.subr.mxu0 %v1516
    %1548 = vmatpush1.msra.mxu0 %v1515
    %1549 = vmatprep.subr.mxu0 %v1518
    %1550 = vmatpush1.msra.mxu0 %v1517
    %1551 = vmatprep.subr.mxu0 0.0
    %1552 = vmatpush1.msra.mxu0 0.0
    %1553 = vmatprep.subr.mxu0 0.0
    %1554 = vmatpush1.msra.mxu0 0.0
    %1555 = vmatprep.subr.mxu0 0.0
    %1556 = vmatpush1.msra.mxu0 0.0
    %1557 = vmatprep.subr.mxu0 0.0
    %1558 = vmatpush1.msra.mxu0 0.0
    %1559 = vmatprep.subr.mxu0 0.0
    %1560 = vmatpush1.msra.mxu0 0.0
    %1561 = vmatprep.subr.mxu0 0.0
    %1562 = vmatpush1.msra.mxu0 0.0
    %1563 = vmatprep.subr.mxu0 0.0
    %1564 = vmatpush1.msra.mxu0 0.0
    %1565 = vmatprep.subr.mxu0 0.0
    %1566 = vmatpush1.msra.mxu0 0.0
    %1567 = vmatprep.subr.mxu0 0.0
    %1568 = vmatpush1.msra.mxu0 0.0
    %1569 = vmatprep.subr.mxu0 0.0
    %1570 = vmatpush1.msra.mxu0 0.0
    %1571 = vmatprep.subr.mxu0 0.0
    %1572 = vmatpush1.msra.mxu0 0.0
    %1573 = vmatprep.subr.mxu0 0.0
    %1574 = vmatpush1.msra.mxu0 0.0
    %1575 = vmatprep.subr.mxu0 0.0
    %1576 = vmatpush1.msra.mxu0 0.0
    %1577 = vmatprep.subr.mxu0 0.0
    %1578 = vmatpush1.msra.mxu0 0.0
    %1579 = vmatprep.subr.mxu0 0.0
    %1580 = vmatpush1.msra.mxu0 0.0
    %1581 = vmatprep.subr.mxu0 0.0
    %1582 = vmatpush1.msra.mxu0 0.0
    %1583 = vmatprep.subr.mxu0 0.0
    %1584 = vmatpush1.msra.mxu0 0.0
    %1585 = vmatprep.subr.mxu0 0.0
    %1586 = vmatpush1.msra.mxu0 0.0
    %1587 = vmatprep.subr.mxu0 0.0
    %1588 = vmatpush1.msra.mxu0 0.0
    %1589 = vmatprep.subr.mxu0 0.0
    %1590 = vmatpush1.msra.mxu0 0.0
    %1591 = vmatprep.subr.mxu0 0.0
    %1592 = vmatpush1.msra.mxu0 0.0
    %1593 = vmatprep.subr.mxu0 0.0
    %1594 = vmatpush1.msra.mxu0 0.0
    %1595 = vmatprep.subr.mxu0 0.0
    %1596 = vmatpush1.msra.mxu0 0.0
    %1597 = vmatprep.subr.mxu0 0.0
    %1598 = vmatpush1.msra.mxu0 0.0
    %1599 = vmatprep.mubr.f32.mxu0 0.0
    %1600 = vmatmul.mubr.f32.gmra.mrb[0].mxu0 %v1533
    %v1601 = vpop.f32.mrb[0].mxu0
    %v1602 = vadd.f32 %v1525, %v1601
    %v1603 = vpop.f32.mrb[0].mxu0
    %v1604 = vadd.f32 %v1529, %v1603
    %1605 = vdwg.mxu0
    %v1606 = vtanh.pop %v1602
    %v1607 = vmul.f32 %v1606, 1.442695
    %v1608 = vpow.pop %v1607
    %v1609 = vmul.f32 %v1229, %v1608
    %v1610 = vadd.f32 %v1609, %v1604
    %v1611 = vadd.f32 %v897, %v1606
    %s1612 = scalar_lea.vmem %s4, 24
    %v1613 = vld [vmem:[%s1612] sm:$0xff]
    %s1614 = scalar_lea.vmem %s5, 3
    %v1615 = vld [vmem:[%s1614] sm:$0x1]
    %v1617 = vlaneseq
    %v1618 = vshrl.u32 %v1617, 7
    %v1619 = vsub.s32 0, %v1618
    %v1620 = vrot.slane %v1615, %v1619
    %v1623 = vsel %vm146, %v1610, 0
    %1625 = vmatprep.subr.mxu0 0.0
    %1626 = vmatpush1.msra.mxu0 %v1613
    %1627 = vmatprep.subr.mxu0 0.0
    %1628 = vmatpush1.msra.mxu0 0.0
    %1629 = vmatprep.subr.mxu0 0.0
    %1630 = vmatpush1.msra.mxu0 0.0
    %1631 = vmatprep.subr.mxu0 0.0
    %1632 = vmatpush1.msra.mxu0 0.0
    %1633 = vmatprep.subr.mxu0 0.0
    %1634 = vmatpush1.msra.mxu0 0.0
    %1635 = vmatprep.subr.mxu0 0.0
    %1636 = vmatpush1.msra.mxu0 0.0
    %1637 = vmatprep.subr.mxu0 0.0
    %1638 = vmatpush1.msra.mxu0 0.0
    %1639 = vmatprep.subr.mxu0 0.0
    %1640 = vmatpush1.msra.mxu0 0.0
    %1641 = vmatprep.subr.mxu0 0.0
    %1642 = vmatpush1.msra.mxu0 0.0
    %1643 = vmatprep.subr.mxu0 0.0
    %1644 = vmatpush1.msra.mxu0 0.0
    %1645 = vmatprep.subr.mxu0 0.0
    %1646 = vmatpush1.msra.mxu0 0.0
    %1647 = vmatprep.subr.mxu0 0.0
    %1648 = vmatpush1.msra.mxu0 0.0
    %1649 = vmatprep.subr.mxu0 0.0
    %1650 = vmatpush1.msra.mxu0 0.0
    %1651 = vmatprep.subr.mxu0 0.0
    %1652 = vmatpush1.msra.mxu0 0.0
    %1653 = vmatprep.subr.mxu0 0.0
    %1654 = vmatpush1.msra.mxu0 0.0
    %1655 = vmatprep.subr.mxu0 0.0
    %1656 = vmatpush1.msra.mxu0 0.0
    %1657 = vmatprep.subr.mxu0 0.0
    %1658 = vmatpush1.msra.mxu0 0.0
    %1659 = vmatprep.subr.mxu0 0.0
    %1660 = vmatpush1.msra.mxu0 0.0
    %1661 = vmatprep.subr.mxu0 0.0
    %1662 = vmatpush1.msra.mxu0 0.0
    %1663 = vmatprep.subr.mxu0 0.0
    %1664 = vmatpush1.msra.mxu0 0.0
    %1665 = vmatprep.subr.mxu0 0.0
    %1666 = vmatpush1.msra.mxu0 0.0
    %1667 = vmatprep.subr.mxu0 0.0
    %1668 = vmatpush1.msra.mxu0 0.0
    %1669 = vmatprep.subr.mxu0 0.0
    %1670 = vmatpush1.msra.mxu0 0.0
    %1671 = vmatprep.subr.mxu0 0.0
    %1672 = vmatpush1.msra.mxu0 0.0
    %1673 = vmatprep.subr.mxu0 0.0
    %1674 = vmatpush1.msra.mxu0 0.0
    %1675 = vmatprep.subr.mxu0 0.0
    %1676 = vmatpush1.msra.mxu0 0.0
    %1677 = vmatprep.subr.mxu0 0.0
    %1678 = vmatpush1.msra.mxu0 0.0
    %1679 = vmatprep.subr.mxu0 0.0
    %1680 = vmatpush1.msra.mxu0 0.0
    %1681 = vmatprep.subr.mxu0 0.0
    %1682 = vmatpush1.msra.mxu0 0.0
    %1683 = vmatprep.subr.mxu0 0.0
    %1684 = vmatpush1.msra.mxu0 0.0
    %1685 = vmatprep.subr.mxu0 0.0
    %1686 = vmatpush1.msra.mxu0 0.0
    %1687 = vmatprep.subr.mxu0 0.0
    %1688 = vmatpush1.msra.mxu0 0.0
    %1689 = vmatprep.mubr.f32.mxu0 0.0
    %1690 = vmatmul.mubr.f32.gmra.mrb[0].mxu0 %v1623
    %v1691 = vpop.f32.mrb[0].mxu0
    %v1692 = vadd.f32 %v1620, %v1691
    %v1693 = vpop.f32.mrb[0].mxu0
    %1694 = vdwg.mxu0
    %vm1695 = vcmp.ge.f32.partialorder %v1692, 0.0
    %v1696 = vmul.f32 %v1692, 0.01
    %v1697 = vsel %vm1695, %v1692, %v1696
    %s1698 = scalar_lea.vmem [#allocation5], 384
    %v1699 = vld [vmem:[%s1698] sm:$0xff]
    %v1700 = vld [vmem:[%s1698 + $0x8] sm:$0xff]
    %v1701 = vld [vmem:[%s1698 + $0x10] sm:$0xff]
    %v1702 = vld [vmem:[%s1698 + $0x18] sm:$0xff]
    %v1703 = vld [vmem:[%s1698 + $0x20] sm:$0xff]
    %v1704 = vld [vmem:[%s1698 + $0x28] sm:$0xff]
    %v1705 = vld [vmem:[%s1698 + $0x30] sm:$0xff]
    %v1706 = vld [vmem:[%s1698 + $0x38] sm:$0xff]
    %s1707 = scalar_lea.vmem %s7, 6
    %v1708 = vld [vmem:[%s1707] sm:$0x1]
    %v1710 = vlaneseq
    %v1711 = vshrl.u32 %v1710, 7
    %v1712 = vsub.s32 0, %v1711
    %v1713 = vrot.slane %v1708, %v1712
    %v1716 = vsel %vm238, %v1697, 0
    %1718 = vmatprep.subr.mxu0 0.0
    %1719 = vmatpush1.msra.mxu0 %v1699
    %1720 = vmatprep.subr.mxu0 0.0
    %1721 = vmatpush1.msra.mxu0 %v1700
    %1722 = vmatprep.subr.mxu0 0.0
    %1723 = vmatpush1.msra.mxu0 %v1701
    %1724 = vmatprep.subr.mxu0 0.0
    %1725 = vmatpush1.msra.mxu0 %v1702
    %1726 = vmatprep.subr.mxu0 0.0
    %1727 = vmatpush1.msra.mxu0 %v1703
    %1728 = vmatprep.subr.mxu0 0.0
    %1729 = vmatpush1.msra.mxu0 %v1704
    %1730 = vmatprep.subr.mxu0 0.0
    %1731 = vmatpush1.msra.mxu0 %v1705
    %1732 = vmatprep.subr.mxu0 0.0
    %1733 = vmatpush1.msra.mxu0 %v1706
    %1734 = vmatprep.subr.mxu0 0.0
    %1735 = vmatpush1.msra.mxu0 0.0
    %1736 = vmatprep.subr.mxu0 0.0
    %1737 = vmatpush1.msra.mxu0 0.0
    %1738 = vmatprep.subr.mxu0 0.0
    %1739 = vmatpush1.msra.mxu0 0.0
    %1740 = vmatprep.subr.mxu0 0.0
    %1741 = vmatpush1.msra.mxu0 0.0
    %1742 = vmatprep.subr.mxu0 0.0
    %1743 = vmatpush1.msra.mxu0 0.0
    %1744 = vmatprep.subr.mxu0 0.0
    %1745 = vmatpush1.msra.mxu0 0.0
    %1746 = vmatprep.subr.mxu0 0.0
    %1747 = vmatpush1.msra.mxu0 0.0
    %1748 = vmatprep.subr.mxu0 0.0
    %1749 = vmatpush1.msra.mxu0 0.0
    %1750 = vmatprep.subr.mxu0 0.0
    %1751 = vmatpush1.msra.mxu0 0.0
    %1752 = vmatprep.subr.mxu0 0.0
    %1753 = vmatpush1.msra.mxu0 0.0
    %1754 = vmatprep.subr.mxu0 0.0
    %1755 = vmatpush1.msra.mxu0 0.0
    %1756 = vmatprep.subr.mxu0 0.0
    %1757 = vmatpush1.msra.mxu0 0.0
    %1758 = vmatprep.subr.mxu0 0.0
    %1759 = vmatpush1.msra.mxu0 0.0
    %1760 = vmatprep.subr.mxu0 0.0
    %1761 = vmatpush1.msra.mxu0 0.0
    %1762 = vmatprep.subr.mxu0 0.0
    %1763 = vmatpush1.msra.mxu0 0.0
    %1764 = vmatprep.subr.mxu0 0.0
    %1765 = vmatpush1.msra.mxu0 0.0
    %1766 = vmatprep.subr.mxu0 0.0
    %1767 = vmatpush1.msra.mxu0 0.0
    %1768 = vmatprep.subr.mxu0 0.0
    %1769 = vmatpush1.msra.mxu0 0.0
    %1770 = vmatprep.subr.mxu0 0.0
    %1771 = vmatpush1.msra.mxu0 0.0
    %1772 = vmatprep.subr.mxu0 0.0
    %1773 = vmatpush1.msra.mxu0 0.0
    %1774 = vmatprep.subr.mxu0 0.0
    %1775 = vmatpush1.msra.mxu0 0.0
    %1776 = vmatprep.subr.mxu0 0.0
    %1777 = vmatpush1.msra.mxu0 0.0
    %1778 = vmatprep.subr.mxu0 0.0
    %1779 = vmatpush1.msra.mxu0 0.0
    %1780 = vmatprep.subr.mxu0 0.0
    %1781 = vmatpush1.msra.mxu0 0.0
    %1782 = vmatprep.mubr.f32.mxu0 0.0
    %1783 = vmatmul.mubr.f32.gmra.mrb[0].mxu0 %v1716
    %v1784 = vpop.f32.mrb[0].mxu0
    %v1785 = vadd.f32 %v1713, %v1784
    %v1786 = vpop.f32.mrb[0].mxu0
    %1787 = vdwg.mxu0
    %vm1788 = vcmp.ge.f32.partialorder %v1785, 0.0
    %v1789 = vmul.f32 %v1785, 0.01
    %v1790 = vsel %vm1788, %v1785, %v1789
    %s1791 = scalar_lea.vmem [#allocation5], 448
    %v1792 = vld [vmem:[%s1791] sm:$0xff]
    %v1793 = vld [vmem:[%s1791 + $0x8] sm:$0xff]
    %v1794 = vld [vmem:[%s1791 + $0x10] sm:$0xff]
    %v1795 = vld [vmem:[%s1791 + $0x18] sm:$0xff]
    %v1796 = vld [vmem:[%s1791 + $0x20] sm:$0xff]
    %v1797 = vld [vmem:[%s1791 + $0x28] sm:$0xff]
    %v1798 = vld [vmem:[%s1791 + $0x30] sm:$0xff]
    %v1799 = vld [vmem:[%s1791 + $0x38] sm:$0xff]
    %s1800 = scalar_lea.vmem %s7, 7
    %v1801 = vld [vmem:[%s1800] sm:$0x1]
    %v1803 = vlaneseq
    %v1804 = vshrl.u32 %v1803, 7
    %v1805 = vsub.s32 0, %v1804
    %v1806 = vrot.slane %v1801, %v1805
    %v1809 = vsel %vm238, %v1790, 0
    %1811 = vmatprep.subr.mxu0 0.0
    %1812 = vmatpush1.msra.mxu0 %v1792
    %1813 = vmatprep.subr.mxu0 0.0
    %1814 = vmatpush1.msra.mxu0 %v1793
    %1815 = vmatprep.subr.mxu0 0.0
    %1816 = vmatpush1.msra.mxu0 %v1794
    %1817 = vmatprep.subr.mxu0 0.0
    %1818 = vmatpush1.msra.mxu0 %v1795
    %1819 = vmatprep.subr.mxu0 0.0
    %1820 = vmatpush1.msra.mxu0 %v1796
    %1821 = vmatprep.subr.mxu0 0.0
    %1822 = vmatpush1.msra.mxu0 %v1797
    %1823 = vmatprep.subr.mxu0 0.0
    %1824 = vmatpush1.msra.mxu0 %v1798
    %1825 = vmatprep.subr.mxu0 0.0
    %1826 = vmatpush1.msra.mxu0 %v1799
    %1827 = vmatprep.subr.mxu0 0.0
    %1828 = vmatpush1.msra.mxu0 0.0
    %1829 = vmatprep.subr.mxu0 0.0
    %1830 = vmatpush1.msra.mxu0 0.0
    %1831 = vmatprep.subr.mxu0 0.0
    %1832 = vmatpush1.msra.mxu0 0.0
    %1833 = vmatprep.subr.mxu0 0.0
    %1834 = vmatpush1.msra.mxu0 0.0
    %1835 = vmatprep.subr.mxu0 0.0
    %1836 = vmatpush1.msra.mxu0 0.0
    %1837 = vmatprep.subr.mxu0 0.0
    %1838 = vmatpush1.msra.mxu0 0.0
    %1839 = vmatprep.subr.mxu0 0.0
    %1840 = vmatpush1.msra.mxu0 0.0
    %1841 = vmatprep.subr.mxu0 0.0
    %1842 = vmatpush1.msra.mxu0 0.0
    %1843 = vmatprep.subr.mxu0 0.0
    %1844 = vmatpush1.msra.mxu0 0.0
    %1845 = vmatprep.subr.mxu0 0.0
    %1846 = vmatpush1.msra.mxu0 0.0
    %1847 = vmatprep.subr.mxu0 0.0
    %1848 = vmatpush1.msra.mxu0 0.0
    %1849 = vmatprep.subr.mxu0 0.0
    %1850 = vmatpush1.msra.mxu0 0.0
    %1851 = vmatprep.subr.mxu0 0.0
    %1852 = vmatpush1.msra.mxu0 0.0
    %1853 = vmatprep.subr.mxu0 0.0
    %1854 = vmatpush1.msra.mxu0 0.0
    %1855 = vmatprep.subr.mxu0 0.0
    %1856 = vmatpush1.msra.mxu0 0.0
    %1857 = vmatprep.subr.mxu0 0.0
    %1858 = vmatpush1.msra.mxu0 0.0
    %1859 = vmatprep.subr.mxu0 0.0
    %1860 = vmatpush1.msra.mxu0 0.0
    %1861 = vmatprep.subr.mxu0 0.0
    %1862 = vmatpush1.msra.mxu0 0.0
    %1863 = vmatprep.subr.mxu0 0.0
    %1864 = vmatpush1.msra.mxu0 0.0
    %1865 = vmatprep.subr.mxu0 0.0
    %1866 = vmatpush1.msra.mxu0 0.0
    %1867 = vmatprep.subr.mxu0 0.0
    %1868 = vmatpush1.msra.mxu0 0.0
    %1869 = vmatprep.subr.mxu0 0.0
    %1870 = vmatpush1.msra.mxu0 0.0
    %1871 = vmatprep.subr.mxu0 0.0
    %1872 = vmatpush1.msra.mxu0 0.0
    %1873 = vmatprep.subr.mxu0 0.0
    %1874 = vmatpush1.msra.mxu0 0.0
    %1875 = vmatprep.mubr.f32.mxu0 0.0
    %1876 = vmatmul.mubr.f32.gmra.mrb[0].mxu0 %v1809
    %v1877 = vpop.f32.mrb[0].mxu0
    %v1878 = vadd.f32 %v1806, %v1877
    %v1879 = vpop.f32.mrb[0].mxu0
    %1880 = vdwg.mxu0
    %vm1881 = vcmp.ge.f32.partialorder %v1878, 0.0
    %v1882 = vmul.f32 %v1878, 0.01
    %v1883 = vsel %vm1881, %v1878, %v1882
    %s1884 = scalar_lea.vmem [#allocation7], 384
    %v1885 = vld [vmem:[%s1884] sm:$0xff]
    %v1886 = vld [vmem:[%s1884 + $0x8] sm:$0xff]
    %v1887 = vld [vmem:[%s1884 + $0x10] sm:$0xff]
    %v1888 = vld [vmem:[%s1884 + $0x18] sm:$0xff]
    %v1889 = vld [vmem:[%s1884 + $0x20] sm:$0xff]
    %v1890 = vld [vmem:[%s1884 + $0x28] sm:$0xff]
    %v1891 = vld [vmem:[%s1884 + $0x30] sm:$0xff]
    %v1892 = vld [vmem:[%s1884 + $0x38] sm:$0xff]
    %v1893 = vld [vmem:[%s1884 + $0x40] sm:$0xff]
    %v1894 = vld [vmem:[%s1884 + $0x48] sm:$0xff]
    %v1895 = vld [vmem:[%s1884 + $0x50] sm:$0xff]
    %v1896 = vld [vmem:[%s1884 + $0x58] sm:$0xff]
    %v1897 = vld [vmem:[%s1884 + $0x60] sm:$0xff]
    %v1898 = vld [vmem:[%s1884 + $0x68] sm:$0xff]
    %v1899 = vld [vmem:[%s1884 + $0x70] sm:$0xff]
    %v1900 = vld [vmem:[%s1884 + $0x78] sm:$0xff]
    %s1901 = scalar_lea.vmem %s9, 6
    %v1902 = vld [vmem:[%s1901] sm:$0x3]
    %v1904 = vlaneseq
    %v1905 = vshrl.u32 %v1904, 7
    %v1906 = vsub.s32 0, %v1905
    %v1907 = vrot.slane %v1902, %v1906
    %v1908 = vlaneseq
    %v1909 = vshrl.u32 %v1908, 7
    %v1910 = vsub.s32 1, %v1909
    %v1911 = vrot.slane %v1902, %v1910
    %v1915 = vsel %vm238, %v1883, 0
    %1917 = vmatprep.subr.mxu0 %v1886
    %1918 = vmatpush1.msra.mxu0 %v1885
    %1919 = vmatprep.subr.mxu0 %v1888
    %1920 = vmatpush1.msra.mxu0 %v1887
    %1921 = vmatprep.subr.mxu0 %v1890
    %1922 = vmatpush1.msra.mxu0 %v1889
    %1923 = vmatprep.subr.mxu0 %v1892
    %1924 = vmatpush1.msra.mxu0 %v1891
    %1925 = vmatprep.subr.mxu0 %v1894
    %1926 = vmatpush1.msra.mxu0 %v1893
    %1927 = vmatprep.subr.mxu0 %v1896
    %1928 = vmatpush1.msra.mxu0 %v1895
    %1929 = vmatprep.subr.mxu0 %v1898
    %1930 = vmatpush1.msra.mxu0 %v1897
    %1931 = vmatprep.subr.mxu0 %v1900
    %1932 = vmatpush1.msra.mxu0 %v1899
    %1933 = vmatprep.subr.mxu0 0.0
    %1934 = vmatpush1.msra.mxu0 0.0
    %1935 = vmatprep.subr.mxu0 0.0
    %1936 = vmatpush1.msra.mxu0 0.0
    %1937 = vmatprep.subr.mxu0 0.0
    %1938 = vmatpush1.msra.mxu0 0.0
    %1939 = vmatprep.subr.mxu0 0.0
    %1940 = vmatpush1.msra.mxu0 0.0
    %1941 = vmatprep.subr.mxu0 0.0
    %1942 = vmatpush1.msra.mxu0 0.0
    %1943 = vmatprep.subr.mxu0 0.0
    %1944 = vmatpush1.msra.mxu0 0.0
    %1945 = vmatprep.subr.mxu0 0.0
    %1946 = vmatpush1.msra.mxu0 0.0
    %1947 = vmatprep.subr.mxu0 0.0
    %1948 = vmatpush1.msra.mxu0 0.0
    %1949 = vmatprep.subr.mxu0 0.0
    %1950 = vmatpush1.msra.mxu0 0.0
    %1951 = vmatprep.subr.mxu0 0.0
    %1952 = vmatpush1.msra.mxu0 0.0
    %1953 = vmatprep.subr.mxu0 0.0
    %1954 = vmatpush1.msra.mxu0 0.0
    %1955 = vmatprep.subr.mxu0 0.0
    %1956 = vmatpush1.msra.mxu0 0.0
    %1957 = vmatprep.subr.mxu0 0.0
    %1958 = vmatpush1.msra.mxu0 0.0
    %1959 = vmatprep.subr.mxu0 0.0
    %1960 = vmatpush1.msra.mxu0 0.0
    %1961 = vmatprep.subr.mxu0 0.0
    %1962 = vmatpush1.msra.mxu0 0.0
    %1963 = vmatprep.subr.mxu0 0.0
    %1964 = vmatpush1.msra.mxu0 0.0
    %1965 = vmatprep.subr.mxu0 0.0
    %1966 = vmatpush1.msra.mxu0 0.0
    %1967 = vmatprep.subr.mxu0 0.0
    %1968 = vmatpush1.msra.mxu0 0.0
    %1969 = vmatprep.subr.mxu0 0.0
    %1970 = vmatpush1.msra.mxu0 0.0
    %1971 = vmatprep.subr.mxu0 0.0
    %1972 = vmatpush1.msra.mxu0 0.0
    %1973 = vmatprep.subr.mxu0 0.0
    %1974 = vmatpush1.msra.mxu0 0.0
    %1975 = vmatprep.subr.mxu0 0.0
    %1976 = vmatpush1.msra.mxu0 0.0
    %1977 = vmatprep.subr.mxu0 0.0
    %1978 = vmatpush1.msra.mxu0 0.0
    %1979 = vmatprep.subr.mxu0 0.0
    %1980 = vmatpush1.msra.mxu0 0.0
    %1981 = vmatprep.mubr.f32.mxu0 0.0
    %1982 = vmatmul.mubr.f32.gmra.mrb[0].mxu0 %v1915
    %v1983 = vpop.f32.mrb[0].mxu0
    %v1984 = vadd.f32 %v1907, %v1983
    %v1985 = vpop.f32.mrb[0].mxu0
    %v1986 = vadd.f32 %v1911, %v1985
    %1987 = vdwg.mxu0
    %v1988 = vtanh.pop %v1984
    %v1989 = vmul.f32 %v1988, 1.442695
    %v1990 = vpow.pop %v1989
    %v1991 = vmul.f32 %v1226, %v1990
    %v1992 = vadd.f32 %v1991, %v1986
    %v1993 = vadd.f32 %v1611, %v1988
    %s1994 = scalar_lea.vmem [#allocation8], 32
    %v1995 = vld [vmem:[%s1994] sm:$0xff]
    %s1996 = scalar_lea.vmem [#allocation8], 40
    %v1997 = vld [vmem:[%s1996] sm:$0xff]
    %s1998 = scalar_lea.vmem [#allocation8], 48
    %v1999 = vld [vmem:[%s1998] sm:$0xff]
    %s2000 = scalar_lea.vmem [#allocation8], 56
    %v2001 = vld [vmem:[%s2000] sm:$0xff]
    %v2003 = vsel %vm146, %v1992, 0
    %2005 = vmatprep.subr.mxu0 0.0
    %2006 = vmatpush1.msra.mxu0 %v1999
    %2007 = vmatprep.subr.mxu0 0.0
    %2008 = vmatpush1.msra.mxu0 0.0
    %2009 = vmatprep.subr.mxu0 0.0
    %2010 = vmatpush1.msra.mxu0 0.0
    %2011 = vmatprep.subr.mxu0 0.0
    %2012 = vmatpush1.msra.mxu0 0.0
    %2013 = vmatprep.subr.mxu0 0.0
    %2014 = vmatpush1.msra.mxu0 0.0
    %2015 = vmatprep.subr.mxu0 0.0
    %2016 = vmatpush1.msra.mxu0 0.0
    %2017 = vmatprep.subr.mxu0 0.0
    %2018 = vmatpush1.msra.mxu0 0.0
    %2019 = vmatprep.subr.mxu0 0.0
    %2020 = vmatpush1.msra.mxu0 0.0
    %2021 = vmatprep.subr.mxu0 0.0
    %2022 = vmatpush1.msra.mxu0 0.0
    %2023 = vmatprep.subr.mxu0 0.0
    %2024 = vmatpush1.msra.mxu0 0.0
    %2025 = vmatprep.subr.mxu0 0.0
    %2026 = vmatpush1.msra.mxu0 0.0
    %2027 = vmatprep.subr.mxu0 0.0
    %2028 = vmatpush1.msra.mxu0 0.0
    %2029 = vmatprep.subr.mxu0 0.0
    %2030 = vmatpush1.msra.mxu0 0.0
    %2031 = vmatprep.subr.mxu0 0.0
    %2032 = vmatpush1.msra.mxu0 0.0
    %2033 = vmatprep.subr.mxu0 0.0
    %2034 = vmatpush1.msra.mxu0 0.0
    %2035 = vmatprep.subr.mxu0 0.0
    %2036 = vmatpush1.msra.mxu0 0.0
    %2037 = vmatprep.subr.mxu0 0.0
    %2038 = vmatpush1.msra.mxu0 0.0
    %2039 = vmatprep.subr.mxu0 0.0
    %2040 = vmatpush1.msra.mxu0 0.0
    %2041 = vmatprep.subr.mxu0 0.0
    %2042 = vmatpush1.msra.mxu0 0.0
    %2043 = vmatprep.subr.mxu0 0.0
    %2044 = vmatpush1.msra.mxu0 0.0
    %2045 = vmatprep.subr.mxu0 0.0
    %2046 = vmatpush1.msra.mxu0 0.0
    %2047 = vmatprep.subr.mxu0 0.0
    %2048 = vmatpush1.msra.mxu0 0.0
    %2049 = vmatprep.subr.mxu0 0.0
    %2050 = vmatpush1.msra.mxu0 0.0
    %2051 = vmatprep.subr.mxu0 0.0
    %2052 = vmatpush1.msra.mxu0 0.0
    %2053 = vmatprep.subr.mxu0 0.0
    %2054 = vmatpush1.msra.mxu0 0.0
    %2055 = vmatprep.subr.mxu0 0.0
    %2056 = vmatpush1.msra.mxu0 0.0
    %2057 = vmatprep.subr.mxu0 0.0
    %2058 = vmatpush1.msra.mxu0 0.0
    %2059 = vmatprep.subr.mxu0 0.0
    %2060 = vmatpush1.msra.mxu0 0.0
    %2061 = vmatprep.subr.mxu0 0.0
    %2062 = vmatpush1.msra.mxu0 0.0
    %2063 = vmatprep.subr.mxu0 0.0
    %2064 = vmatpush1.msra.mxu0 0.0
    %2065 = vmatprep.subr.mxu0 0.0
    %2066 = vmatpush1.msra.mxu0 0.0
    %2067 = vmatprep.subr.mxu0 0.0
    %2068 = vmatpush1.msra.mxu0 0.0
    %2069 = vmatprep.mubr.f32.mxu0 0.0
    %2070 = vmatmul.mubr.f32.gmra.mrb[0].mxu0 %v2003
    %v2071 = vpop.f32.mrb[0].mxu0
    %v2072 = vadd.f32 0.0, %v2071
    %v2073 = vpop.f32.mrb[0].mxu0
    %2074 = vdwg.mxu0
    %2075 = vmatprep.subr.mxu0 0.0
    %2076 = vmatpush1.msra.mxu0 %v1995
    %2077 = vmatprep.subr.mxu0 0.0
    %2078 = vmatpush1.msra.mxu0 0.0
    %2079 = vmatprep.subr.mxu0 0.0
    %2080 = vmatpush1.msra.mxu0 0.0
    %2081 = vmatprep.subr.mxu0 0.0
    %2082 = vmatpush1.msra.mxu0 0.0
    %2083 = vmatprep.subr.mxu0 0.0
    %2084 = vmatpush1.msra.mxu0 0.0
    %2085 = vmatprep.subr.mxu0 0.0
    %2086 = vmatpush1.msra.mxu0 0.0
    %2087 = vmatprep.subr.mxu0 0.0
    %2088 = vmatpush1.msra.mxu0 0.0
    %2089 = vmatprep.subr.mxu0 0.0
    %2090 = vmatpush1.msra.mxu0 0.0
    %2091 = vmatprep.subr.mxu0 0.0
    %2092 = vmatpush1.msra.mxu0 0.0
    %2093 = vmatprep.subr.mxu0 0.0
    %2094 = vmatpush1.msra.mxu0 0.0
    %2095 = vmatprep.subr.mxu0 0.0
    %2096 = vmatpush1.msra.mxu0 0.0
    %2097 = vmatprep.subr.mxu0 0.0
    %2098 = vmatpush1.msra.mxu0 0.0
    %2099 = vmatprep.subr.mxu0 0.0
    %2100 = vmatpush1.msra.mxu0 0.0
    %2101 = vmatprep.subr.mxu0 0.0
    %2102 = vmatpush1.msra.mxu0 0.0
    %2103 = vmatprep.subr.mxu0 0.0
    %2104 = vmatpush1.msra.mxu0 0.0
    %2105 = vmatprep.subr.mxu0 0.0
    %2106 = vmatpush1.msra.mxu0 0.0
    %2107 = vmatprep.subr.mxu0 0.0
    %2108 = vmatpush1.msra.mxu0 0.0
    %2109 = vmatprep.subr.mxu0 0.0
    %2110 = vmatpush1.msra.mxu0 0.0
    %2111 = vmatprep.subr.mxu0 0.0
    %2112 = vmatpush1.msra.mxu0 0.0
    %2113 = vmatprep.subr.mxu0 0.0
    %2114 = vmatpush1.msra.mxu0 0.0
    %2115 = vmatprep.subr.mxu0 0.0
    %2116 = vmatpush1.msra.mxu0 0.0
    %2117 = vmatprep.subr.mxu0 0.0
    %2118 = vmatpush1.msra.mxu0 0.0
    %2119 = vmatprep.subr.mxu0 0.0
    %2120 = vmatpush1.msra.mxu0 0.0
    %2121 = vmatprep.subr.mxu0 0.0
    %2122 = vmatpush1.msra.mxu0 0.0
    %2123 = vmatprep.subr.mxu0 0.0
    %2124 = vmatpush1.msra.mxu0 0.0
    %2125 = vmatprep.subr.mxu0 0.0
    %2126 = vmatpush1.msra.mxu0 0.0
    %2127 = vmatprep.subr.mxu0 0.0
    %2128 = vmatpush1.msra.mxu0 0.0
    %2129 = vmatprep.subr.mxu0 0.0
    %2130 = vmatpush1.msra.mxu0 0.0
    %2131 = vmatprep.subr.mxu0 0.0
    %2132 = vmatpush1.msra.mxu0 0.0
    %2133 = vmatprep.subr.mxu0 0.0
    %2134 = vmatpush1.msra.mxu0 0.0
    %2135 = vmatprep.subr.mxu0 0.0
    %2136 = vmatpush1.msra.mxu0 0.0
    %2137 = vmatprep.subr.mxu0 0.0
    %2138 = vmatpush1.msra.mxu0 0.0
    %2139 = vmatprep.mubr.f32.mxu0 0.0
    %2140 = vmatmul.mubr.f32.gmra.mrb[0].mxu0 %v1623
    %v2141 = vpop.f32.mrb[0].mxu0
    %v2142 = vadd.f32 %v2072, %v2141
    %v2143 = vpop.f32.mrb[0].mxu0
    %2144 = vdwg.mxu0
    %2145 = vmatprep.subr.mxu0 0.0
    %2146 = vmatpush1.msra.mxu0 %v2001
    %2147 = vmatprep.subr.mxu0 0.0
    %2148 = vmatpush1.msra.mxu0 0.0
    %2149 = vmatprep.subr.mxu0 0.0
    %2150 = vmatpush1.msra.mxu0 0.0
    %2151 = vmatprep.subr.mxu0 0.0
    %2152 = vmatpush1.msra.mxu0 0.0
    %2153 = vmatprep.subr.mxu0 0.0
    %2154 = vmatpush1.msra.mxu0 0.0
    %2155 = vmatprep.subr.mxu0 0.0
    %2156 = vmatpush1.msra.mxu0 0.0
    %2157 = vmatprep.subr.mxu0 0.0
    %2158 = vmatpush1.msra.mxu0 0.0
    %2159 = vmatprep.subr.mxu0 0.0
    %2160 = vmatpush1.msra.mxu0 0.0
    %2161 = vmatprep.subr.mxu0 0.0
    %2162 = vmatpush1.msra.mxu0 0.0
    %2163 = vmatprep.subr.mxu0 0.0
    %2164 = vmatpush1.msra.mxu0 0.0
    %2165 = vmatprep.subr.mxu0 0.0
    %2166 = vmatpush1.msra.mxu0 0.0
    %2167 = vmatprep.subr.mxu0 0.0
    %2168 = vmatpush1.msra.mxu0 0.0
    %2169 = vmatprep.subr.mxu0 0.0
    %2170 = vmatpush1.msra.mxu0 0.0
    %2171 = vmatprep.subr.mxu0 0.0
    %2172 = vmatpush1.msra.mxu0 0.0
    %2173 = vmatprep.subr.mxu0 0.0
    %2174 = vmatpush1.msra.mxu0 0.0
    %2175 = vmatprep.subr.mxu0 0.0
    %2176 = vmatpush1.msra.mxu0 0.0
    %2177 = vmatprep.subr.mxu0 0.0
    %2178 = vmatpush1.msra.mxu0 0.0
    %2179 = vmatprep.subr.mxu0 0.0
    %2180 = vmatpush1.msra.mxu0 0.0
    %2181 = vmatprep.subr.mxu0 0.0
    %2182 = vmatpush1.msra.mxu0 0.0
    %2183 = vmatprep.subr.mxu0 0.0
    %2184 = vmatpush1.msra.mxu0 0.0
    %2185 = vmatprep.subr.mxu0 0.0
    %2186 = vmatpush1.msra.mxu0 0.0
    %2187 = vmatprep.subr.mxu0 0.0
    %2188 = vmatpush1.msra.mxu0 0.0
    %2189 = vmatprep.subr.mxu0 0.0
    %2190 = vmatpush1.msra.mxu0 0.0
    %2191 = vmatprep.subr.mxu0 0.0
    %2192 = vmatpush1.msra.mxu0 0.0
    %2193 = vmatprep.subr.mxu0 0.0
    %2194 = vmatpush1.msra.mxu0 0.0
    %2195 = vmatprep.subr.mxu0 0.0
    %2196 = vmatpush1.msra.mxu0 0.0
    %2197 = vmatprep.subr.mxu0 0.0
    %2198 = vmatpush1.msra.mxu0 0.0
    %2199 = vmatprep.subr.mxu0 0.0
    %2200 = vmatpush1.msra.mxu0 0.0
    %2201 = vmatprep.subr.mxu0 0.0
    %2202 = vmatpush1.msra.mxu0 0.0
    %2203 = vmatprep.subr.mxu0 0.0
    %2204 = vmatpush1.msra.mxu0 0.0
    %2205 = vmatprep.subr.mxu0 0.0
    %2206 = vmatpush1.msra.mxu0 0.0
    %2207 = vmatprep.subr.mxu0 0.0
    %2208 = vmatpush1.msra.mxu0 0.0
    %2209 = vmatprep.mubr.f32.mxu0 0.0
    %2210 = vmatmul.mubr.f32.gmra.mrb[0].mxu0 %v2003
    %v2211 = vpop.f32.mrb[0].mxu0
    %v2212 = vadd.f32 0.0, %v2211
    %v2213 = vpop.f32.mrb[0].mxu0
    %2214 = vdwg.mxu0
    %2215 = vmatprep.subr.mxu0 0.0
    %2216 = vmatpush1.msra.mxu0 %v1997
    %2217 = vmatprep.subr.mxu0 0.0
    %2218 = vmatpush1.msra.mxu0 0.0
    %2219 = vmatprep.subr.mxu0 0.0
    %2220 = vmatpush1.msra.mxu0 0.0
    %2221 = vmatprep.subr.mxu0 0.0
    %2222 = vmatpush1.msra.mxu0 0.0
    %2223 = vmatprep.subr.mxu0 0.0
    %2224 = vmatpush1.msra.mxu0 0.0
    %2225 = vmatprep.subr.mxu0 0.0
    %2226 = vmatpush1.msra.mxu0 0.0
    %2227 = vmatprep.subr.mxu0 0.0
    %2228 = vmatpush1.msra.mxu0 0.0
    %2229 = vmatprep.subr.mxu0 0.0
    %2230 = vmatpush1.msra.mxu0 0.0
    %2231 = vmatprep.subr.mxu0 0.0
    %2232 = vmatpush1.msra.mxu0 0.0
    %2233 = vmatprep.subr.mxu0 0.0
    %2234 = vmatpush1.msra.mxu0 0.0
    %2235 = vmatprep.subr.mxu0 0.0
    %2236 = vmatpush1.msra.mxu0 0.0
    %2237 = vmatprep.subr.mxu0 0.0
    %2238 = vmatpush1.msra.mxu0 0.0
    %2239 = vmatprep.subr.mxu0 0.0
    %2240 = vmatpush1.msra.mxu0 0.0
    %2241 = vmatprep.subr.mxu0 0.0
    %2242 = vmatpush1.msra.mxu0 0.0
    %2243 = vmatprep.subr.mxu0 0.0
    %2244 = vmatpush1.msra.mxu0 0.0
    %2245 = vmatprep.subr.mxu0 0.0
    %2246 = vmatpush1.msra.mxu0 0.0
    %2247 = vmatprep.subr.mxu0 0.0
    %2248 = vmatpush1.msra.mxu0 0.0
    %2249 = vmatprep.subr.mxu0 0.0
    %2250 = vmatpush1.msra.mxu0 0.0
    %2251 = vmatprep.subr.mxu0 0.0
    %2252 = vmatpush1.msra.mxu0 0.0
    %2253 = vmatprep.subr.mxu0 0.0
    %2254 = vmatpush1.msra.mxu0 0.0
    %2255 = vmatprep.subr.mxu0 0.0
    %2256 = vmatpush1.msra.mxu0 0.0
    %2257 = vmatprep.subr.mxu0 0.0
    %2258 = vmatpush1.msra.mxu0 0.0
    %2259 = vmatprep.subr.mxu0 0.0
    %2260 = vmatpush1.msra.mxu0 0.0
    %2261 = vmatprep.subr.mxu0 0.0
    %2262 = vmatpush1.msra.mxu0 0.0
    %2263 = vmatprep.subr.mxu0 0.0
    %2264 = vmatpush1.msra.mxu0 0.0
    %2265 = vmatprep.subr.mxu0 0.0
    %2266 = vmatpush1.msra.mxu0 0.0
    %2267 = vmatprep.subr.mxu0 0.0
    %2268 = vmatpush1.msra.mxu0 0.0
    %2269 = vmatprep.subr.mxu0 0.0
    %2270 = vmatpush1.msra.mxu0 0.0
    %2271 = vmatprep.subr.mxu0 0.0
    %2272 = vmatpush1.msra.mxu0 0.0
    %2273 = vmatprep.subr.mxu0 0.0
    %2274 = vmatpush1.msra.mxu0 0.0
    %2275 = vmatprep.subr.mxu0 0.0
    %2276 = vmatpush1.msra.mxu0 0.0
    %2277 = vmatprep.subr.mxu0 0.0
    %2278 = vmatpush1.msra.mxu0 0.0
    %2279 = vmatprep.mubr.f32.mxu0 0.0
    %2280 = vmatmul.mubr.f32.gmra.mrb[0].mxu0 %v1623
    %v2281 = vpop.f32.mrb[0].mxu0
    %v2282 = vadd.f32 %v2212, %v2281
    %v2283 = vpop.f32.mrb[0].mxu0
    %2284 = vdwg.mxu0
    %2286 = vrot.lane.b32.xlu0 %v2282, 8
    %v2287 = vpop.permute.xlu0 %2286
    %v2289 = vsel %vm146, %v2142, %v2287
    %vm2290 = vcmask 130048
    %2291 = vst.msk [vmem:[#allocation10] sm:$0xff] %vm2290, %v2289
    %v2292 = vsel %vm146, %v1993, 0.0
    %2293 = vadd.xlane.f32.xlu0 %v2292
    %v2294 = vpop.xlane.xlu0 %2293
    %2295 = vst [vmem:[%s12] sm:$0xff] %v2294
    // Predicated region
    $region62: #{_flow_forward_impl.1} parent=1 // pred_check
      _
    $region63: #{_flow_forward_impl.1} parent=1 // pred_check_branch
      %2297 = sbr.rel (0) target = $region65
    $region64: #{_flow_forward_impl.1} parent=1 // pred_region
      %s2299 = ssub.s32 128, 128
      %2300 = vsyncadd [#allocation4], %s2299
      %s2302 = sshll.u32 [#allocation10], 4
      %s2303 = int_to_ptr.vmem [resolvable:$true] %s2302
      %2305 = dma.vmem_to_hbm [thread:$0]  %s2303, 128, %s11, [#allocation4]
    $region65: #{_flow_forward_impl.1} parent=1 // pred_fallthru
      _
    // Predicated region
    $region66: #{_flow_forward_impl.1} parent=1 // pred_check
      _
    $region67: #{_flow_forward_impl.1} parent=1 // pred_check_branch
      %2307 = sbr.rel (0) target = $region69
    $region68: #{_flow_forward_impl.1} parent=1 // pred_region
      _
    $region69: #{_flow_forward_impl.1} parent=1 // pred_fallthru
      _
    // Predicated region
    $region70: #{_flow_forward_impl.1} parent=1 // pred_check
      _
    $region71: #{_flow_forward_impl.1} parent=1 // pred_check_branch
      %2309 = sbr.rel (0) target = $region73
    $region72: #{_flow_forward_impl.1} parent=1 // pred_region
      %2310 = dma.done [#allocation4], 128
    $region73: #{_flow_forward_impl.1} parent=1 // pred_fallthru
      _
    // Predicated region
    $region74: #{_flow_forward_impl.1} parent=1 // pred_check
      _
    $region75: #{_flow_forward_impl.1} parent=1 // pred_check_branch
      %2312 = sbr.rel (0) target = $region77
    $region76: #{_flow_forward_impl.1} parent=1 // pred_region
      _
    $region77: #{_flow_forward_impl.1} parent=1 // pred_fallthru
      _
    %2313 = vsyncpa [#allocation3], 1
    %2314 = vsyncpa [#allocation6], 1
    %2315 = vsyncpa [#allocation9], 1
    %2316 = vsyncpa [#allocation4], 1

// kernel: _flow_forward_impl.1
$region0: #{_flow_forward_impl.1}
  #allocation0 [shape = 'u32[]', space=smem, size = 0x4, offset = 0x4, fixed_abs, tag = 'smem constant byte address 0x4 - core index']
  #allocation1 [shape = 'u32[144,128]{1,0:T(1,128)}', space=vmem, size = 0x12000, scoped, tag = 'internal scratch']
  %s0 = inlined_call_operand.vmem [shape: f32[8,8], index: 0, kind: input, shape index: {}]
  %s1 = inlined_call_operand.vmem [shape: f32[8,8], index: 1, kind: input, shape index: {}]
  %s2 = inlined_call_operand.vmem [shape: f32[4,1,8], index: 2, kind: input, shape index: {}]
  %s3 = inlined_call_operand.hbm [shape: f32[4,1,8], index: 3, kind: input, shape index: {}]
  %s4 = inlined_call_operand.vmem [shape: f32[4,8,64], index: 4, kind: input, shape index: {}]
  %s5 = inlined_call_operand.vmem [shape: f32[4,1,64], index: 5, kind: input, shape index: {}]
  %s6 = inlined_call_operand.hbm [shape: f32[8,64,64], index: 6, kind: input, shape index: {}]
  %s7 = inlined_call_operand.vmem [shape: f32[8,1,64], index: 7, kind: input, shape index: {}]
  %s8 = inlined_call_operand.hbm [shape: f32[4,64,136], index: 8, kind: input, shape index: {}]
  %s9 = inlined_call_operand.vmem [shape: f32[4,1,136], index: 9, kind: input, shape index: {}]
  %s10 = inlined_call_operand.hbm [shape: f32[8,8,8], index: 10, kind: input, shape index: {}]
  %s11 = inlined_call_operand.hbm [shape: f32[8,16], index: 11, kind: output, shape index: {0}]
  %s12 = inlined_call_operand.vmem [shape: f32[8,128], index: 12, kind: output, shape index: {1}]
  %13 = xla_tuple %s11, %s12
  %s14 = sld [smem:[#allocation0]]
  $region78: #{_flow_forward_impl.1} parent=0
    _
  %s16 = ssub.s32 1, %s14
  %s17 = scalar_select 0, %s16, %s14
  $region1: #{_flow_forward_impl.1} parent=0
    #allocation2 [shape = 'u8[2048]{0}', space=vmem, size = 0x800, scoped, tag = 'input window, operand 3, single buffered']
    #allocation3 [shape = 's32[1]{0}', space=sflag, size = 0x4, scoped, tag = 'scoped memory for _flow_forward_impl.1']
    #allocation4 [shape = 's32[1]{0}', space=sflag, size = 0x4, scoped, tag = 'scoped memory for _flow_forward_impl.1']
    #allocation5 [shape = 'u8[262144]{0}', space=vmem, size = 0x40000, scoped, tag = 'input window, operand 6, single buffered']
    #allocation6 [shape = 's32[1]{0}', space=sflag, size = 0x4, scoped, tag = 'scoped memory for _flow_forward_impl.1']
    #allocation7 [shape = 'u8[262144]{0}', space=vmem, size = 0x40000, scoped, tag = 'input window, operand 8, single buffered']
    #allocation8 [shape = 'u8[32768]{0}', space=vmem, size = 0x8000, scoped, tag = 'input window, operand 10, single buffered']
    #allocation9 [shape = 's32[1]{0}', space=sflag, size = 0x4, scoped, tag = 'scoped memory for _flow_forward_impl.1']
    #allocation10 [shape = 'u8[4096]{0}', space=vmem, size = 0x1000, scoped, tag = 'output window, operand 0, single buffered']
    %18 = vsyncpa [#allocation3], 0
    %19 = vsyncpa [#allocation6], 0
    %20 = vsyncpa [#allocation9], 0
    %21 = vsyncpa [#allocation4], 0
    // Predicated region
    $region2: #{_flow_forward_impl.1} parent=1 // pred_check
      _
    $region3: #{_flow_forward_impl.1} parent=1 // pred_check_branch
      %23 = sbr.rel (0) target = $region5
    $region4: #{_flow_forward_impl.1} parent=1 // pred_region
      _
    $region5: #{_flow_forward_impl.1} parent=1 // pred_fallthru
      _
    // Predicated region
    $region6: #{_flow_forward_impl.1} parent=1 // pred_check
      _
    $region7: #{_flow_forward_impl.1} parent=1 // pred_check_branch
      %25 = sbr.rel (0) target = $region9
    $region8: #{_flow_forward_impl.1} parent=1 // pred_region
      _
    $region9: #{_flow_forward_impl.1} parent=1 // pred_fallthru
      _
    // Predicated region
    $region10: #{_flow_forward_impl.1} parent=1 // pred_check
      _
    $region11: #{_flow_forward_impl.1} parent=1 // pred_check_branch
      %27 = sbr.rel (0) target = $region13
    $region12: #{_flow_forward_impl.1} parent=1 // pred_region
      _
    $region13: #{_flow_forward_impl.1} parent=1 // pred_fallthru
      _
    // Predicated region
    $region14: #{_flow_forward_impl.1} parent=1 // pred_check
      _
    $region15: #{_flow_forward_impl.1} parent=1 // pred_check_branch
      %29 = sbr.rel (0) target = $region17
    $region16: #{_flow_forward_impl.1} parent=1 // pred_region
      %s31 = ssub.s32 64, 64
      %32 = vsyncadd [#allocation3], %s31
      %s33 = sshll.u32 [#allocation2], 4
      %s34 = int_to_ptr.vmem [resolvable:$true] %s33
      %39 = dma.hbm_to_vmem [thread:$0]  %s3, 64, %s34, [#allocation3], 16, 16, 1
    $region17: #{_flow_forward_impl.1} parent=1 // pred_fallthru
      _
    // Predicated region
    $region18: #{_flow_forward_impl.1} parent=1 // pred_check
      _
    $region19: #{_flow_forward_impl.1} parent=1 // pred_check_branch
      %41 = sbr.rel (0) target = $region21
    $region20: #{_flow_forward_impl.1} parent=1 // pred_region
      _
    $region21: #{_flow_forward_impl.1} parent=1 // pred_fallthru
      _
    // Predicated region
    $region22: #{_flow_forward_impl.1} parent=1 // pred_check
      _
    $region23: #{_flow_forward_impl.1} parent=1 // pred_check_branch
      %43 = sbr.rel (0) target = $region25
    $region24: #{_flow_forward_impl.1} parent=1 // pred_region
      _
    $region25: #{_flow_forward_impl.1} parent=1 // pred_fallthru
      _
    // Predicated region
    $region26: #{_flow_forward_impl.1} parent=1 // pred_check
      _
    $region27: #{_flow_forward_impl.1} parent=1 // pred_check_branch
      %45 = sbr.rel (0) target = $region29
    $region28: #{_flow_forward_impl.1} parent=1 // pred_region
      %s47 = ssub.s32 8192, 8192
      %48 = vsyncadd [#allocation6], %s47
      %s49 = sshll.u32 [#allocation5], 4
      %s50 = int_to_ptr.vmem [resolvable:$true] %s49
      %55 = dma.hbm_to_vmem [thread:$0]  %s6, 8192, %s50, [#allocation6], 128, 128, 8
    $region29: #{_flow_forward_impl.1} parent=1 // pred_fallthru
      _
    // Predicated region
    $region30: #{_flow_forward_impl.1} parent=1 // pred_check
      _
    $region31: #{_flow_forward_impl.1} parent=1 // pred_check_branch
      %57 = sbr.rel (0) target = $region33
    $region32: #{_flow_forward_impl.1} parent=1 // pred_region
      _
    $region33: #{_flow_forward_impl.1} parent=1 // pred_fallthru
      _
    // Predicated region
    $region34: #{_flow_forward_impl.1} parent=1 // pred_check
      _
    $region35: #{_flow_forward_impl.1} parent=1 // pred_check_branch
      %59 = sbr.rel (0) target = $region37
    $region36: #{_flow_forward_impl.1} parent=1 // pred_region
      %s61 = ssub.s32 8192, 8192
      %62 = vsyncadd [#allocation6], %s61
      %s63 = sshll.u32 [#allocation7], 4
      %s64 = int_to_ptr.vmem [resolvable:$true] %s63
      %69 = dma.hbm_to_vmem [thread:$0]  %s8, 8192, %s64, [#allocation6], 256, 256, 16
    $region37: #{_flow_forward_impl.1} parent=1 // pred_fallthru
      _
    // Predicated region
    $region38: #{_flow_forward_impl.1} parent=1 // pred_check
      _
    $region39: #{_flow_forward_impl.1} parent=1 // pred_check_branch
      %71 = sbr.rel (0) target = $region41
    $region40: #{_flow_forward_impl.1} parent=1 // pred_region
      _
    $region41: #{_flow_forward_impl.1} parent=1 // pred_fallthru
      _
    // Predicated region
    $region42: #{_flow_forward_impl.1} parent=1 // pred_check
      _
    $region43: #{_flow_forward_impl.1} parent=1 // pred_check_branch
      %73 = sbr.rel (0) target = $region45
    $region44: #{_flow_forward_impl.1} parent=1 // pred_region
      %s75 = ssub.s32 1024, 1024
      %76 = vsyncadd [#allocation9], %s75
      %s77 = sshll.u32 [#allocation8], 4
      %s78 = int_to_ptr.vmem [resolvable:$true] %s77
      %83 = dma.hbm_to_vmem [thread:$0]  %s10, 1024, %s78, [#allocation9], 128, 128, 8
    $region45: #{_flow_forward_impl.1} parent=1 // pred_fallthru
      _
    // Predicated region
    $region46: #{_flow_forward_impl.1} parent=1 // pred_check
      _
    $region47: #{_flow_forward_impl.1} parent=1 // pred_check_branch
      %85 = sbr.rel (0) target = $region49
    $region48: #{_flow_forward_impl.1} parent=1 // pred_region
      %86 = dma.done [#allocation3], 64
    $region49: #{_flow_forward_impl.1} parent=1 // pred_fallthru
      _
    // Predicated region
    $region50: #{_flow_forward_impl.1} parent=1 // pred_check
      _
    $region51: #{_flow_forward_impl.1} parent=1 // pred_check_branch
      %88 = sbr.rel (0) target = $region53
    $region52: #{_flow_forward_impl.1} parent=1 // pred_region
      %89 = dma.done [#allocation6], 8192
    $region53: #{_flow_forward_impl.1} parent=1 // pred_fallthru
      _
    // Predicated region
    $region54: #{_flow_forward_impl.1} parent=1 // pred_check
      _
    $region55: #{_flow_forward_impl.1} parent=1 // pred_check_branch
      %91 = sbr.rel (0) target = $region57
    $region56: #{_flow_forward_impl.1} parent=1 // pred_region
      %92 = dma.done [#allocation6], 8192
    $region57: #{_flow_forward_impl.1} parent=1 // pred_fallthru
      _
    // Predicated region
    $region58: #{_flow_forward_impl.1} parent=1 // pred_check
      _
    $region59: #{_flow_forward_impl.1} parent=1 // pred_check_branch
      %94 = sbr.rel (0) target = $region61
    $region60: #{_flow_forward_impl.1} parent=1 // pred_region
      %95 = dma.done [#allocation9], 1024
    $region61: #{_flow_forward_impl.1} parent=1 // pred_fallthru
      _
    %v96 = vld [vmem:[%s0] sm:$0xff]
    %v97 = vld [vmem:[%s1] sm:$0xff]
    %v98 = vld [vmem:[#allocation2] sm:$0x1]
    %v99 = vld [vmem:[%s2] sm:$0x1]
    %v101 = vlaneseq
    %v102 = vshrl.u32 %v101, 7
    %v103 = vsub.s32 0, %v102
    %v104 = vrot.slane %v99, %v103
    %v106 = vadd.f32 %v96, %v104
    %v108 = vlaneseq
    %v109 = vshrl.u32 %v108, 7
    %v110 = vsub.s32 0, %v109
    %v111 = vrot.slane %v98, %v110
    %v113 = vmul.f32 %v111, %v106
    %s114 = scalar_lea.vmem [#allocation2], 1
    %v115 = vld [vmem:[%s114] sm:$0x1]
    %s116 = scalar_lea.vmem %s2, 1
    %v117 = vld [vmem:[%s116] sm:$0x1]
    %v119 = vlaneseq
    %v120 = vshrl.u32 %v119, 7
    %v121 = vsub.s32 0, %v120
    %v122 = vrot.slane %v117, %v121
    %v124 = vadd.f32 %v97, %v122
    %v126 = vlaneseq
    %v127 = vshrl.u32 %v126, 7
    %v128 = vsub.s32 0, %v127
    %v129 = vrot.slane %v115, %v128
    %v131 = vmul.f32 %v129, %v124
    %vm132 = vcmp.ge.f32.partialorder %v113, 0.0
    %v133 = vmul.f32 %v113, 0.95
    %v134 = vsel %vm132, %v113, %v133
    %vm135 = vcmp.ge.f32.partialorder %v131, 0.0
    %v136 = vmul.f32 %v131, 0.95
    %v137 = vsel %vm135, %v131, %v136
    %v138 = vld [vmem:[%s4] sm:$0xff]
    %v139 = vld [vmem:[%s5] sm:$0x1]
    %v141 = vlaneseq
    %v142 = vshrl.u32 %v141, 7
    %v143 = vsub.s32 0, %v142
    %v144 = vrot.slane %v139, %v143
    %vm146 = vcmask 64512
    %v148 = vsel %vm146, %v134, 0
    %150 = vmatprep.subr.mxu0 0.0
    %151 = vmatpush1.msra.mxu0 %v138
    %152 = vmatprep.subr.mxu0 0.0
    %153 = vmatpush1.msra.mxu0 0.0
    %154 = vmatprep.subr.mxu0 0.0
    %155 = vmatpush1.msra.mxu0 0.0
    %156 = vmatprep.subr.mxu0 0.0
    %157 = vmatpush1.msra.mxu0 0.0
    %158 = vmatprep.subr.mxu0 0.0
    %159 = vmatpush1.msra.mxu0 0.0
    %160 = vmatprep.subr.mxu0 0.0
    %161 = vmatpush1.msra.mxu0 0.0
    %162 = vmatprep.subr.mxu0 0.0
    %163 = vmatpush1.msra.mxu0 0.0
    %164 = vmatprep.subr.mxu0 0.0
    %165 = vmatpush1.msra.mxu0 0.0
    %166 = vmatprep.subr.mxu0 0.0
    %167 = vmatpush1.msra.mxu0 0.0
    %168 = vmatprep.subr.mxu0 0.0
    %169 = vmatpush1.msra.mxu0 0.0
    %170 = vmatprep.subr.mxu0 0.0
    %171 = vmatpush1.msra.mxu0 0.0
    %172 = vmatprep.subr.mxu0 0.0
    %173 = vmatpush1.msra.mxu0 0.0
    %174 = vmatprep.subr.mxu0 0.0
    %175 = vmatpush1.msra.mxu0 0.0
    %176 = vmatprep.subr.mxu0 0.0
    %177 = vmatpush1.msra.mxu0 0.0
    %178 = vmatprep.subr.mxu0 0.0
    %179 = vmatpush1.msra.mxu0 0.0
    %180 = vmatprep.subr.mxu0 0.0
    %181 = vmatpush1.msra.mxu0 0.0
    %182 = vmatprep.subr.mxu0 0.0
    %183 = vmatpush1.msra.mxu0 0.0
    %184 = vmatprep.subr.mxu0 0.0
    %185 = vmatpush1.msra.mxu0 0.0
    %186 = vmatprep.subr.mxu0 0.0
    %187 = vmatpush1.msra.mxu0 0.0
    %188 = vmatprep.subr.mxu0 0.0
    %189 = vmatpush1.msra.mxu0 0.0
    %190 = vmatprep.subr.mxu0 0.0
    %191 = vmatpush1.msra.mxu0 0.0
    %192 = vmatprep.subr.mxu0 0.0
    %193 = vmatpush1.msra.mxu0 0.0
    %194 = vmatprep.subr.mxu0 0.0
    %195 = vmatpush1.msra.mxu0 0.0
    %196 = vmatprep.subr.mxu0 0.0
    %197 = vmatpush1.msra.mxu0 0.0
    %198 = vmatprep.subr.mxu0 0.0
    %199 = vmatpush1.msra.mxu0 0.0
    %200 = vmatprep.subr.mxu0 0.0
    %201 = vmatpush1.msra.mxu0 0.0
    %202 = vmatprep.subr.mxu0 0.0
    %203 = vmatpush1.msra.mxu0 0.0
    %204 = vmatprep.subr.mxu0 0.0
    %205 = vmatpush1.msra.mxu0 0.0
    %206 = vmatprep.subr.mxu0 0.0
    %207 = vmatpush1.msra.mxu0 0.0
    %208 = vmatprep.subr.mxu0 0.0
    %209 = vmatpush1.msra.mxu0 0.0
    %210 = vmatprep.subr.mxu0 0.0
    %211 = vmatpush1.msra.mxu0 0.0
    %212 = vmatprep.subr.mxu0 0.0
    %213 = vmatpush1.msra.mxu0 0.0
    %214 = vmatprep.mubr.f32.mxu0 0.0
    %215 = vmatmul.mubr.f32.gmra.mrb[0].mxu0 %v148
    %v216 = vpop.f32.mrb[0].mxu0
    %v217 = vadd.f32 %v144, %v216
    %v218 = vpop.f32.mrb[0].mxu0
    %219 = vdwg.mxu0
    %vm220 = vcmp.ge.f32.partialorder %v217, 0.0
    %v221 = vmul.f32 %v217, 0.01
    %v222 = vsel %vm220, %v217, %v221
    %v223 = vld [vmem:[#allocation5] sm:$0xff]
    %v224 = vld [vmem:[#allocation5 + $0x8] sm:$0xff]
    %v225 = vld [vmem:[#allocation5 + $0x10] sm:$0xff]
    %v226 = vld [vmem:[#allocation5 + $0x18] sm:$0xff]
    %v227 = vld [vmem:[#allocation5 + $0x20] sm:$0xff]
    %v228 = vld [vmem:[#allocation5 + $0x28] sm:$0xff]
    %v229 = vld [vmem:[#allocation5 + $0x30] sm:$0xff]
    %v230 = vld [vmem:[#allocation5 + $0x38] sm:$0xff]
    %v231 = vld [vmem:[%s7] sm:$0x1]
    %v233 = vlaneseq
    %v234 = vshrl.u32 %v233, 7
    %v235 = vsub.s32 0, %v234
    %v236 = vrot.slane %v231, %v235
    %vm238 = vcmask 523264
    %v240 = vsel %vm238, %v222, 0
    %242 = vmatprep.subr.mxu0 0.0
    %243 = vmatpush1.msra.mxu0 %v223
    %244 = vmatprep.subr.mxu0 0.0
    %245 = vmatpush1.msra.mxu0 %v224
    %246 = vmatprep.subr.mxu0 0.0
    %247 = vmatpush1.msra.mxu0 %v225
    %248 = vmatprep.subr.mxu0 0.0
    %249 = vmatpush1.msra.mxu0 %v226
    %250 = vmatprep.subr.mxu0 0.0
    %251 = vmatpush1.msra.mxu0 %v227
    %252 = vmatprep.subr.mxu0 0.0
    %253 = vmatpush1.msra.mxu0 %v228
    %254 = vmatprep.subr.mxu0 0.0
    %255 = vmatpush1.msra.mxu0 %v229
    %256 = vmatprep.subr.mxu0 0.0
    %257 = vmatpush1.msra.mxu0 %v230
    %258 = vmatprep.subr.mxu0 0.0
    %259 = vmatpush1.msra.mxu0 0.0
    %260 = vmatprep.subr.mxu0 0.0
    %261 = vmatpush1.msra.mxu0 0.0
    %262 = vmatprep.subr.mxu0 0.0
    %263 = vmatpush1.msra.mxu0 0.0
    %264 = vmatprep.subr.mxu0 0.0
    %265 = vmatpush1.msra.mxu0 0.0
    %266 = vmatprep.subr.mxu0 0.0
    %267 = vmatpush1.msra.mxu0 0.0
    %268 = vmatprep.subr.mxu0 0.0
    %269 = vmatpush1.msra.mxu0 0.0
    %270 = vmatprep.subr.mxu0 0.0
    %271 = vmatpush1.msra.mxu0 0.0
    %272 = vmatprep.subr.mxu0 0.0
    %273 = vmatpush1.msra.mxu0 0.0
    %274 = vmatprep.subr.mxu0 0.0
    %275 = vmatpush1.msra.mxu0 0.0
    %276 = vmatprep.subr.mxu0 0.0
    %277 = vmatpush1.msra.mxu0 0.0
    %278 = vmatprep.subr.mxu0 0.0
    %279 = vmatpush1.msra.mxu0 0.0
    %280 = vmatprep.subr.mxu0 0.0
    %281 = vmatpush1.msra.mxu0 0.0
    %282 = vmatprep.subr.mxu0 0.0
    %283 = vmatpush1.msra.mxu0 0.0
    %284 = vmatprep.subr.mxu0 0.0
    %285 = vmatpush1.msra.mxu0 0.0
    %286 = vmatprep.subr.mxu0 0.0
    %287 = vmatpush1.msra.mxu0 0.0
    %288 = vmatprep.subr.mxu0 0.0
    %289 = vmatpush1.msra.mxu0 0.0
    %290 = vmatprep.subr.mxu0 0.0
    %291 = vmatpush1.msra.mxu0 0.0
    %292 = vmatprep.subr.mxu0 0.0
    %293 = vmatpush1.msra.mxu0 0.0
    %294 = vmatprep.subr.mxu0 0.0
    %295 = vmatpush1.msra.mxu0 0.0
    %296 = vmatprep.subr.mxu0 0.0
    %297 = vmatpush1.msra.mxu0 0.0
    %298 = vmatprep.subr.mxu0 0.0
    %299 = vmatpush1.msra.mxu0 0.0
    %300 = vmatprep.subr.mxu0 0.0
    %301 = vmatpush1.msra.mxu0 0.0
    %302 = vmatprep.subr.mxu0 0.0
    %303 = vmatpush1.msra.mxu0 0.0
    %304 = vmatprep.subr.mxu0 0.0
    %305 = vmatpush1.msra.mxu0 0.0
    %306 = vmatprep.mubr.f32.mxu0 0.0
    %307 = vmatmul.mubr.f32.gmra.mrb[0].mxu0 %v240
    %v308 = vpop.f32.mrb[0].mxu0
    %v309 = vadd.f32 %v236, %v308
    %v310 = vpop.f32.mrb[0].mxu0
    %311 = vdwg.mxu0
    %vm312 = vcmp.ge.f32.partialorder %v309, 0.0
    %v313 = vmul.f32 %v309, 0.01
    %v314 = vsel %vm312, %v309, %v313
    %s315 = scalar_lea.vmem [#allocation5], 64
    %v316 = vld [vmem:[%s315] sm:$0xff]
    %v317 = vld [vmem:[%s315 + $0x8] sm:$0xff]
    %v318 = vld [vmem:[%s315 + $0x10] sm:$0xff]
    %v319 = vld [vmem:[%s315 + $0x18] sm:$0xff]
    %v320 = vld [vmem:[%s315 + $0x20] sm:$0xff]
    %v321 = vld [vmem:[%s315 + $0x28] sm:$0xff]
    %v322 = vld [vmem:[%s315 + $0x30] sm:$0xff]
    %v323 = vld [vmem:[%s315 + $0x38] sm:$0xff]
    %s324 = scalar_lea.vmem %s7, 1
    %v325 = vld [vmem:[%s324] sm:$0x1]
    %v327 = vlaneseq
    %v328 = vshrl.u32 %v327, 7
    %v329 = vsub.s32 0, %v328
    %v330 = vrot.slane %v325, %v329
    %v333 = vsel %vm238, %v314, 0
    %335 = vmatprep.subr.mxu0 0.0
    %336 = vmatpush1.msra.mxu0 %v316
    %337 = vmatprep.subr.mxu0 0.0
    %338 = vmatpush1.msra.mxu0 %v317
    %339 = vmatprep.subr.mxu0 0.0
    %340 = vmatpush1.msra.mxu0 %v318
    %341 = vmatprep.subr.mxu0 0.0
    %342 = vmatpush1.msra.mxu0 %v319
    %343 = vmatprep.subr.mxu0 0.0
    %344 = vmatpush1.msra.mxu0 %v320
    %345 = vmatprep.subr.mxu0 0.0
    %346 = vmatpush1.msra.mxu0 %v321
    %347 = vmatprep.subr.mxu0 0.0
    %348 = vmatpush1.msra.mxu0 %v322
    %349 = vmatprep.subr.mxu0 0.0
    %350 = vmatpush1.msra.mxu0 %v323
    %351 = vmatprep.subr.mxu0 0.0
    %352 = vmatpush1.msra.mxu0 0.0
    %353 = vmatprep.subr.mxu0 0.0
    %354 = vmatpush1.msra.mxu0 0.0
    %355 = vmatprep.subr.mxu0 0.0
    %356 = vmatpush1.msra.mxu0 0.0
    %357 = vmatprep.subr.mxu0 0.0
    %358 = vmatpush1.msra.mxu0 0.0
    %359 = vmatprep.subr.mxu0 0.0
    %360 = vmatpush1.msra.mxu0 0.0
    %361 = vmatprep.subr.mxu0 0.0
    %362 = vmatpush1.msra.mxu0 0.0
    %363 = vmatprep.subr.mxu0 0.0
    %364 = vmatpush1.msra.mxu0 0.0
    %365 = vmatprep.subr.mxu0 0.0
    %366 = vmatpush1.msra.mxu0 0.0
    %367 = vmatprep.subr.mxu0 0.0
    %368 = vmatpush1.msra.mxu0 0.0
    %369 = vmatprep.subr.mxu0 0.0
    %370 = vmatpush1.msra.mxu0 0.0
    %371 = vmatprep.subr.mxu0 0.0
    %372 = vmatpush1.msra.mxu0 0.0
    %373 = vmatprep.subr.mxu0 0.0
    %374 = vmatpush1.msra.mxu0 0.0
    %375 = vmatprep.subr.mxu0 0.0
    %376 = vmatpush1.msra.mxu0 0.0
    %377 = vmatprep.subr.mxu0 0.0
    %378 = vmatpush1.msra.mxu0 0.0
    %379 = vmatprep.subr.mxu0 0.0
    %380 = vmatpush1.msra.mxu0 0.0
    %381 = vmatprep.subr.mxu0 0.0
    %382 = vmatpush1.msra.mxu0 0.0
    %383 = vmatprep.subr.mxu0 0.0
    %384 = vmatpush1.msra.mxu0 0.0
    %385 = vmatprep.subr.mxu0 0.0
    %386 = vmatpush1.msra.mxu0 0.0
    %387 = vmatprep.subr.mxu0 0.0
    %388 = vmatpush1.msra.mxu0 0.0
    %389 = vmatprep.subr.mxu0 0.0
    %390 = vmatpush1.msra.mxu0 0.0
    %391 = vmatprep.subr.mxu0 0.0
    %392 = vmatpush1.msra.mxu0 0.0
    %393 = vmatprep.subr.mxu0 0.0
    %394 = vmatpush1.msra.mxu0 0.0
    %395 = vmatprep.subr.mxu0 0.0
    %396 = vmatpush1.msra.mxu0 0.0
    %397 = vmatprep.subr.mxu0 0.0
    %398 = vmatpush1.msra.mxu0 0.0
    %399 = vmatprep.mubr.f32.mxu0 0.0
    %400 = vmatmul.mubr.f32.gmra.mrb[0].mxu0 %v333
    %v401 = vpop.f32.mrb[0].mxu0
    %v402 = vadd.f32 %v330, %v401
    %v403 = vpop.f32.mrb[0].mxu0
    %404 = vdwg.mxu0
    %vm405 = vcmp.ge.f32.partialorder %v402, 0.0
    %v406 = vmul.f32 %v402, 0.01
    %v407 = vsel %vm405, %v402, %v406
    %v408 = vld [vmem:[#allocation7] sm:$0xff]
    %v409 = vld [vmem:[#allocation7 + $0x8] sm:$0xff]
    %v410 = vld [vmem:[#allocation7 + $0x10] sm:$0xff]
    %v411 = vld [vmem:[#allocation7 + $0x18] sm:$0xff]
    %v412 = vld [vmem:[#allocation7 + $0x20] sm:$0xff]
    %v413 = vld [vmem:[#allocation7 + $0x28] sm:$0xff]
    %v414 = vld [vmem:[#allocation7 + $0x30] sm:$0xff]
    %v415 = vld [vmem:[#allocation7 + $0x38] sm:$0xff]
    %v416 = vld [vmem:[#allocation7 + $0x40] sm:$0xff]
    %v417 = vld [vmem:[#allocation7 + $0x48] sm:$0xff]
    %v418 = vld [vmem:[#allocation7 + $0x50] sm:$0xff]
    %v419 = vld [vmem:[#allocation7 + $0x58] sm:$0xff]
    %v420 = vld [vmem:[#allocation7 + $0x60] sm:$0xff]
    %v421 = vld [vmem:[#allocation7 + $0x68] sm:$0xff]
    %v422 = vld [vmem:[#allocation7 + $0x70] sm:$0xff]
    %v423 = vld [vmem:[#allocation7 + $0x78] sm:$0xff]
    %v424 = vld [vmem:[%s9] sm:$0x3]
    %v426 = vlaneseq
    %v427 = vshrl.u32 %v426, 7
    %v428 = vsub.s32 0, %v427
    %v429 = vrot.slane %v424, %v428
    %v430 = vlaneseq
    %v431 = vshrl.u32 %v430, 7
    %v432 = vsub.s32 1, %v431
    %v433 = vrot.slane %v424, %v432
    %v437 = vsel %vm238, %v407, 0
    %439 = vmatprep.subr.mxu0 %v409
    %440 = vmatpush1.msra.mxu0 %v408
    %441 = vmatprep.subr.mxu0 %v411
    %442 = vmatpush1.msra.mxu0 %v410
    %443 = vmatprep.subr.mxu0 %v413
    %444 = vmatpush1.msra.mxu0 %v412
    %445 = vmatprep.subr.mxu0 %v415
    %446 = vmatpush1.msra.mxu0 %v414
    %447 = vmatprep.subr.mxu0 %v417
    %448 = vmatpush1.msra.mxu0 %v416
    %449 = vmatprep.subr.mxu0 %v419
    %450 = vmatpush1.msra.mxu0 %v418
    %451 = vmatprep.subr.mxu0 %v421
    %452 = vmatpush1.msra.mxu0 %v420
    %453 = vmatprep.subr.mxu0 %v423
    %454 = vmatpush1.msra.mxu0 %v422
    %455 = vmatprep.subr.mxu0 0.0
    %456 = vmatpush1.msra.mxu0 0.0
    %457 = vmatprep.subr.mxu0 0.0
    %458 = vmatpush1.msra.mxu0 0.0
    %459 = vmatprep.subr.mxu0 0.0
    %460 = vmatpush1.msra.mxu0 0.0
    %461 = vmatprep.subr.mxu0 0.0
    %462 = vmatpush1.msra.mxu0 0.0
    %463 = vmatprep.subr.mxu0 0.0
    %464 = vmatpush1.msra.mxu0 0.0
    %465 = vmatprep.subr.mxu0 0.0
    %466 = vmatpush1.msra.mxu0 0.0
    %467 = vmatprep.subr.mxu0 0.0
    %468 = vmatpush1.msra.mxu0 0.0
    %469 = vmatprep.subr.mxu0 0.0
    %470 = vmatpush1.msra.mxu0 0.0
    %471 = vmatprep.subr.mxu0 0.0
    %472 = vmatpush1.msra.mxu0 0.0
    %473 = vmatprep.subr.mxu0 0.0
    %474 = vmatpush1.msra.mxu0 0.0
    %475 = vmatprep.subr.mxu0 0.0
    %476 = vmatpush1.msra.mxu0 0.0
    %477 = vmatprep.subr.mxu0 0.0
    %478 = vmatpush1.msra.mxu0 0.0
    %479 = vmatprep.subr.mxu0 0.0
    %480 = vmatpush1.msra.mxu0 0.0
    %481 = vmatprep.subr.mxu0 0.0
    %482 = vmatpush1.msra.mxu0 0.0
    %483 = vmatprep.subr.mxu0 0.0
    %484 = vmatpush1.msra.mxu0 0.0
    %485 = vmatprep.subr.mxu0 0.0
    %486 = vmatpush1.msra.mxu0 0.0
    %487 = vmatprep.subr.mxu0 0.0
    %488 = vmatpush1.msra.mxu0 0.0
    %489 = vmatprep.subr.mxu0 0.0
    %490 = vmatpush1.msra.mxu0 0.0
    %491 = vmatprep.subr.mxu0 0.0
    %492 = vmatpush1.msra.mxu0 0.0
    %493 = vmatprep.subr.mxu0 0.0
    %494 = vmatpush1.msra.mxu0 0.0
    %495 = vmatprep.subr.mxu0 0.0
    %496 = vmatpush1.msra.mxu0 0.0
    %497 = vmatprep.subr.mxu0 0.0
    %498 = vmatpush1.msra.mxu0 0.0
    %499 = vmatprep.subr.mxu0 0.0
    %500 = vmatpush1.msra.mxu0 0.0
    %501 = vmatprep.subr.mxu0 0.0
    %502 = vmatpush1.msra.mxu0 0.0
    %503 = vmatprep.mubr.f32.mxu0 0.0
    %504 = vmatmul.mubr.f32.gmra.mrb[0].mxu0 %v437
    %v505 = vpop.f32.mrb[0].mxu0
    %v506 = vadd.f32 %v429, %v505
    %v507 = vpop.f32.mrb[0].mxu0
    %v508 = vadd.f32 %v433, %v507
    %509 = vdwg.mxu0
    %v510 = vtanh.pop %v506
    %v511 = vmul.f32 %v510, 1.442695
    %v512 = vpow.pop %v511
    %v513 = vmul.f32 %v137, %v512
    %v514 = vadd.f32 %v513, %v508
    %v515 = vadd.f32 %v510, 0.0
    %s516 = scalar_lea.vmem %s4, 8
    %v517 = vld [vmem:[%s516] sm:$0xff]
    %s518 = scalar_lea.vmem %s5, 1
    %v519 = vld [vmem:[%s518] sm:$0x1]
    %v521 = vlaneseq
    %v522 = vshrl.u32 %v521, 7
    %v523 = vsub.s32 0, %v522
    %v524 = vrot.slane %v519, %v523
    %v527 = vsel %vm146, %v514, 0
    %529 = vmatprep.subr.mxu0 0.0
    %530 = vmatpush1.msra.mxu0 %v517
    %531 = vmatprep.subr.mxu0 0.0
    %532 = vmatpush1.msra.mxu0 0.0
    %533 = vmatprep.subr.mxu0 0.0
    %534 = vmatpush1.msra.mxu0 0.0
    %535 = vmatprep.subr.mxu0 0.0
    %536 = vmatpush1.msra.mxu0 0.0
    %537 = vmatprep.subr.mxu0 0.0
    %538 = vmatpush1.msra.mxu0 0.0
    %539 = vmatprep.subr.mxu0 0.0
    %540 = vmatpush1.msra.mxu0 0.0
    %541 = vmatprep.subr.mxu0 0.0
    %542 = vmatpush1.msra.mxu0 0.0
    %543 = vmatprep.subr.mxu0 0.0
    %544 = vmatpush1.msra.mxu0 0.0
    %545 = vmatprep.subr.mxu0 0.0
    %546 = vmatpush1.msra.mxu0 0.0
    %547 = vmatprep.subr.mxu0 0.0
    %548 = vmatpush1.msra.mxu0 0.0
    %549 = vmatprep.subr.mxu0 0.0
    %550 = vmatpush1.msra.mxu0 0.0
    %551 = vmatprep.subr.mxu0 0.0
    %552 = vmatpush1.msra.mxu0 0.0
    %553 = vmatprep.subr.mxu0 0.0
    %554 = vmatpush1.msra.mxu0 0.0
    %555 = vmatprep.subr.mxu0 0.0
    %556 = vmatpush1.msra.mxu0 0.0
    %557 = vmatprep.subr.mxu0 0.0
    %558 = vmatpush1.msra.mxu0 0.0
    %559 = vmatprep.subr.mxu0 0.0
    %560 = vmatpush1.msra.mxu0 0.0
    %561 = vmatprep.subr.mxu0 0.0
    %562 = vmatpush1.msra.mxu0 0.0
    %563 = vmatprep.subr.mxu0 0.0
    %564 = vmatpush1.msra.mxu0 0.0
    %565 = vmatprep.subr.mxu0 0.0
    %566 = vmatpush1.msra.mxu0 0.0
    %567 = vmatprep.subr.mxu0 0.0
    %568 = vmatpush1.msra.mxu0 0.0
    %569 = vmatprep.subr.mxu0 0.0
    %570 = vmatpush1.msra.mxu0 0.0
    %571 = vmatprep.subr.mxu0 0.0
    %572 = vmatpush1.msra.mxu0 0.0
    %573 = vmatprep.subr.mxu0 0.0
    %574 = vmatpush1.msra.mxu0 0.0
    %575 = vmatprep.subr.mxu0 0.0
    %576 = vmatpush1.msra.mxu0 0.0
    %577 = vmatprep.subr.mxu0 0.0
    %578 = vmatpush1.msra.mxu0 0.0
    %579 = vmatprep.subr.mxu0 0.0
    %580 = vmatpush1.msra.mxu0 0.0
    %581 = vmatprep.subr.mxu0 0.0
    %582 = vmatpush1.msra.mxu0 0.0
    %583 = vmatprep.subr.mxu0 0.0
    %584 = vmatpush1.msra.mxu0 0.0
    %585 = vmatprep.subr.mxu0 0.0
    %586 = vmatpush1.msra.mxu0 0.0
    %587 = vmatprep.subr.mxu0 0.0
    %588 = vmatpush1.msra.mxu0 0.0
    %589 = vmatprep.subr.mxu0 0.0
    %590 = vmatpush1.msra.mxu0 0.0
    %591 = vmatprep.subr.mxu0 0.0
    %592 = vmatpush1.msra.mxu0 0.0
    %593 = vmatprep.mubr.f32.mxu0 0.0
    %594 = vmatmul.mubr.f32.gmra.mrb[0].mxu0 %v527
    %v595 = vpop.f32.mrb[0].mxu0
    %v596 = vadd.f32 %v524, %v595
    %v597 = vpop.f32.mrb[0].mxu0
    %598 = vdwg.mxu0
    %vm599 = vcmp.ge.f32.partialorder %v596, 0.0
    %v600 = vmul.f32 %v596, 0.01
    %v601 = vsel %vm599, %v596, %v600
    %s602 = scalar_lea.vmem [#allocation5], 128
    %v603 = vld [vmem:[%s602] sm:$0xff]
    %v604 = vld [vmem:[%s602 + $0x8] sm:$0xff]
    %v605 = vld [vmem:[%s602 + $0x10] sm:$0xff]
    %v606 = vld [vmem:[%s602 + $0x18] sm:$0xff]
    %v607 = vld [vmem:[%s602 + $0x20] sm:$0xff]
    %v608 = vld [vmem:[%s602 + $0x28] sm:$0xff]
    %v609 = vld [vmem:[%s602 + $0x30] sm:$0xff]
    %v610 = vld [vmem:[%s602 + $0x38] sm:$0xff]
    %s611 = scalar_lea.vmem %s7, 2
    %v612 = vld [vmem:[%s611] sm:$0x1]
    %v614 = vlaneseq
    %v615 = vshrl.u32 %v614, 7
    %v616 = vsub.s32 0, %v615
    %v617 = vrot.slane %v612, %v616
    %v620 = vsel %vm238, %v601, 0
    %622 = vmatprep.subr.mxu0 0.0
    %623 = vmatpush1.msra.mxu0 %v603
    %624 = vmatprep.subr.mxu0 0.0
    %625 = vmatpush1.msra.mxu0 %v604
    %626 = vmatprep.subr.mxu0 0.0
    %627 = vmatpush1.msra.mxu0 %v605
    %628 = vmatprep.subr.mxu0 0.0
    %629 = vmatpush1.msra.mxu0 %v606
    %630 = vmatprep.subr.mxu0 0.0
    %631 = vmatpush1.msra.mxu0 %v607
    %632 = vmatprep.subr.mxu0 0.0
    %633 = vmatpush1.msra.mxu0 %v608
    %634 = vmatprep.subr.mxu0 0.0
    %635 = vmatpush1.msra.mxu0 %v609
    %636 = vmatprep.subr.mxu0 0.0
    %637 = vmatpush1.msra.mxu0 %v610
    %638 = vmatprep.subr.mxu0 0.0
    %639 = vmatpush1.msra.mxu0 0.0
    %640 = vmatprep.subr.mxu0 0.0
    %641 = vmatpush1.msra.mxu0 0.0
    %642 = vmatprep.subr.mxu0 0.0
    %643 = vmatpush1.msra.mxu0 0.0
    %644 = vmatprep.subr.mxu0 0.0
    %645 = vmatpush1.msra.mxu0 0.0
    %646 = vmatprep.subr.mxu0 0.0
    %647 = vmatpush1.msra.mxu0 0.0
    %648 = vmatprep.subr.mxu0 0.0
    %649 = vmatpush1.msra.mxu0 0.0
    %650 = vmatprep.subr.mxu0 0.0
    %651 = vmatpush1.msra.mxu0 0.0
    %652 = vmatprep.subr.mxu0 0.0
    %653 = vmatpush1.msra.mxu0 0.0
    %654 = vmatprep.subr.mxu0 0.0
    %655 = vmatpush1.msra.mxu0 0.0
    %656 = vmatprep.subr.mxu0 0.0
    %657 = vmatpush1.msra.mxu0 0.0
    %658 = vmatprep.subr.mxu0 0.0
    %659 = vmatpush1.msra.mxu0 0.0
    %660 = vmatprep.subr.mxu0 0.0
    %661 = vmatpush1.msra.mxu0 0.0
    %662 = vmatprep.subr.mxu0 0.0
    %663 = vmatpush1.msra.mxu0 0.0
    %664 = vmatprep.subr.mxu0 0.0
    %665 = vmatpush1.msra.mxu0 0.0
    %666 = vmatprep.subr.mxu0 0.0
    %667 = vmatpush1.msra.mxu0 0.0
    %668 = vmatprep.subr.mxu0 0.0
    %669 = vmatpush1.msra.mxu0 0.0
    %670 = vmatprep.subr.mxu0 0.0
    %671 = vmatpush1.msra.mxu0 0.0
    %672 = vmatprep.subr.mxu0 0.0
    %673 = vmatpush1.msra.mxu0 0.0
    %674 = vmatprep.subr.mxu0 0.0
    %675 = vmatpush1.msra.mxu0 0.0
    %676 = vmatprep.subr.mxu0 0.0
    %677 = vmatpush1.msra.mxu0 0.0
    %678 = vmatprep.subr.mxu0 0.0
    %679 = vmatpush1.msra.mxu0 0.0
    %680 = vmatprep.subr.mxu0 0.0
    %681 = vmatpush1.msra.mxu0 0.0
    %682 = vmatprep.subr.mxu0 0.0
    %683 = vmatpush1.msra.mxu0 0.0
    %684 = vmatprep.subr.mxu0 0.0
    %685 = vmatpush1.msra.mxu0 0.0
    %686 = vmatprep.mubr.f32.mxu0 0.0
    %687 = vmatmul.mubr.f32.gmra.mrb[0].mxu0 %v620
    %v688 = vpop.f32.mrb[0].mxu0
    %v689 = vadd.f32 %v617, %v688
    %v690 = vpop.f32.mrb[0].mxu0
    %691 = vdwg.mxu0
    %vm692 = vcmp.ge.f32.partialorder %v689, 0.0
    %v693 = vmul.f32 %v689, 0.01
    %v694 = vsel %vm692, %v689, %v693
    %s695 = scalar_lea.vmem [#allocation5], 192
    %v696 = vld [vmem:[%s695] sm:$0xff]
    %v697 = vld [vmem:[%s695 + $0x8] sm:$0xff]
    %v698 = vld [vmem:[%s695 + $0x10] sm:$0xff]
    %v699 = vld [vmem:[%s695 + $0x18] sm:$0xff]
    %v700 = vld [vmem:[%s695 + $0x20] sm:$0xff]
    %v701 = vld [vmem:[%s695 + $0x28] sm:$0xff]
    %v702 = vld [vmem:[%s695 + $0x30] sm:$0xff]
    %v703 = vld [vmem:[%s695 + $0x38] sm:$0xff]
    %s704 = scalar_lea.vmem %s7, 3
    %v705 = vld [vmem:[%s704] sm:$0x1]
    %v707 = vlaneseq
    %v708 = vshrl.u32 %v707, 7
    %v709 = vsub.s32 0, %v708
    %v710 = vrot.slane %v705, %v709
    %v713 = vsel %vm238, %v694, 0
    %715 = vmatprep.subr.mxu0 0.0
    %716 = vmatpush1.msra.mxu0 %v696
    %717 = vmatprep.subr.mxu0 0.0
    %718 = vmatpush1.msra.mxu0 %v697
    %719 = vmatprep.subr.mxu0 0.0
    %720 = vmatpush1.msra.mxu0 %v698
    %721 = vmatprep.subr.mxu0 0.0
    %722 = vmatpush1.msra.mxu0 %v699
    %723 = vmatprep.subr.mxu0 0.0
    %724 = vmatpush1.msra.mxu0 %v700
    %725 = vmatprep.subr.mxu0 0.0
    %726 = vmatpush1.msra.mxu0 %v701
    %727 = vmatprep.subr.mxu0 0.0
    %728 = vmatpush1.msra.mxu0 %v702
    %729 = vmatprep.subr.mxu0 0.0
    %730 = vmatpush1.msra.mxu0 %v703
    %731 = vmatprep.subr.mxu0 0.0
    %732 = vmatpush1.msra.mxu0 0.0
    %733 = vmatprep.subr.mxu0 0.0
    %734 = vmatpush1.msra.mxu0 0.0
    %735 = vmatprep.subr.mxu0 0.0
    %736 = vmatpush1.msra.mxu0 0.0
    %737 = vmatprep.subr.mxu0 0.0
    %738 = vmatpush1.msra.mxu0 0.0
    %739 = vmatprep.subr.mxu0 0.0
    %740 = vmatpush1.msra.mxu0 0.0
    %741 = vmatprep.subr.mxu0 0.0
    %742 = vmatpush1.msra.mxu0 0.0
    %743 = vmatprep.subr.mxu0 0.0
    %744 = vmatpush1.msra.mxu0 0.0
    %745 = vmatprep.subr.mxu0 0.0
    %746 = vmatpush1.msra.mxu0 0.0
    %747 = vmatprep.subr.mxu0 0.0
    %748 = vmatpush1.msra.mxu0 0.0
    %749 = vmatprep.subr.mxu0 0.0
    %750 = vmatpush1.msra.mxu0 0.0
    %751 = vmatprep.subr.mxu0 0.0
    %752 = vmatpush1.msra.mxu0 0.0
    %753 = vmatprep.subr.mxu0 0.0
    %754 = vmatpush1.msra.mxu0 0.0
    %755 = vmatprep.subr.mxu0 0.0
    %756 = vmatpush1.msra.mxu0 0.0
    %757 = vmatprep.subr.mxu0 0.0
    %758 = vmatpush1.msra.mxu0 0.0
    %759 = vmatprep.subr.mxu0 0.0
    %760 = vmatpush1.msra.mxu0 0.0
    %761 = vmatprep.subr.mxu0 0.0
    %762 = vmatpush1.msra.mxu0 0.0
    %763 = vmatprep.subr.mxu0 0.0
    %764 = vmatpush1.msra.mxu0 0.0
    %765 = vmatprep.subr.mxu0 0.0
    %766 = vmatpush1.msra.mxu0 0.0
    %767 = vmatprep.subr.mxu0 0.0
    %768 = vmatpush1.msra.mxu0 0.0
    %769 = vmatprep.subr.mxu0 0.0
    %770 = vmatpush1.msra.mxu0 0.0
    %771 = vmatprep.subr.mxu0 0.0
    %772 = vmatpush1.msra.mxu0 0.0
    %773 = vmatprep.subr.mxu0 0.0
    %774 = vmatpush1.msra.mxu0 0.0
    %775 = vmatprep.subr.mxu0 0.0
    %776 = vmatpush1.msra.mxu0 0.0
    %777 = vmatprep.subr.mxu0 0.0
    %778 = vmatpush1.msra.mxu0 0.0
    %779 = vmatprep.mubr.f32.mxu0 0.0
    %780 = vmatmul.mubr.f32.gmra.mrb[0].mxu0 %v713
    %v781 = vpop.f32.mrb[0].mxu0
    %v782 = vadd.f32 %v710, %v781
    %v783 = vpop.f32.mrb[0].mxu0
    %784 = vdwg.mxu0
    %vm785 = vcmp.ge.f32.partialorder %v782, 0.0
    %v786 = vmul.f32 %v782, 0.01
    %v787 = vsel %vm785, %v782, %v786
    %s788 = scalar_lea.vmem [#allocation7], 128
    %v789 = vld [vmem:[%s788] sm:$0xff]
    %v790 = vld [vmem:[%s788 + $0x8] sm:$0xff]
    %v791 = vld [vmem:[%s788 + $0x10] sm:$0xff]
    %v792 = vld [vmem:[%s788 + $0x18] sm:$0xff]
    %v793 = vld [vmem:[%s788 + $0x20] sm:$0xff]
    %v794 = vld [vmem:[%s788 + $0x28] sm:$0xff]
    %v795 = vld [vmem:[%s788 + $0x30] sm:$0xff]
    %v796 = vld [vmem:[%s788 + $0x38] sm:$0xff]
    %v797 = vld [vmem:[%s788 + $0x40] sm:$0xff]
    %v798 = vld [vmem:[%s788 + $0x48] sm:$0xff]
    %v799 = vld [vmem:[%s788 + $0x50] sm:$0xff]
    %v800 = vld [vmem:[%s788 + $0x58] sm:$0xff]
    %v801 = vld [vmem:[%s788 + $0x60] sm:$0xff]
    %v802 = vld [vmem:[%s788 + $0x68] sm:$0xff]
    %v803 = vld [vmem:[%s788 + $0x70] sm:$0xff]
    %v804 = vld [vmem:[%s788 + $0x78] sm:$0xff]
    %s805 = scalar_lea.vmem %s9, 2
    %v806 = vld [vmem:[%s805] sm:$0x3]
    %v808 = vlaneseq
    %v809 = vshrl.u32 %v808, 7
    %v810 = vsub.s32 0, %v809
    %v811 = vrot.slane %v806, %v810
    %v812 = vlaneseq
    %v813 = vshrl.u32 %v812, 7
    %v814 = vsub.s32 1, %v813
    %v815 = vrot.slane %v806, %v814
    %v819 = vsel %vm238, %v787, 0
    %821 = vmatprep.subr.mxu0 %v790
    %822 = vmatpush1.msra.mxu0 %v789
    %823 = vmatprep.subr.mxu0 %v792
    %824 = vmatpush1.msra.mxu0 %v791
    %825 = vmatprep.subr.mxu0 %v794
    %826 = vmatpush1.msra.mxu0 %v793
    %827 = vmatprep.subr.mxu0 %v796
    %828 = vmatpush1.msra.mxu0 %v795
    %829 = vmatprep.subr.mxu0 %v798
    %830 = vmatpush1.msra.mxu0 %v797
    %831 = vmatprep.subr.mxu0 %v800
    %832 = vmatpush1.msra.mxu0 %v799
    %833 = vmatprep.subr.mxu0 %v802
    %834 = vmatpush1.msra.mxu0 %v801
    %835 = vmatprep.subr.mxu0 %v804
    %836 = vmatpush1.msra.mxu0 %v803
    %837 = vmatprep.subr.mxu0 0.0
    %838 = vmatpush1.msra.mxu0 0.0
    %839 = vmatprep.subr.mxu0 0.0
    %840 = vmatpush1.msra.mxu0 0.0
    %841 = vmatprep.subr.mxu0 0.0
    %842 = vmatpush1.msra.mxu0 0.0
    %843 = vmatprep.subr.mxu0 0.0
    %844 = vmatpush1.msra.mxu0 0.0
    %845 = vmatprep.subr.mxu0 0.0
    %846 = vmatpush1.msra.mxu0 0.0
    %847 = vmatprep.subr.mxu0 0.0
    %848 = vmatpush1.msra.mxu0 0.0
    %849 = vmatprep.subr.mxu0 0.0
    %850 = vmatpush1.msra.mxu0 0.0
    %851 = vmatprep.subr.mxu0 0.0
    %852 = vmatpush1.msra.mxu0 0.0
    %853 = vmatprep.subr.mxu0 0.0
    %854 = vmatpush1.msra.mxu0 0.0
    %855 = vmatprep.subr.mxu0 0.0
    %856 = vmatpush1.msra.mxu0 0.0
    %857 = vmatprep.subr.mxu0 0.0
    %858 = vmatpush1.msra.mxu0 0.0
    %859 = vmatprep.subr.mxu0 0.0
    %860 = vmatpush1.msra.mxu0 0.0
    %861 = vmatprep.subr.mxu0 0.0
    %862 = vmatpush1.msra.mxu0 0.0
    %863 = vmatprep.subr.mxu0 0.0
    %864 = vmatpush1.msra.mxu0 0.0
    %865 = vmatprep.subr.mxu0 0.0
    %866 = vmatpush1.msra.mxu0 0.0
    %867 = vmatprep.subr.mxu0 0.0
    %868 = vmatpush1.msra.mxu0 0.0
    %869 = vmatprep.subr.mxu0 0.0
    %870 = vmatpush1.msra.mxu0 0.0
    %871 = vmatprep.subr.mxu0 0.0
    %872 = vmatpush1.msra.mxu0 0.0
    %873 = vmatprep.subr.mxu0 0.0
    %874 = vmatpush1.msra.mxu0 0.0
    %875 = vmatprep.subr.mxu0 0.0
    %876 = vmatpush1.msra.mxu0 0.0
    %877 = vmatprep.subr.mxu0 0.0
    %878 = vmatpush1.msra.mxu0 0.0
    %879 = vmatprep.subr.mxu0 0.0
    %880 = vmatpush1.msra.mxu0 0.0
    %881 = vmatprep.subr.mxu0 0.0
    %882 = vmatpush1.msra.mxu0 0.0
    %883 = vmatprep.subr.mxu0 0.0
    %884 = vmatpush1.msra.mxu0 0.0
    %885 = vmatprep.mubr.f32.mxu0 0.0
    %886 = vmatmul.mubr.f32.gmra.mrb[0].mxu0 %v819
    %v887 = vpop.f32.mrb[0].mxu0
    %v888 = vadd.f32 %v811, %v887
    %v889 = vpop.f32.mrb[0].mxu0
    %v890 = vadd.f32 %v815, %v889
    %891 = vdwg.mxu0
    %v892 = vtanh.pop %v888
    %v893 = vmul.f32 %v892, 1.442695
    %v894 = vpow.pop %v893
    %v895 = vmul.f32 %v134, %v894
    %v896 = vadd.f32 %v895, %v890
    %v897 = vadd.f32 %v515, %v892
    %v898 = vld [vmem:[#allocation8] sm:$0xff]
    %s899 = scalar_lea.vmem [#allocation8], 8
    %v900 = vld [vmem:[%s899] sm:$0xff]
    %s901 = scalar_lea.vmem [#allocation8], 16
    %v902 = vld [vmem:[%s901] sm:$0xff]
    %s903 = scalar_lea.vmem [#allocation8], 24
    %v904 = vld [vmem:[%s903] sm:$0xff]
    %v906 = vsel %vm146, %v896, 0
    %908 = vmatprep.subr.mxu0 0.0
    %909 = vmatpush1.msra.mxu0 %v902
    %910 = vmatprep.subr.mxu0 0.0
    %911 = vmatpush1.msra.mxu0 0.0
    %912 = vmatprep.subr.mxu0 0.0
    %913 = vmatpush1.msra.mxu0 0.0
    %914 = vmatprep.subr.mxu0 0.0
    %915 = vmatpush1.msra.mxu0 0.0
    %916 = vmatprep.subr.mxu0 0.0
    %917 = vmatpush1.msra.mxu0 0.0
    %918 = vmatprep.subr.mxu0 0.0
    %919 = vmatpush1.msra.mxu0 0.0
    %920 = vmatprep.subr.mxu0 0.0
    %921 = vmatpush1.msra.mxu0 0.0
    %922 = vmatprep.subr.mxu0 0.0
    %923 = vmatpush1.msra.mxu0 0.0
    %924 = vmatprep.subr.mxu0 0.0
    %925 = vmatpush1.msra.mxu0 0.0
    %926 = vmatprep.subr.mxu0 0.0
    %927 = vmatpush1.msra.mxu0 0.0
    %928 = vmatprep.subr.mxu0 0.0
    %929 = vmatpush1.msra.mxu0 0.0
    %930 = vmatprep.subr.mxu0 0.0
    %931 = vmatpush1.msra.mxu0 0.0
    %932 = vmatprep.subr.mxu0 0.0
    %933 = vmatpush1.msra.mxu0 0.0
    %934 = vmatprep.subr.mxu0 0.0
    %935 = vmatpush1.msra.mxu0 0.0
    %936 = vmatprep.subr.mxu0 0.0
    %937 = vmatpush1.msra.mxu0 0.0
    %938 = vmatprep.subr.mxu0 0.0
    %939 = vmatpush1.msra.mxu0 0.0
    %940 = vmatprep.subr.mxu0 0.0
    %941 = vmatpush1.msra.mxu0 0.0
    %942 = vmatprep.subr.mxu0 0.0
    %943 = vmatpush1.msra.mxu0 0.0
    %944 = vmatprep.subr.mxu0 0.0
    %945 = vmatpush1.msra.mxu0 0.0
    %946 = vmatprep.subr.mxu0 0.0
    %947 = vmatpush1.msra.mxu0 0.0
    %948 = vmatprep.subr.mxu0 0.0
    %949 = vmatpush1.msra.mxu0 0.0
    %950 = vmatprep.subr.mxu0 0.0
    %951 = vmatpush1.msra.mxu0 0.0
    %952 = vmatprep.subr.mxu0 0.0
    %953 = vmatpush1.msra.mxu0 0.0
    %954 = vmatprep.subr.mxu0 0.0
    %955 = vmatpush1.msra.mxu0 0.0
    %956 = vmatprep.subr.mxu0 0.0
    %957 = vmatpush1.msra.mxu0 0.0
    %958 = vmatprep.subr.mxu0 0.0
    %959 = vmatpush1.msra.mxu0 0.0
    %960 = vmatprep.subr.mxu0 0.0
    %961 = vmatpush1.msra.mxu0 0.0
    %962 = vmatprep.subr.mxu0 0.0
    %963 = vmatpush1.msra.mxu0 0.0
    %964 = vmatprep.subr.mxu0 0.0
    %965 = vmatpush1.msra.mxu0 0.0
    %966 = vmatprep.subr.mxu0 0.0
    %967 = vmatpush1.msra.mxu0 0.0
    %968 = vmatprep.subr.mxu0 0.0
    %969 = vmatpush1.msra.mxu0 0.0
    %970 = vmatprep.subr.mxu0 0.0
    %971 = vmatpush1.msra.mxu0 0.0
    %972 = vmatprep.mubr.f32.mxu0 0.0
    %973 = vmatmul.mubr.f32.gmra.mrb[0].mxu0 %v906
    %v974 = vpop.f32.mrb[0].mxu0
    %v975 = vadd.f32 0.0, %v974
    %v976 = vpop.f32.mrb[0].mxu0
    %977 = vdwg.mxu0
    %978 = vmatprep.subr.mxu0 0.0
    %979 = vmatpush1.msra.mxu0 %v898
    %980 = vmatprep.subr.mxu0 0.0
    %981 = vmatpush1.msra.mxu0 0.0
    %982 = vmatprep.subr.mxu0 0.0
    %983 = vmatpush1.msra.mxu0 0.0
    %984 = vmatprep.subr.mxu0 0.0
    %985 = vmatpush1.msra.mxu0 0.0
    %986 = vmatprep.subr.mxu0 0.0
    %987 = vmatpush1.msra.mxu0 0.0
    %988 = vmatprep.subr.mxu0 0.0
    %989 = vmatpush1.msra.mxu0 0.0
    %990 = vmatprep.subr.mxu0 0.0
    %991 = vmatpush1.msra.mxu0 0.0
    %992 = vmatprep.subr.mxu0 0.0
    %993 = vmatpush1.msra.mxu0 0.0
    %994 = vmatprep.subr.mxu0 0.0
    %995 = vmatpush1.msra.mxu0 0.0
    %996 = vmatprep.subr.mxu0 0.0
    %997 = vmatpush1.msra.mxu0 0.0
    %998 = vmatprep.subr.mxu0 0.0
    %999 = vmatpush1.msra.mxu0 0.0
    %1000 = vmatprep.subr.mxu0 0.0
    %1001 = vmatpush1.msra.mxu0 0.0
    %1002 = vmatprep.subr.mxu0 0.0
    %1003 = vmatpush1.msra.mxu0 0.0
    %1004 = vmatprep.subr.mxu0 0.0
    %1005 = vmatpush1.msra.mxu0 0.0
    %1006 = vmatprep.subr.mxu0 0.0
    %1007 = vmatpush1.msra.mxu0 0.0
    %1008 = vmatprep.subr.mxu0 0.0
    %1009 = vmatpush1.msra.mxu0 0.0
    %1010 = vmatprep.subr.mxu0 0.0
    %1011 = vmatpush1.msra.mxu0 0.0
    %1012 = vmatprep.subr.mxu0 0.0
    %1013 = vmatpush1.msra.mxu0 0.0
    %1014 = vmatprep.subr.mxu0 0.0
    %1015 = vmatpush1.msra.mxu0 0.0
    %1016 = vmatprep.subr.mxu0 0.0
    %1017 = vmatpush1.msra.mxu0 0.0
    %1018 = vmatprep.subr.mxu0 0.0
    %1019 = vmatpush1.msra.mxu0 0.0
    %1020 = vmatprep.subr.mxu0 0.0
    %1021 = vmatpush1.msra.mxu0 0.0
    %1022 = vmatprep.subr.mxu0 0.0
    %1023 = vmatpush1.msra.mxu0 0.0
    %1024 = vmatprep.subr.mxu0 0.0
    %1025 = vmatpush1.msra.mxu0 0.0
    %1026 = vmatprep.subr.mxu0 0.0
    %1027 = vmatpush1.msra.mxu0 0.0
    %1028 = vmatprep.subr.mxu0 0.0
    %1029 = vmatpush1.msra.mxu0 0.0
    %1030 = vmatprep.subr.mxu0 0.0
    %1031 = vmatpush1.msra.mxu0 0.0
    %1032 = vmatprep.subr.mxu0 0.0
    %1033 = vmatpush1.msra.mxu0 0.0
    %1034 = vmatprep.subr.mxu0 0.0
    %1035 = vmatpush1.msra.mxu0 0.0
    %1036 = vmatprep.subr.mxu0 0.0
    %1037 = vmatpush1.msra.mxu0 0.0
    %1038 = vmatprep.subr.mxu0 0.0
    %1039 = vmatpush1.msra.mxu0 0.0
    %1040 = vmatprep.subr.mxu0 0.0
    %1041 = vmatpush1.msra.mxu0 0.0
    %1042 = vmatprep.mubr.f32.mxu0 0.0
    %1043 = vmatmul.mubr.f32.gmra.mrb[0].mxu0 %v527
    %v1044 = vpop.f32.mrb[0].mxu0
    %v1045 = vadd.f32 %v975, %v1044
    %v1046 = vpop.f32.mrb[0].mxu0
    %1047 = vdwg.mxu0
    %1048 = vmatprep.subr.mxu0 0.0
    %1049 = vmatpush1.msra.mxu0 %v904
    %1050 = vmatprep.subr.mxu0 0.0
    %1051 = vmatpush1.msra.mxu0 0.0
    %1052 = vmatprep.subr.mxu0 0.0
    %1053 = vmatpush1.msra.mxu0 0.0
    %1054 = vmatprep.subr.mxu0 0.0
    %1055 = vmatpush1.msra.mxu0 0.0
    %1056 = vmatprep.subr.mxu0 0.0
    %1057 = vmatpush1.msra.mxu0 0.0
    %1058 = vmatprep.subr.mxu0 0.0
    %1059 = vmatpush1.msra.mxu0 0.0
    %1060 = vmatprep.subr.mxu0 0.0
    %1061 = vmatpush1.msra.mxu0 0.0
    %1062 = vmatprep.subr.mxu0 0.0
    %1063 = vmatpush1.msra.mxu0 0.0
    %1064 = vmatprep.subr.mxu0 0.0
    %1065 = vmatpush1.msra.mxu0 0.0
    %1066 = vmatprep.subr.mxu0 0.0
    %1067 = vmatpush1.msra.mxu0 0.0
    %1068 = vmatprep.subr.mxu0 0.0
    %1069 = vmatpush1.msra.mxu0 0.0
    %1070 = vmatprep.subr.mxu0 0.0
    %1071 = vmatpush1.msra.mxu0 0.0
    %1072 = vmatprep.subr.mxu0 0.0
    %1073 = vmatpush1.msra.mxu0 0.0
    %1074 = vmatprep.subr.mxu0 0.0
    %1075 = vmatpush1.msra.mxu0 0.0
    %1076 = vmatprep.subr.mxu0 0.0
    %1077 = vmatpush1.msra.mxu0 0.0
    %1078 = vmatprep.subr.mxu0 0.0
    %1079 = vmatpush1.msra.mxu0 0.0
    %1080 = vmatprep.subr.mxu0 0.0
    %1081 = vmatpush1.msra.mxu0 0.0
    %1082 = vmatprep.subr.mxu0 0.0
    %1083 = vmatpush1.msra.mxu0 0.0
    %1084 = vmatprep.subr.mxu0 0.0
    %1085 = vmatpush1.msra.mxu0 0.0
    %1086 = vmatprep.subr.mxu0 0.0
    %1087 = vmatpush1.msra.mxu0 0.0
    %1088 = vmatprep.subr.mxu0 0.0
    %1089 = vmatpush1.msra.mxu0 0.0
    %1090 = vmatprep.subr.mxu0 0.0
    %1091 = vmatpush1.msra.mxu0 0.0
    %1092 = vmatprep.subr.mxu0 0.0
    %1093 = vmatpush1.msra.mxu0 0.0
    %1094 = vmatprep.subr.mxu0 0.0
    %1095 = vmatpush1.msra.mxu0 0.0
    %1096 = vmatprep.subr.mxu0 0.0
    %1097 = vmatpush1.msra.mxu0 0.0
    %1098 = vmatprep.subr.mxu0 0.0
    %1099 = vmatpush1.msra.mxu0 0.0
    %1100 = vmatprep.subr.mxu0 0.0
    %1101 = vmatpush1.msra.mxu0 0.0
    %1102 = vmatprep.subr.mxu0 0.0
    %1103 = vmatpush1.msra.mxu0 0.0
    %1104 = vmatprep.subr.mxu0 0.0
    %1105 = vmatpush1.msra.mxu0 0.0
    %1106 = vmatprep.subr.mxu0 0.0
    %1107 = vmatpush1.msra.mxu0 0.0
    %1108 = vmatprep.subr.mxu0 0.0
    %1109 = vmatpush1.msra.mxu0 0.0
    %1110 = vmatprep.subr.mxu0 0.0
    %1111 = vmatpush1.msra.mxu0 0.0
    %1112 = vmatprep.mubr.f32.mxu0 0.0
    %1113 = vmatmul.mubr.f32.gmra.mrb[0].mxu0 %v906
    %v1114 = vpop.f32.mrb[0].mxu0
    %v1115 = vadd.f32 0.0, %v1114
    %v1116 = vpop.f32.mrb[0].mxu0
    %1117 = vdwg.mxu0
    %1118 = vmatprep.subr.mxu0 0.0
    %1119 = vmatpush1.msra.mxu0 %v900
    %1120 = vmatprep.subr.mxu0 0.0
    %1121 = vmatpush1.msra.mxu0 0.0
    %1122 = vmatprep.subr.mxu0 0.0
    %1123 = vmatpush1.msra.mxu0 0.0
    %1124 = vmatprep.subr.mxu0 0.0
    %1125 = vmatpush1.msra.mxu0 0.0
    %1126 = vmatprep.subr.mxu0 0.0
    %1127 = vmatpush1.msra.mxu0 0.0
    %1128 = vmatprep.subr.mxu0 0.0
    %1129 = vmatpush1.msra.mxu0 0.0
    %1130 = vmatprep.subr.mxu0 0.0
    %1131 = vmatpush1.msra.mxu0 0.0
    %1132 = vmatprep.subr.mxu0 0.0
    %1133 = vmatpush1.msra.mxu0 0.0
    %1134 = vmatprep.subr.mxu0 0.0
    %1135 = vmatpush1.msra.mxu0 0.0
    %1136 = vmatprep.subr.mxu0 0.0
    %1137 = vmatpush1.msra.mxu0 0.0
    %1138 = vmatprep.subr.mxu0 0.0
    %1139 = vmatpush1.msra.mxu0 0.0
    %1140 = vmatprep.subr.mxu0 0.0
    %1141 = vmatpush1.msra.mxu0 0.0
    %1142 = vmatprep.subr.mxu0 0.0
    %1143 = vmatpush1.msra.mxu0 0.0
    %1144 = vmatprep.subr.mxu0 0.0
    %1145 = vmatpush1.msra.mxu0 0.0
    %1146 = vmatprep.subr.mxu0 0.0
    %1147 = vmatpush1.msra.mxu0 0.0
    %1148 = vmatprep.subr.mxu0 0.0
    %1149 = vmatpush1.msra.mxu0 0.0
    %1150 = vmatprep.subr.mxu0 0.0
    %1151 = vmatpush1.msra.mxu0 0.0
    %1152 = vmatprep.subr.mxu0 0.0
    %1153 = vmatpush1.msra.mxu0 0.0
    %1154 = vmatprep.subr.mxu0 0.0
    %1155 = vmatpush1.msra.mxu0 0.0
    %1156 = vmatprep.subr.mxu0 0.0
    %1157 = vmatpush1.msra.mxu0 0.0
    %1158 = vmatprep.subr.mxu0 0.0
    %1159 = vmatpush1.msra.mxu0 0.0
    %1160 = vmatprep.subr.mxu0 0.0
    %1161 = vmatpush1.msra.mxu0 0.0
    %1162 = vmatprep.subr.mxu0 0.0
    %1163 = vmatpush1.msra.mxu0 0.0
    %1164 = vmatprep.subr.mxu0 0.0
    %1165 = vmatpush1.msra.mxu0 0.0
    %1166 = vmatprep.subr.mxu0 0.0
    %1167 = vmatpush1.msra.mxu0 0.0
    %1168 = vmatprep.subr.mxu0 0.0
    %1169 = vmatpush1.msra.mxu0 0.0
    %1170 = vmatprep.subr.mxu0 0.0
    %1171 = vmatpush1.msra.mxu0 0.0
    %1172 = vmatprep.subr.mxu0 0.0
    %1173 = vmatpush1.msra.mxu0 0.0
    %1174 = vmatprep.subr.mxu0 0.0
    %1175 = vmatpush1.msra.mxu0 0.0
    %1176 = vmatprep.subr.mxu0 0.0
    %1177 = vmatpush1.msra.mxu0 0.0
    %1178 = vmatprep.subr.mxu0 0.0
    %1179 = vmatpush1.msra.mxu0 0.0
    %1180 = vmatprep.subr.mxu0 0.0
    %1181 = vmatpush1.msra.mxu0 0.0
    %1182 = vmatprep.mubr.f32.mxu0 0.0
    %1183 = vmatmul.mubr.f32.gmra.mrb[0].mxu0 %v527
    %v1184 = vpop.f32.mrb[0].mxu0
    %v1185 = vadd.f32 %v1115, %v1184
    %v1186 = vpop.f32.mrb[0].mxu0
    %1187 = vdwg.mxu0
    %s1188 = scalar_lea.vmem [#allocation2], 2
    %v1189 = vld [vmem:[%s1188] sm:$0x1]
    %s1190 = scalar_lea.vmem %s2, 2
    %v1191 = vld [vmem:[%s1190] sm:$0x1]
    %v1193 = vlaneseq
    %v1194 = vshrl.u32 %v1193, 7
    %v1195 = vsub.s32 0, %v1194
    %v1196 = vrot.slane %v1191, %v1195
    %v1198 = vadd.f32 %v1045, %v1196
    %v1200 = vlaneseq
    %v1201 = vshrl.u32 %v1200, 7
    %v1202 = vsub.s32 0, %v1201
    %v1203 = vrot.slane %v1189, %v1202
    %v1205 = vmul.f32 %v1203, %v1198
    %s1206 = scalar_lea.vmem [#allocation2], 3
    %v1207 = vld [vmem:[%s1206] sm:$0x1]
    %s1208 = scalar_lea.vmem %s2, 3
    %v1209 = vld [vmem:[%s1208] sm:$0x1]
    %v1211 = vlaneseq
    %v1212 = vshrl.u32 %v1211, 7
    %v1213 = vsub.s32 0, %v1212
    %v1214 = vrot.slane %v1209, %v1213
    %v1216 = vadd.f32 %v1185, %v1214
    %v1218 = vlaneseq
    %v1219 = vshrl.u32 %v1218, 7
    %v1220 = vsub.s32 0, %v1219
    %v1221 = vrot.slane %v1207, %v1220
    %v1223 = vmul.f32 %v1221, %v1216
    %vm1224 = vcmp.ge.f32.partialorder %v1205, 0.0
    %v1225 = vmul.f32 %v1205, 0.95
    %v1226 = vsel %vm1224, %v1205, %v1225
    %vm1227 = vcmp.ge.f32.partialorder %v1223, 0.0
    %v1228 = vmul.f32 %v1223, 0.95
    %v1229 = vsel %vm1227, %v1223, %v1228
    %s1230 = scalar_lea.vmem %s4, 16
    %v1231 = vld [vmem:[%s1230] sm:$0xff]
    %s1232 = scalar_lea.vmem %s5, 2
    %v1233 = vld [vmem:[%s1232] sm:$0x1]
    %v1235 = vlaneseq
    %v1236 = vshrl.u32 %v1235, 7
    %v1237 = vsub.s32 0, %v1236
    %v1238 = vrot.slane %v1233, %v1237
    %v1241 = vsel %vm146, %v1226, 0
    %1243 = vmatprep.subr.mxu0 0.0
    %1244 = vmatpush1.msra.mxu0 %v1231
    %1245 = vmatprep.subr.mxu0 0.0
    %1246 = vmatpush1.msra.mxu0 0.0
    %1247 = vmatprep.subr.mxu0 0.0
    %1248 = vmatpush1.msra.mxu0 0.0
    %1249 = vmatprep.subr.mxu0 0.0
    %1250 = vmatpush1.msra.mxu0 0.0
    %1251 = vmatprep.subr.mxu0 0.0
    %1252 = vmatpush1.msra.mxu0 0.0
    %1253 = vmatprep.subr.mxu0 0.0
    %1254 = vmatpush1.msra.mxu0 0.0
    %1255 = vmatprep.subr.mxu0 0.0
    %1256 = vmatpush1.msra.mxu0 0.0
    %1257 = vmatprep.subr.mxu0 0.0
    %1258 = vmatpush1.msra.mxu0 0.0
    %1259 = vmatprep.subr.mxu0 0.0
    %1260 = vmatpush1.msra.mxu0 0.0
    %1261 = vmatprep.subr.mxu0 0.0
    %1262 = vmatpush1.msra.mxu0 0.0
    %1263 = vmatprep.subr.mxu0 0.0
    %1264 = vmatpush1.msra.mxu0 0.0
    %1265 = vmatprep.subr.mxu0 0.0
    %1266 = vmatpush1.msra.mxu0 0.0
    %1267 = vmatprep.subr.mxu0 0.0
    %1268 = vmatpush1.msra.mxu0 0.0
    %1269 = vmatprep.subr.mxu0 0.0
    %1270 = vmatpush1.msra.mxu0 0.0
    %1271 = vmatprep.subr.mxu0 0.0
    %1272 = vmatpush1.msra.mxu0 0.0
    %1273 = vmatprep.subr.mxu0 0.0
    %1274 = vmatpush1.msra.mxu0 0.0
    %1275 = vmatprep.subr.mxu0 0.0
    %1276 = vmatpush1.msra.mxu0 0.0
    %1277 = vmatprep.subr.mxu0 0.0
    %1278 = vmatpush1.msra.mxu0 0.0
    %1279 = vmatprep.subr.mxu0 0.0
    %1280 = vmatpush1.msra.mxu0 0.0
    %1281 = vmatprep.subr.mxu0 0.0
    %1282 = vmatpush1.msra.mxu0 0.0
    %1283 = vmatprep.subr.mxu0 0.0
    %1284 = vmatpush1.msra.mxu0 0.0
    %1285 = vmatprep.subr.mxu0 0.0
    %1286 = vmatpush1.msra.mxu0 0.0
    %1287 = vmatprep.subr.mxu0 0.0
    %1288 = vmatpush1.msra.mxu0 0.0
    %1289 = vmatprep.subr.mxu0 0.0
    %1290 = vmatpush1.msra.mxu0 0.0
    %1291 = vmatprep.subr.mxu0 0.0
    %1292 = vmatpush1.msra.mxu0 0.0
    %1293 = vmatprep.subr.mxu0 0.0
    %1294 = vmatpush1.msra.mxu0 0.0
    %1295 = vmatprep.subr.mxu0 0.0
    %1296 = vmatpush1.msra.mxu0 0.0
    %1297 = vmatprep.subr.mxu0 0.0
    %1298 = vmatpush1.msra.mxu0 0.0
    %1299 = vmatprep.subr.mxu0 0.0
    %1300 = vmatpush1.msra.mxu0 0.0
    %1301 = vmatprep.subr.mxu0 0.0
    %1302 = vmatpush1.msra.mxu0 0.0
    %1303 = vmatprep.subr.mxu0 0.0
    %1304 = vmatpush1.msra.mxu0 0.0
    %1305 = vmatprep.subr.mxu0 0.0
    %1306 = vmatpush1.msra.mxu0 0.0
    %1307 = vmatprep.mubr.f32.mxu0 0.0
    %1308 = vmatmul.mubr.f32.gmra.mrb[0].mxu0 %v1241
    %v1309 = vpop.f32.mrb[0].mxu0
    %v1310 = vadd.f32 %v1238, %v1309
    %v1311 = vpop.f32.mrb[0].mxu0
    %1312 = vdwg.mxu0
    %vm1313 = vcmp.ge.f32.partialorder %v1310, 0.0
    %v1314 = vmul.f32 %v1310, 0.01
    %v1315 = vsel %vm1313, %v1310, %v1314
    %s1316 = scalar_lea.vmem [#allocation5], 256
    %v1317 = vld [vmem:[%s1316] sm:$0xff]
    %v1318 = vld [vmem:[%s1316 + $0x8] sm:$0xff]
    %v1319 = vld [vmem:[%s1316 + $0x10] sm:$0xff]
    %v1320 = vld [vmem:[%s1316 + $0x18] sm:$0xff]
    %v1321 = vld [vmem:[%s1316 + $0x20] sm:$0xff]
    %v1322 = vld [vmem:[%s1316 + $0x28] sm:$0xff]
    %v1323 = vld [vmem:[%s1316 + $0x30] sm:$0xff]
    %v1324 = vld [vmem:[%s1316 + $0x38] sm:$0xff]
    %s1325 = scalar_lea.vmem %s7, 4
    %v1326 = vld [vmem:[%s1325] sm:$0x1]
    %v1328 = vlaneseq
    %v1329 = vshrl.u32 %v1328, 7
    %v1330 = vsub.s32 0, %v1329
    %v1331 = vrot.slane %v1326, %v1330
    %v1334 = vsel %vm238, %v1315, 0
    %1336 = vmatprep.subr.mxu0 0.0
    %1337 = vmatpush1.msra.mxu0 %v1317
    %1338 = vmatprep.subr.mxu0 0.0
    %1339 = vmatpush1.msra.mxu0 %v1318
    %1340 = vmatprep.subr.mxu0 0.0
    %1341 = vmatpush1.msra.mxu0 %v1319
    %1342 = vmatprep.subr.mxu0 0.0
    %1343 = vmatpush1.msra.mxu0 %v1320
    %1344 = vmatprep.subr.mxu0 0.0
    %1345 = vmatpush1.msra.mxu0 %v1321
    %1346 = vmatprep.subr.mxu0 0.0
    %1347 = vmatpush1.msra.mxu0 %v1322
    %1348 = vmatprep.subr.mxu0 0.0
    %1349 = vmatpush1.msra.mxu0 %v1323
    %1350 = vmatprep.subr.mxu0 0.0
    %1351 = vmatpush1.msra.mxu0 %v1324
    %1352 = vmatprep.subr.mxu0 0.0
    %1353 = vmatpush1.msra.mxu0 0.0
    %1354 = vmatprep.subr.mxu0 0.0
    %1355 = vmatpush1.msra.mxu0 0.0
    %1356 = vmatprep.subr.mxu0 0.0
    %1357 = vmatpush1.msra.mxu0 0.0
    %1358 = vmatprep.subr.mxu0 0.0
    %1359 = vmatpush1.msra.mxu0 0.0
    %1360 = vmatprep.subr.mxu0 0.0
    %1361 = vmatpush1.msra.mxu0 0.0
    %1362 = vmatprep.subr.mxu0 0.0
    %1363 = vmatpush1.msra.mxu0 0.0
    %1364 = vmatprep.subr.mxu0 0.0
    %1365 = vmatpush1.msra.mxu0 0.0
    %1366 = vmatprep.subr.mxu0 0.0
    %1367 = vmatpush1.msra.mxu0 0.0
    %1368 = vmatprep.subr.mxu0 0.0
    %1369 = vmatpush1.msra.mxu0 0.0
    %1370 = vmatprep.subr.mxu0 0.0
    %1371 = vmatpush1.msra.mxu0 0.0
    %1372 = vmatprep.subr.mxu0 0.0
    %1373 = vmatpush1.msra.mxu0 0.0
    %1374 = vmatprep.subr.mxu0 0.0
    %1375 = vmatpush1.msra.mxu0 0.0
    %1376 = vmatprep.subr.mxu0 0.0
    %1377 = vmatpush1.msra.mxu0 0.0
    %1378 = vmatprep.subr.mxu0 0.0
    %1379 = vmatpush1.msra.mxu0 0.0
    %1380 = vmatprep.subr.mxu0 0.0
    %1381 = vmatpush1.msra.mxu0 0.0
    %1382 = vmatprep.subr.mxu0 0.0
    %1383 = vmatpush1.msra.mxu0 0.0
    %1384 = vmatprep.subr.mxu0 0.0
    %1385 = vmatpush1.msra.mxu0 0.0
    %1386 = vmatprep.subr.mxu0 0.0
    %1387 = vmatpush1.msra.mxu0 0.0
    %1388 = vmatprep.subr.mxu0 0.0
    %1389 = vmatpush1.msra.mxu0 0.0
    %1390 = vmatprep.subr.mxu0 0.0
    %1391 = vmatpush1.msra.mxu0 0.0
    %1392 = vmatprep.subr.mxu0 0.0
    %1393 = vmatpush1.msra.mxu0 0.0
    %1394 = vmatprep.subr.mxu0 0.0
    %1395 = vmatpush1.msra.mxu0 0.0
    %1396 = vmatprep.subr.mxu0 0.0
    %1397 = vmatpush1.msra.mxu0 0.0
    %1398 = vmatprep.subr.mxu0 0.0
    %1399 = vmatpush1.msra.mxu0 0.0
    %1400 = vmatprep.mubr.f32.mxu0 0.0
    %1401 = vmatmul.mubr.f32.gmra.mrb[0].mxu0 %v1334
    %v1402 = vpop.f32.mrb[0].mxu0
    %v1403 = vadd.f32 %v1331, %v1402
    %v1404 = vpop.f32.mrb[0].mxu0
    %1405 = vdwg.mxu0
    %vm1406 = vcmp.ge.f32.partialorder %v1403, 0.0
    %v1407 = vmul.f32 %v1403, 0.01
    %v1408 = vsel %vm1406, %v1403, %v1407
    %s1409 = scalar_lea.vmem [#allocation5], 320
    %v1410 = vld [vmem:[%s1409] sm:$0xff]
    %v1411 = vld [vmem:[%s1409 + $0x8] sm:$0xff]
    %v1412 = vld [vmem:[%s1409 + $0x10] sm:$0xff]
    %v1413 = vld [vmem:[%s1409 + $0x18] sm:$0xff]
    %v1414 = vld [vmem:[%s1409 + $0x20] sm:$0xff]
    %v1415 = vld [vmem:[%s1409 + $0x28] sm:$0xff]
    %v1416 = vld [vmem:[%s1409 + $0x30] sm:$0xff]
    %v1417 = vld [vmem:[%s1409 + $0x38] sm:$0xff]
    %s1418 = scalar_lea.vmem %s7, 5
    %v1419 = vld [vmem:[%s1418] sm:$0x1]
    %v1421 = vlaneseq
    %v1422 = vshrl.u32 %v1421, 7
    %v1423 = vsub.s32 0, %v1422
    %v1424 = vrot.slane %v1419, %v1423
    %v1427 = vsel %vm238, %v1408, 0
    %1429 = vmatprep.subr.mxu0 0.0
    %1430 = vmatpush1.msra.mxu0 %v1410
    %1431 = vmatprep.subr.mxu0 0.0
    %1432 = vmatpush1.msra.mxu0 %v1411
    %1433 = vmatprep.subr.mxu0 0.0
    %1434 = vmatpush1.msra.mxu0 %v1412
    %1435 = vmatprep.subr.mxu0 0.0
    %1436 = vmatpush1.msra.mxu0 %v1413
    %1437 = vmatprep.subr.mxu0 0.0
    %1438 = vmatpush1.msra.mxu0 %v1414
    %1439 = vmatprep.subr.mxu0 0.0
    %1440 = vmatpush1.msra.mxu0 %v1415
    %1441 = vmatprep.subr.mxu0 0.0
    %1442 = vmatpush1.msra.mxu0 %v1416
    %1443 = vmatprep.subr.mxu0 0.0
    %1444 = vmatpush1.msra.mxu0 %v1417
    %1445 = vmatprep.subr.mxu0 0.0
    %1446 = vmatpush1.msra.mxu0 0.0
    %1447 = vmatprep.subr.mxu0 0.0
    %1448 = vmatpush1.msra.mxu0 0.0
    %1449 = vmatprep.subr.mxu0 0.0
    %1450 = vmatpush1.msra.mxu0 0.0
    %1451 = vmatprep.subr.mxu0 0.0
    %1452 = vmatpush1.msra.mxu0 0.0
    %1453 = vmatprep.subr.mxu0 0.0
    %1454 = vmatpush1.msra.mxu0 0.0
    %1455 = vmatprep.subr.mxu0 0.0
    %1456 = vmatpush1.msra.mxu0 0.0
    %1457 = vmatprep.subr.mxu0 0.0
    %1458 = vmatpush1.msra.mxu0 0.0
    %1459 = vmatprep.subr.mxu0 0.0
    %1460 = vmatpush1.msra.mxu0 0.0
    %1461 = vmatprep.subr.mxu0 0.0
    %1462 = vmatpush1.msra.mxu0 0.0
    %1463 = vmatprep.subr.mxu0 0.0
    %1464 = vmatpush1.msra.mxu0 0.0
    %1465 = vmatprep.subr.mxu0 0.0
    %1466 = vmatpush1.msra.mxu0 0.0
    %1467 = vmatprep.subr.mxu0 0.0
    %1468 = vmatpush1.msra.mxu0 0.0
    %1469 = vmatprep.subr.mxu0 0.0
    %1470 = vmatpush1.msra.mxu0 0.0
    %1471 = vmatprep.subr.mxu0 0.0
    %1472 = vmatpush1.msra.mxu0 0.0
    %1473 = vmatprep.subr.mxu0 0.0
    %1474 = vmatpush1.msra.mxu0 0.0
    %1475 = vmatprep.subr.mxu0 0.0
    %1476 = vmatpush1.msra.mxu0 0.0
    %1477 = vmatprep.subr.mxu0 0.0
    %1478 = vmatpush1.msra.mxu0 0.0
    %1479 = vmatprep.subr.mxu0 0.0
    %1480 = vmatpush1.msra.mxu0 0.0
    %1481 = vmatprep.subr.mxu0 0.0
    %1482 = vmatpush1.msra.mxu0 0.0
    %1483 = vmatprep.subr.mxu0 0.0
    %1484 = vmatpush1.msra.mxu0 0.0
    %1485 = vmatprep.subr.mxu0 0.0
    %1486 = vmatpush1.msra.mxu0 0.0
    %1487 = vmatprep.subr.mxu0 0.0
    %1488 = vmatpush1.msra.mxu0 0.0
    %1489 = vmatprep.subr.mxu0 0.0
    %1490 = vmatpush1.msra.mxu0 0.0
    %1491 = vmatprep.subr.mxu0 0.0
    %1492 = vmatpush1.msra.mxu0 0.0
    %1493 = vmatprep.mubr.f32.mxu0 0.0
    %1494 = vmatmul.mubr.f32.gmra.mrb[0].mxu0 %v1427
    %v1495 = vpop.f32.mrb[0].mxu0
    %v1496 = vadd.f32 %v1424, %v1495
    %v1497 = vpop.f32.mrb[0].mxu0
    %1498 = vdwg.mxu0
    %vm1499 = vcmp.ge.f32.partialorder %v1496, 0.0
    %v1500 = vmul.f32 %v1496, 0.01
    %v1501 = vsel %vm1499, %v1496, %v1500
    %s1502 = scalar_lea.vmem [#allocation7], 256
    %v1503 = vld [vmem:[%s1502] sm:$0xff]
    %v1504 = vld [vmem:[%s1502 + $0x8] sm:$0xff]
    %v1505 = vld [vmem:[%s1502 + $0x10] sm:$0xff]
    %v1506 = vld [vmem:[%s1502 + $0x18] sm:$0xff]
    %v1507 = vld [vmem:[%s1502 + $0x20] sm:$0xff]
    %v1508 = vld [vmem:[%s1502 + $0x28] sm:$0xff]
    %v1509 = vld [vmem:[%s1502 + $0x30] sm:$0xff]
    %v1510 = vld [vmem:[%s1502 + $0x38] sm:$0xff]
    %v1511 = vld [vmem:[%s1502 + $0x40] sm:$0xff]
    %v1512 = vld [vmem:[%s1502 + $0x48] sm:$0xff]
    %v1513 = vld [vmem:[%s1502 + $0x50] sm:$0xff]
    %v1514 = vld [vmem:[%s1502 + $0x58] sm:$0xff]
    %v1515 = vld [vmem:[%s1502 + $0x60] sm:$0xff]
    %v1516 = vld [vmem:[%s1502 + $0x68] sm:$0xff]
    %v1517 = vld [vmem:[%s1502 + $0x70] sm:$0xff]
    %v1518 = vld [vmem:[%s1502 + $0x78] sm:$0xff]
    %s1519 = scalar_lea.vmem %s9, 4
    %v1520 = vld [vmem:[%s1519] sm:$0x3]
    %v1522 = vlaneseq
    %v1523 = vshrl.u32 %v1522, 7
    %v1524 = vsub.s32 0, %v1523
    %v1525 = vrot.slane %v1520, %v1524
    %v1526 = vlaneseq
    %v1527 = vshrl.u32 %v1526, 7
    %v1528 = vsub.s32 1, %v1527
    %v1529 = vrot.slane %v1520, %v1528
    %v1533 = vsel %vm238, %v1501, 0
    %1535 = vmatprep.subr.mxu0 %v1504
    %1536 = vmatpush1.msra.mxu0 %v1503
    %1537 = vmatprep.subr.mxu0 %v1506
    %1538 = vmatpush1.msra.mxu0 %v1505
    %1539 = vmatprep.subr.mxu0 %v1508
    %1540 = vmatpush1.msra.mxu0 %v1507
    %1541 = vmatprep.subr.mxu0 %v1510
    %1542 = vmatpush1.msra.mxu0 %v1509
    %1543 = vmatprep.subr.mxu0 %v1512
    %1544 = vmatpush1.msra.mxu0 %v1511
    %1545 = vmatprep.subr.mxu0 %v1514
    %1546 = vmatpush1.msra.mxu0 %v1513
    %1547 = vmatprep.subr.mxu0 %v1516
    %1548 = vmatpush1.msra.mxu0 %v1515
    %1549 = vmatprep.subr.mxu0 %v1518
    %1550 = vmatpush1.msra.mxu0 %v1517
    %1551 = vmatprep.subr.mxu0 0.0
    %1552 = vmatpush1.msra.mxu0 0.0
    %1553 = vmatprep.subr.mxu0 0.0
    %1554 = vmatpush1.msra.mxu0 0.0
    %1555 = vmatprep.subr.mxu0 0.0
    %1556 = vmatpush1.msra.mxu0 0.0
    %1557 = vmatprep.subr.mxu0 0.0
    %1558 = vmatpush1.msra.mxu0 0.0
    %1559 = vmatprep.subr.mxu0 0.0
    %1560 = vmatpush1.msra.mxu0 0.0
    %1561 = vmatprep.subr.mxu0 0.0
    %1562 = vmatpush1.msra.mxu0 0.0
    %1563 = vmatprep.subr.mxu0 0.0
    %1564 = vmatpush1.msra.mxu0 0.0
    %1565 = vmatprep.subr.mxu0 0.0
    %1566 = vmatpush1.msra.mxu0 0.0
    %1567 = vmatprep.subr.mxu0 0.0
    %1568 = vmatpush1.msra.mxu0 0.0
    %1569 = vmatprep.subr.mxu0 0.0
    %1570 = vmatpush1.msra.mxu0 0.0
    %1571 = vmatprep.subr.mxu0 0.0
    %1572 = vmatpush1.msra.mxu0 0.0
    %1573 = vmatprep.subr.mxu0 0.0
    %1574 = vmatpush1.msra.mxu0 0.0
    %1575 = vmatprep.subr.mxu0 0.0
    %1576 = vmatpush1.msra.mxu0 0.0
    %1577 = vmatprep.subr.mxu0 0.0
    %1578 = vmatpush1.msra.mxu0 0.0
    %1579 = vmatprep.subr.mxu0 0.0
    %1580 = vmatpush1.msra.mxu0 0.0
    %1581 = vmatprep.subr.mxu0 0.0
    %1582 = vmatpush1.msra.mxu0 0.0
    %1583 = vmatprep.subr.mxu0 0.0
    %1584 = vmatpush1.msra.mxu0 0.0
    %1585 = vmatprep.subr.mxu0 0.0
    %1586 = vmatpush1.msra.mxu0 0.0
    %1587 = vmatprep.subr.mxu0 0.0
    %1588 = vmatpush1.msra.mxu0 0.0
    %1589 = vmatprep.subr.mxu0 0.0
    %1590 = vmatpush1.msra.mxu0 0.0
    %1591 = vmatprep.subr.mxu0 0.0
    %1592 = vmatpush1.msra.mxu0 0.0
    %1593 = vmatprep.subr.mxu0 0.0
    %1594 = vmatpush1.msra.mxu0 0.0
    %1595 = vmatprep.subr.mxu0 0.0
    %1596 = vmatpush1.msra.mxu0 0.0
    %1597 = vmatprep.subr.mxu0 0.0
    %1598 = vmatpush1.msra.mxu0 0.0
    %1599 = vmatprep.mubr.f32.mxu0 0.0
    %1600 = vmatmul.mubr.f32.gmra.mrb[0].mxu0 %v1533
    %v1601 = vpop.f32.mrb[0].mxu0
    %v1602 = vadd.f32 %v1525, %v1601
    %v1603 = vpop.f32.mrb[0].mxu0
    %v1604 = vadd.f32 %v1529, %v1603
    %1605 = vdwg.mxu0
    %v1606 = vtanh.pop %v1602
    %v1607 = vmul.f32 %v1606, 1.442695
    %v1608 = vpow.pop %v1607
    %v1609 = vmul.f32 %v1229, %v1608
    %v1610 = vadd.f32 %v1609, %v1604
    %v1611 = vadd.f32 %v897, %v1606
    %s1612 = scalar_lea.vmem %s4, 24
    %v1613 = vld [vmem:[%s1612] sm:$0xff]
    %s1614 = scalar_lea.vmem %s5, 3
    %v1615 = vld [vmem:[%s1614] sm:$0x1]
    %v1617 = vlaneseq
    %v1618 = vshrl.u32 %v1617, 7
    %v1619 = vsub.s32 0, %v1618
    %v1620 = vrot.slane %v1615, %v1619
    %v1623 = vsel %vm146, %v1610, 0
    %1625 = vmatprep.subr.mxu0 0.0
    %1626 = vmatpush1.msra.mxu0 %v1613
    %1627 = vmatprep.subr.mxu0 0.0
    %1628 = vmatpush1.msra.mxu0 0.0
    %1629 = vmatprep.subr.mxu0 0.0
    %1630 = vmatpush1.msra.mxu0 0.0
    %1631 = vmatprep.subr.mxu0 0.0
    %1632 = vmatpush1.msra.mxu0 0.0
    %1633 = vmatprep.subr.mxu0 0.0
    %1634 = vmatpush1.msra.mxu0 0.0
    %1635 = vmatprep.subr.mxu0 0.0
    %1636 = vmatpush1.msra.mxu0 0.0
    %1637 = vmatprep.subr.mxu0 0.0
    %1638 = vmatpush1.msra.mxu0 0.0
    %1639 = vmatprep.subr.mxu0 0.0
    %1640 = vmatpush1.msra.mxu0 0.0
    %1641 = vmatprep.subr.mxu0 0.0
    %1642 = vmatpush1.msra.mxu0 0.0
    %1643 = vmatprep.subr.mxu0 0.0
    %1644 = vmatpush1.msra.mxu0 0.0
    %1645 = vmatprep.subr.mxu0 0.0
    %1646 = vmatpush1.msra.mxu0 0.0
    %1647 = vmatprep.subr.mxu0 0.0
    %1648 = vmatpush1.msra.mxu0 0.0
    %1649 = vmatprep.subr.mxu0 0.0
    %1650 = vmatpush1.msra.mxu0 0.0
    %1651 = vmatprep.subr.mxu0 0.0
    %1652 = vmatpush1.msra.mxu0 0.0
    %1653 = vmatprep.subr.mxu0 0.0
    %1654 = vmatpush1.msra.mxu0 0.0
    %1655 = vmatprep.subr.mxu0 0.0
    %1656 = vmatpush1.msra.mxu0 0.0
    %1657 = vmatprep.subr.mxu0 0.0
    %1658 = vmatpush1.msra.mxu0 0.0
    %1659 = vmatprep.subr.mxu0 0.0
    %1660 = vmatpush1.msra.mxu0 0.0
    %1661 = vmatprep.subr.mxu0 0.0
    %1662 = vmatpush1.msra.mxu0 0.0
    %1663 = vmatprep.subr.mxu0 0.0
    %1664 = vmatpush1.msra.mxu0 0.0
    %1665 = vmatprep.subr.mxu0 0.0
    %1666 = vmatpush1.msra.mxu0 0.0
    %1667 = vmatprep.subr.mxu0 0.0
    %1668 = vmatpush1.msra.mxu0 0.0
    %1669 = vmatprep.subr.mxu0 0.0
    %1670 = vmatpush1.msra.mxu0 0.0
    %1671 = vmatprep.subr.mxu0 0.0
    %1672 = vmatpush1.msra.mxu0 0.0
    %1673 = vmatprep.subr.mxu0 0.0
    %1674 = vmatpush1.msra.mxu0 0.0
    %1675 = vmatprep.subr.mxu0 0.0
    %1676 = vmatpush1.msra.mxu0 0.0
    %1677 = vmatprep.subr.mxu0 0.0
    %1678 = vmatpush1.msra.mxu0 0.0
    %1679 = vmatprep.subr.mxu0 0.0
    %1680 = vmatpush1.msra.mxu0 0.0
    %1681 = vmatprep.subr.mxu0 0.0
    %1682 = vmatpush1.msra.mxu0 0.0
    %1683 = vmatprep.subr.mxu0 0.0
    %1684 = vmatpush1.msra.mxu0 0.0
    %1685 = vmatprep.subr.mxu0 0.0
    %1686 = vmatpush1.msra.mxu0 0.0
    %1687 = vmatprep.subr.mxu0 0.0
    %1688 = vmatpush1.msra.mxu0 0.0
    %1689 = vmatprep.mubr.f32.mxu0 0.0
    %1690 = vmatmul.mubr.f32.gmra.mrb[0].mxu0 %v1623
    %v1691 = vpop.f32.mrb[0].mxu0
    %v1692 = vadd.f32 %v1620, %v1691
    %v1693 = vpop.f32.mrb[0].mxu0
    %1694 = vdwg.mxu0
    %vm1695 = vcmp.ge.f32.partialorder %v1692, 0.0
    %v1696 = vmul.f32 %v1692, 0.01
    %v1697 = vsel %vm1695, %v1692, %v1696
    %s1698 = scalar_lea.vmem [#allocation5], 384
    %v1699 = vld [vmem:[%s1698] sm:$0xff]
    %v1700 = vld [vmem:[%s1698 + $0x8] sm:$0xff]
    %v1701 = vld [vmem:[%s1698 + $0x10] sm:$0xff]
    %v1702 = vld [vmem:[%s1698 + $0x18] sm:$0xff]
    %v1703 = vld [vmem:[%s1698 + $0x20] sm:$0xff]
    %v1704 = vld [vmem:[%s1698 + $0x28] sm:$0xff]
    %v1705 = vld [vmem:[%s1698 + $0x30] sm:$0xff]
    %v1706 = vld [vmem:[%s1698 + $0x38] sm:$0xff]
    %s1707 = scalar_lea.vmem %s7, 6
    %v1708 = vld [vmem:[%s1707] sm:$0x1]
    %v1710 = vlaneseq
    %v1711 = vshrl.u32 %v1710, 7
    %v1712 = vsub.s32 0, %v1711
    %v1713 = vrot.slane %v1708, %v1712
    %v1716 = vsel %vm238, %v1697, 0
    %1718 = vmatprep.subr.mxu0 0.0
    %1719 = vmatpush1.msra.mxu0 %v1699
    %1720 = vmatprep.subr.mxu0 0.0
    %1721 = vmatpush1.msra.mxu0 %v1700
    %1722 = vmatprep.subr.mxu0 0.0
    %1723 = vmatpush1.msra.mxu0 %v1701
    %1724 = vmatprep.subr.mxu0 0.0
    %1725 = vmatpush1.msra.mxu0 %v1702
    %1726 = vmatprep.subr.mxu0 0.0
    %1727 = vmatpush1.msra.mxu0 %v1703
    %1728 = vmatprep.subr.mxu0 0.0
    %1729 = vmatpush1.msra.mxu0 %v1704
    %1730 = vmatprep.subr.mxu0 0.0
    %1731 = vmatpush1.msra.mxu0 %v1705
    %1732 = vmatprep.subr.mxu0 0.0
    %1733 = vmatpush1.msra.mxu0 %v1706
    %1734 = vmatprep.subr.mxu0 0.0
    %1735 = vmatpush1.msra.mxu0 0.0
    %1736 = vmatprep.subr.mxu0 0.0
    %1737 = vmatpush1.msra.mxu0 0.0
    %1738 = vmatprep.subr.mxu0 0.0
    %1739 = vmatpush1.msra.mxu0 0.0
    %1740 = vmatprep.subr.mxu0 0.0
    %1741 = vmatpush1.msra.mxu0 0.0
    %1742 = vmatprep.subr.mxu0 0.0
    %1743 = vmatpush1.msra.mxu0 0.0
    %1744 = vmatprep.subr.mxu0 0.0
    %1745 = vmatpush1.msra.mxu0 0.0
    %1746 = vmatprep.subr.mxu0 0.0
    %1747 = vmatpush1.msra.mxu0 0.0
    %1748 = vmatprep.subr.mxu0 0.0
    %1749 = vmatpush1.msra.mxu0 0.0
    %1750 = vmatprep.subr.mxu0 0.0
    %1751 = vmatpush1.msra.mxu0 0.0
    %1752 = vmatprep.subr.mxu0 0.0
    %1753 = vmatpush1.msra.mxu0 0.0
    %1754 = vmatprep.subr.mxu0 0.0
    %1755 = vmatpush1.msra.mxu0 0.0
    %1756 = vmatprep.subr.mxu0 0.0
    %1757 = vmatpush1.msra.mxu0 0.0
    %1758 = vmatprep.subr.mxu0 0.0
    %1759 = vmatpush1.msra.mxu0 0.0
    %1760 = vmatprep.subr.mxu0 0.0
    %1761 = vmatpush1.msra.mxu0 0.0
    %1762 = vmatprep.subr.mxu0 0.0
    %1763 = vmatpush1.msra.mxu0 0.0
    %1764 = vmatprep.subr.mxu0 0.0
    %1765 = vmatpush1.msra.mxu0 0.0
    %1766 = vmatprep.subr.mxu0 0.0
    %1767 = vmatpush1.msra.mxu0 0.0
    %1768 = vmatprep.subr.mxu0 0.0
    %1769 = vmatpush1.msra.mxu0 0.0
    %1770 = vmatprep.subr.mxu0 0.0
    %1771 = vmatpush1.msra.mxu0 0.0
    %1772 = vmatprep.subr.mxu0 0.0
    %1773 = vmatpush1.msra.mxu0 0.0
    %1774 = vmatprep.subr.mxu0 0.0
    %1775 = vmatpush1.msra.mxu0 0.0
    %1776 = vmatprep.subr.mxu0 0.0
    %1777 = vmatpush1.msra.mxu0 0.0
    %1778 = vmatprep.subr.mxu0 0.0
    %1779 = vmatpush1.msra.mxu0 0.0
    %1780 = vmatprep.subr.mxu0 0.0
    %1781 = vmatpush1.msra.mxu0 0.0
    %1782 = vmatprep.mubr.f32.mxu0 0.0
    %1783 = vmatmul.mubr.f32.gmra.mrb[0].mxu0 %v1716
    %v1784 = vpop.f32.mrb[0].mxu0
    %v1785 = vadd.f32 %v1713, %v1784
    %v1786 = vpop.f32.mrb[0].mxu0
    %1787 = vdwg.mxu0
    %vm1788 = vcmp.ge.f32.partialorder %v1785, 0.0
    %v1789 = vmul.f32 %v1785, 0.01
    %v1790 = vsel %vm1788, %v1785, %v1789
    %s1791 = scalar_lea.vmem [#allocation5], 448
    %v1792 = vld [vmem:[%s1791] sm:$0xff]
    %v1793 = vld [vmem:[%s1791 + $0x8] sm:$0xff]
    %v1794 = vld [vmem:[%s1791 + $0x10] sm:$0xff]
    %v1795 = vld [vmem:[%s1791 + $0x18] sm:$0xff]
    %v1796 = vld [vmem:[%s1791 + $0x20] sm:$0xff]
    %v1797 = vld [vmem:[%s1791 + $0x28] sm:$0xff]
    %v1798 = vld [vmem:[%s1791 + $0x30] sm:$0xff]
    %v1799 = vld [vmem:[%s1791 + $0x38] sm:$0xff]
    %s1800 = scalar_lea.vmem %s7, 7
    %v1801 = vld [vmem:[%s1800] sm:$0x1]
    %v1803 = vlaneseq
    %v1804 = vshrl.u32 %v1803, 7
    %v1805 = vsub.s32 0, %v1804
    %v1806 = vrot.slane %v1801, %v1805
    %v1809 = vsel %vm238, %v1790, 0
    %1811 = vmatprep.subr.mxu0 0.0
    %1812 = vmatpush1.msra.mxu0 %v1792
    %1813 = vmatprep.subr.mxu0 0.0
    %1814 = vmatpush1.msra.mxu0 %v1793
    %1815 = vmatprep.subr.mxu0 0.0
    %1816 = vmatpush1.msra.mxu0 %v1794
    %1817 = vmatprep.subr.mxu0 0.0
    %1818 = vmatpush1.msra.mxu0 %v1795
    %1819 = vmatprep.subr.mxu0 0.0
    %1820 = vmatpush1.msra.mxu0 %v1796
    %1821 = vmatprep.subr.mxu0 0.0
    %1822 = vmatpush1.msra.mxu0 %v1797
    %1823 = vmatprep.subr.mxu0 0.0
    %1824 = vmatpush1.msra.mxu0 %v1798
    %1825 = vmatprep.subr.mxu0 0.0
    %1826 = vmatpush1.msra.mxu0 %v1799
    %1827 = vmatprep.subr.mxu0 0.0
    %1828 = vmatpush1.msra.mxu0 0.0
    %1829 = vmatprep.subr.mxu0 0.0
    %1830 = vmatpush1.msra.mxu0 0.0
    %1831 = vmatprep.subr.mxu0 0.0
    %1832 = vmatpush1.msra.mxu0 0.0
    %1833 = vmatprep.subr.mxu0 0.0
    %1834 = vmatpush1.msra.mxu0 0.0
    %1835 = vmatprep.subr.mxu0 0.0
    %1836 = vmatpush1.msra.mxu0 0.0
    %1837 = vmatprep.subr.mxu0 0.0
    %1838 = vmatpush1.msra.mxu0 0.0
    %1839 = vmatprep.subr.mxu0 0.0
    %1840 = vmatpush1.msra.mxu0 0.0
    %1841 = vmatprep.subr.mxu0 0.0
    %1842 = vmatpush1.msra.mxu0 0.0
    %1843 = vmatprep.subr.mxu0 0.0
    %1844 = vmatpush1.msra.mxu0 0.0
    %1845 = vmatprep.subr.mxu0 0.0
    %1846 = vmatpush1.msra.mxu0 0.0
    %1847 = vmatprep.subr.mxu0 0.0
    %1848 = vmatpush1.msra.mxu0 0.0
    %1849 = vmatprep.subr.mxu0 0.0
    %1850 = vmatpush1.msra.mxu0 0.0
    %1851 = vmatprep.subr.mxu0 0.0
    %1852 = vmatpush1.msra.mxu0 0.0
    %1853 = vmatprep.subr.mxu0 0.0
    %1854 = vmatpush1.msra.mxu0 0.0
    %1855 = vmatprep.subr.mxu0 0.0
    %1856 = vmatpush1.msra.mxu0 0.0
    %1857 = vmatprep.subr.mxu0 0.0
    %1858 = vmatpush1.msra.mxu0 0.0
    %1859 = vmatprep.subr.mxu0 0.0
    %1860 = vmatpush1.msra.mxu0 0.0
    %1861 = vmatprep.subr.mxu0 0.0
    %1862 = vmatpush1.msra.mxu0 0.0
    %1863 = vmatprep.subr.mxu0 0.0
    %1864 = vmatpush1.msra.mxu0 0.0
    %1865 = vmatprep.subr.mxu0 0.0
    %1866 = vmatpush1.msra.mxu0 0.0
    %1867 = vmatprep.subr.mxu0 0.0
    %1868 = vmatpush1.msra.mxu0 0.0
    %1869 = vmatprep.subr.mxu0 0.0
    %1870 = vmatpush1.msra.mxu0 0.0
    %1871 = vmatprep.subr.mxu0 0.0
    %1872 = vmatpush1.msra.mxu0 0.0
    %1873 = vmatprep.subr.mxu0 0.0
    %1874 = vmatpush1.msra.mxu0 0.0
    %1875 = vmatprep.mubr.f32.mxu0 0.0
    %1876 = vmatmul.mubr.f32.gmra.mrb[0].mxu0 %v1809
    %v1877 = vpop.f32.mrb[0].mxu0
    %v1878 = vadd.f32 %v1806, %v1877
    %v1879 = vpop.f32.mrb[0].mxu0
    %1880 = vdwg.mxu0
    %vm1881 = vcmp.ge.f32.partialorder %v1878, 0.0
    %v1882 = vmul.f32 %v1878, 0.01
    %v1883 = vsel %vm1881, %v1878, %v1882
    %s1884 = scalar_lea.vmem [#allocation7], 384
    %v1885 = vld [vmem:[%s1884] sm:$0xff]
    %v1886 = vld [vmem:[%s1884 + $0x8] sm:$0xff]
    %v1887 = vld [vmem:[%s1884 + $0x10] sm:$0xff]
    %v1888 = vld [vmem:[%s1884 + $0x18] sm:$0xff]
    %v1889 = vld [vmem:[%s1884 + $0x20] sm:$0xff]
    %v1890 = vld [vmem:[%s1884 + $0x28] sm:$0xff]
    %v1891 = vld [vmem:[%s1884 + $0x30] sm:$0xff]
    %v1892 = vld [vmem:[%s1884 + $0x38] sm:$0xff]
    %v1893 = vld [vmem:[%s1884 + $0x40] sm:$0xff]
    %v1894 = vld [vmem:[%s1884 + $0x48] sm:$0xff]
    %v1895 = vld [vmem:[%s1884 + $0x50] sm:$0xff]
    %v1896 = vld [vmem:[%s1884 + $0x58] sm:$0xff]
    %v1897 = vld [vmem:[%s1884 + $0x60] sm:$0xff]
    %v1898 = vld [vmem:[%s1884 + $0x68] sm:$0xff]
    %v1899 = vld [vmem:[%s1884 + $0x70] sm:$0xff]
    %v1900 = vld [vmem:[%s1884 + $0x78] sm:$0xff]
    %s1901 = scalar_lea.vmem %s9, 6
    %v1902 = vld [vmem:[%s1901] sm:$0x3]
    %v1904 = vlaneseq
    %v1905 = vshrl.u32 %v1904, 7
    %v1906 = vsub.s32 0, %v1905
    %v1907 = vrot.slane %v1902, %v1906
    %v1908 = vlaneseq
    %v1909 = vshrl.u32 %v1908, 7
    %v1910 = vsub.s32 1, %v1909
    %v1911 = vrot.slane %v1902, %v1910
    %v1915 = vsel %vm238, %v1883, 0
    %1917 = vmatprep.subr.mxu0 %v1886
    %1918 = vmatpush1.msra.mxu0 %v1885
    %1919 = vmatprep.subr.mxu0 %v1888
    %1920 = vmatpush1.msra.mxu0 %v1887
    %1921 = vmatprep.subr.mxu0 %v1890
    %1922 = vmatpush1.msra.mxu0 %v1889
    %1923 = vmatprep.subr.mxu0 %v1892
    %1924 = vmatpush1.msra.mxu0 %v1891
    %1925 = vmatprep.subr.mxu0 %v1894
    %1926 = vmatpush1.msra.mxu0 %v1893
    %1927 = vmatprep.subr.mxu0 %v1896
    %1928 = vmatpush1.msra.mxu0 %v1895
    %1929 = vmatprep.subr.mxu0 %v1898
    %1930 = vmatpush1.msra.mxu0 %v1897
    %1931 = vmatprep.subr.mxu0 %v1900
    %1932 = vmatpush1.msra.mxu0 %v1899
    %1933 = vmatprep.subr.mxu0 0.0
    %1934 = vmatpush1.msra.mxu0 0.0
    %1935 = vmatprep.subr.mxu0 0.0
    %1936 = vmatpush1.msra.mxu0 0.0
    %1937 = vmatprep.subr.mxu0 0.0
    %1938 = vmatpush1.msra.mxu0 0.0
    %1939 = vmatprep.subr.mxu0 0.0
    %1940 = vmatpush1.msra.mxu0 0.0
    %1941 = vmatprep.subr.mxu0 0.0
    %1942 = vmatpush1.msra.mxu0 0.0
    %1943 = vmatprep.subr.mxu0 0.0
    %1944 = vmatpush1.msra.mxu0 0.0
    %1945 = vmatprep.subr.mxu0 0.0
    %1946 = vmatpush1.msra.mxu0 0.0
    %1947 = vmatprep.subr.mxu0 0.0
    %1948 = vmatpush1.msra.mxu0 0.0
    %1949 = vmatprep.subr.mxu0 0.0
    %1950 = vmatpush1.msra.mxu0 0.0
    %1951 = vmatprep.subr.mxu0 0.0
    %1952 = vmatpush1.msra.mxu0 0.0
    %1953 = vmatprep.subr.mxu0 0.0
    %1954 = vmatpush1.msra.mxu0 0.0
    %1955 = vmatprep.subr.mxu0 0.0
    %1956 = vmatpush1.msra.mxu0 0.0
    %1957 = vmatprep.subr.mxu0 0.0
    %1958 = vmatpush1.msra.mxu0 0.0
    %1959 = vmatprep.subr.mxu0 0.0
    %1960 = vmatpush1.msra.mxu0 0.0
    %1961 = vmatprep.subr.mxu0 0.0
    %1962 = vmatpush1.msra.mxu0 0.0
    %1963 = vmatprep.subr.mxu0 0.0
    %1964 = vmatpush1.msra.mxu0 0.0
    %1965 = vmatprep.subr.mxu0 0.0
    %1966 = vmatpush1.msra.mxu0 0.0
    %1967 = vmatprep.subr.mxu0 0.0
    %1968 = vmatpush1.msra.mxu0 0.0
    %1969 = vmatprep.subr.mxu0 0.0
    %1970 = vmatpush1.msra.mxu0 0.0
    %1971 = vmatprep.subr.mxu0 0.0
    %1972 = vmatpush1.msra.mxu0 0.0
    %1973 = vmatprep.subr.mxu0 0.0
    %1974 = vmatpush1.msra.mxu0 0.0
    %1975 = vmatprep.subr.mxu0 0.0
    %1976 = vmatpush1.msra.mxu0 0.0
    %1977 = vmatprep.subr.mxu0 0.0
    %1978 = vmatpush1.msra.mxu0 0.0
    %1979 = vmatprep.subr.mxu0 0.0
    %1980 = vmatpush1.msra.mxu0 0.0
    %1981 = vmatprep.mubr.f32.mxu0 0.0
    %1982 = vmatmul.mubr.f32.gmra.mrb[0].mxu0 %v1915
    %v1983 = vpop.f32.mrb[0].mxu0
    %v1984 = vadd.f32 %v1907, %v1983
    %v1985 = vpop.f32.mrb[0].mxu0
    %v1986 = vadd.f32 %v1911, %v1985
    %1987 = vdwg.mxu0
    %v1988 = vtanh.pop %v1984
    %v1989 = vmul.f32 %v1988, 1.442695
    %v1990 = vpow.pop %v1989
    %v1991 = vmul.f32 %v1226, %v1990
    %v1992 = vadd.f32 %v1991, %v1986
    %v1993 = vadd.f32 %v1611, %v1988
    %s1994 = scalar_lea.vmem [#allocation8], 32
    %v1995 = vld [vmem:[%s1994] sm:$0xff]
    %s1996 = scalar_lea.vmem [#allocation8], 40
    %v1997 = vld [vmem:[%s1996] sm:$0xff]
    %s1998 = scalar_lea.vmem [#allocation8], 48
    %v1999 = vld [vmem:[%s1998] sm:$0xff]
    %s2000 = scalar_lea.vmem [#allocation8], 56
    %v2001 = vld [vmem:[%s2000] sm:$0xff]
    %v2003 = vsel %vm146, %v1992, 0
    %2005 = vmatprep.subr.mxu0 0.0
    %2006 = vmatpush1.msra.mxu0 %v1999
    %2007 = vmatprep.subr.mxu0 0.0
    %2008 = vmatpush1.msra.mxu0 0.0
    %2009 = vmatprep.subr.mxu0 0.0
    %2010 = vmatpush1.msra.mxu0 0.0
    %2011 = vmatprep.subr.mxu0 0.0
    %2012 = vmatpush1.msra.mxu0 0.0
    %2013 = vmatprep.subr.mxu0 0.0
    %2014 = vmatpush1.msra.mxu0 0.0
    %2015 = vmatprep.subr.mxu0 0.0
    %2016 = vmatpush1.msra.mxu0 0.0
    %2017 = vmatprep.subr.mxu0 0.0
    %2018 = vmatpush1.msra.mxu0 0.0
    %2019 = vmatprep.subr.mxu0 0.0
    %2020 = vmatpush1.msra.mxu0 0.0
    %2021 = vmatprep.subr.mxu0 0.0
    %2022 = vmatpush1.msra.mxu0 0.0
    %2023 = vmatprep.subr.mxu0 0.0
    %2024 = vmatpush1.msra.mxu0 0.0
    %2025 = vmatprep.subr.mxu0 0.0
    %2026 = vmatpush1.msra.mxu0 0.0
    %2027 = vmatprep.subr.mxu0 0.0
    %2028 = vmatpush1.msra.mxu0 0.0
    %2029 = vmatprep.subr.mxu0 0.0
    %2030 = vmatpush1.msra.mxu0 0.0
    %2031 = vmatprep.subr.mxu0 0.0
    %2032 = vmatpush1.msra.mxu0 0.0
    %2033 = vmatprep.subr.mxu0 0.0
    %2034 = vmatpush1.msra.mxu0 0.0
    %2035 = vmatprep.subr.mxu0 0.0
    %2036 = vmatpush1.msra.mxu0 0.0
    %2037 = vmatprep.subr.mxu0 0.0
    %2038 = vmatpush1.msra.mxu0 0.0
    %2039 = vmatprep.subr.mxu0 0.0
    %2040 = vmatpush1.msra.mxu0 0.0
    %2041 = vmatprep.subr.mxu0 0.0
    %2042 = vmatpush1.msra.mxu0 0.0
    %2043 = vmatprep.subr.mxu0 0.0
    %2044 = vmatpush1.msra.mxu0 0.0
    %2045 = vmatprep.subr.mxu0 0.0
    %2046 = vmatpush1.msra.mxu0 0.0
    %2047 = vmatprep.subr.mxu0 0.0
    %2048 = vmatpush1.msra.mxu0 0.0
    %2049 = vmatprep.subr.mxu0 0.0
    %2050 = vmatpush1.msra.mxu0 0.0
    %2051 = vmatprep.subr.mxu0 0.0
    %2052 = vmatpush1.msra.mxu0 0.0
    %2053 = vmatprep.subr.mxu0 0.0
    %2054 = vmatpush1.msra.mxu0 0.0
    %2055 = vmatprep.subr.mxu0 0.0
    %2056 = vmatpush1.msra.mxu0 0.0
    %2057 = vmatprep.subr.mxu0 0.0
    %2058 = vmatpush1.msra.mxu0 0.0
    %2059 = vmatprep.subr.mxu0 0.0
    %2060 = vmatpush1.msra.mxu0 0.0
    %2061 = vmatprep.subr.mxu0 0.0
    %2062 = vmatpush1.msra.mxu0 0.0
    %2063 = vmatprep.subr.mxu0 0.0
    %2064 = vmatpush1.msra.mxu0 0.0
    %2065 = vmatprep.subr.mxu0 0.0
    %2066 = vmatpush1.msra.mxu0 0.0
    %2067 = vmatprep.subr.mxu0 0.0
    %2068 = vmatpush1.msra.mxu0 0.0
    %2069 = vmatprep.mubr.f32.mxu0 0.0
    %2070 = vmatmul.mubr.f32.gmra.mrb[0].mxu0 %v2003
    %v2071 = vpop.f32.mrb[0].mxu0
    %v2072 = vadd.f32 0.0, %v2071
    %v2073 = vpop.f32.mrb[0].mxu0
    %2074 = vdwg.mxu0
    %2075 = vmatprep.subr.mxu0 0.0
    %2076 = vmatpush1.msra.mxu0 %v1995
    %2077 = vmatprep.subr.mxu0 0.0
    %2078 = vmatpush1.msra.mxu0 0.0
    %2079 = vmatprep.subr.mxu0 0.0
    %2080 = vmatpush1.msra.mxu0 0.0
    %2081 = vmatprep.subr.mxu0 0.0
    %2082 = vmatpush1.msra.mxu0 0.0
    %2083 = vmatprep.subr.mxu0 0.0
    %2084 = vmatpush1.msra.mxu0 0.0
    %2085 = vmatprep.subr.mxu0 0.0
    %2086 = vmatpush1.msra.mxu0 0.0
    %2087 = vmatprep.subr.mxu0 0.0
    %2088 = vmatpush1.msra.mxu0 0.0
    %2089 = vmatprep.subr.mxu0 0.0
    %2090 = vmatpush1.msra.mxu0 0.0
    %2091 = vmatprep.subr.mxu0 0.0
    %2092 = vmatpush1.msra.mxu0 0.0
    %2093 = vmatprep.subr.mxu0 0.0
    %2094 = vmatpush1.msra.mxu0 0.0
    %2095 = vmatprep.subr.mxu0 0.0
    %2096 = vmatpush1.msra.mxu0 0.0
    %2097 = vmatprep.subr.mxu0 0.0
    %2098 = vmatpush1.msra.mxu0 0.0
    %2099 = vmatprep.subr.mxu0 0.0
    %2100 = vmatpush1.msra.mxu0 0.0
    %2101 = vmatprep.subr.mxu0 0.0
    %2102 = vmatpush1.msra.mxu0 0.0
    %2103 = vmatprep.subr.mxu0 0.0
    %2104 = vmatpush1.msra.mxu0 0.0
    %2105 = vmatprep.subr.mxu0 0.0
    %2106 = vmatpush1.msra.mxu0 0.0
    %2107 = vmatprep.subr.mxu0 0.0
    %2108 = vmatpush1.msra.mxu0 0.0
    %2109 = vmatprep.subr.mxu0 0.0
    %2110 = vmatpush1.msra.mxu0 0.0
    %2111 = vmatprep.subr.mxu0 0.0
    %2112 = vmatpush1.msra.mxu0 0.0
    %2113 = vmatprep.subr.mxu0 0.0
    %2114 = vmatpush1.msra.mxu0 0.0
    %2115 = vmatprep.subr.mxu0 0.0
    %2116 = vmatpush1.msra.mxu0 0.0
    %2117 = vmatprep.subr.mxu0 0.0
    %2118 = vmatpush1.msra.mxu0 0.0
    %2119 = vmatprep.subr.mxu0 0.0
    %2120 = vmatpush1.msra.mxu0 0.0
    %2121 = vmatprep.subr.mxu0 0.0
    %2122 = vmatpush1.msra.mxu0 0.0
    %2123 = vmatprep.subr.mxu0 0.0
    %2124 = vmatpush1.msra.mxu0 0.0
    %2125 = vmatprep.subr.mxu0 0.0
    %2126 = vmatpush1.msra.mxu0 0.0
    %2127 = vmatprep.subr.mxu0 0.0
    %2128 = vmatpush1.msra.mxu0 0.0
    %2129 = vmatprep.subr.mxu0 0.0
    %2130 = vmatpush1.msra.mxu0 0.0
    %2131 = vmatprep.subr.mxu0 0.0
    %2132 = vmatpush1.msra.mxu0 0.0
    %2133 = vmatprep.subr.mxu0 0.0
    %2134 = vmatpush1.msra.mxu0 0.0
    %2135 = vmatprep.subr.mxu0 0.0
    %2136 = vmatpush1.msra.mxu0 0.0
    %2137 = vmatprep.subr.mxu0 0.0
    %2138 = vmatpush1.msra.mxu0 0.0
    %2139 = vmatprep.mubr.f32.mxu0 0.0
    %2140 = vmatmul.mubr.f32.gmra.mrb[0].mxu0 %v1623
    %v2141 = vpop.f32.mrb[0].mxu0
    %v2142 = vadd.f32 %v2072, %v2141
    %v2143 = vpop.f32.mrb[0].mxu0
    %2144 = vdwg.mxu0
    %2145 = vmatprep.subr.mxu0 0.0
    %2146 = vmatpush1.msra.mxu0 %v2001
    %2147 = vmatprep.subr.mxu0 0.0
    %2148 = vmatpush1.msra.mxu0 0.0
    %2149 = vmatprep.subr.mxu0 0.0
    %2150 = vmatpush1.msra.mxu0 0.0
    %2151 = vmatprep.subr.mxu0 0.0
    %2152 = vmatpush1.msra.mxu0 0.0
    %2153 = vmatprep.subr.mxu0 0.0
    %2154 = vmatpush1.msra.mxu0 0.0
    %2155 = vmatprep.subr.mxu0 0.0
    %2156 = vmatpush1.msra.mxu0 0.0
    %2157 = vmatprep.subr.mxu0 0.0
    %2158 = vmatpush1.msra.mxu0 0.0
    %2159 = vmatprep.subr.mxu0 0.0
    %2160 = vmatpush1.msra.mxu0 0.0
    %2161 = vmatprep.subr.mxu0 0.0
    %2162 = vmatpush1.msra.mxu0 0.0
    %2163 = vmatprep.subr.mxu0 0.0
    %2164 = vmatpush1.msra.mxu0 0.0
    %2165 = vmatprep.subr.mxu0 0.0
    %2166 = vmatpush1.msra.mxu0 0.0
    %2167 = vmatprep.subr.mxu0 0.0
    %2168 = vmatpush1.msra.mxu0 0.0
    %2169 = vmatprep.subr.mxu0 0.0
    %2170 = vmatpush1.msra.mxu0 0.0
    %2171 = vmatprep.subr.mxu0 0.0
    %2172 = vmatpush1.msra.mxu0 0.0
    %2173 = vmatprep.subr.mxu0 0.0
    %2174 = vmatpush1.msra.mxu0 0.0
    %2175 = vmatprep.subr.mxu0 0.0
    %2176 = vmatpush1.msra.mxu0 0.0
    %2177 = vmatprep.subr.mxu0 0.0
    %2178 = vmatpush1.msra.mxu0 0.0
    %2179 = vmatprep.subr.mxu0 0.0
    %2180 = vmatpush1.msra.mxu0 0.0
    %2181 = vmatprep.subr.mxu0 0.0
    %2182 = vmatpush1.msra.mxu0 0.0
    %2183 = vmatprep.subr.mxu0 0.0
    %2184 = vmatpush1.msra.mxu0 0.0
    %2185 = vmatprep.subr.mxu0 0.0
    %2186 = vmatpush1.msra.mxu0 0.0
    %2187 = vmatprep.subr.mxu0 0.0
    %2188 = vmatpush1.msra.mxu0 0.0
    %2189 = vmatprep.subr.mxu0 0.0
    %2190 = vmatpush1.msra.mxu0 0.0
    %2191 = vmatprep.subr.mxu0 0.0
    %2192 = vmatpush1.msra.mxu0 0.0
    %2193 = vmatprep.subr.mxu0 0.0
    %2194 = vmatpush1.msra.mxu0 0.0
    %2195 = vmatprep.subr.mxu0 0.0
    %2196 = vmatpush1.msra.mxu0 0.0
    %2197 = vmatprep.subr.mxu0 0.0
    %2198 = vmatpush1.msra.mxu0 0.0
    %2199 = vmatprep.subr.mxu0 0.0
    %2200 = vmatpush1.msra.mxu0 0.0
    %2201 = vmatprep.subr.mxu0 0.0
    %2202 = vmatpush1.msra.mxu0 0.0
    %2203 = vmatprep.subr.mxu0 0.0
    %2204 = vmatpush1.msra.mxu0 0.0
    %2205 = vmatprep.subr.mxu0 0.0
    %2206 = vmatpush1.msra.mxu0 0.0
    %2207 = vmatprep.subr.mxu0 0.0
    %2208 = vmatpush1.msra.mxu0 0.0
    %2209 = vmatprep.mubr.f32.mxu0 0.0
    %2210 = vmatmul.mubr.f32.gmra.mrb[0].mxu0 %v2003
    %v2211 = vpop.f32.mrb[0].mxu0
    %v2212 = vadd.f32 0.0, %v2211
    %v2213 = vpop.f32.mrb[0].mxu0
    %2214 = vdwg.mxu0
    %2215 = vmatprep.subr.mxu0 0.0
    %2216 = vmatpush1.msra.mxu0 %v1997
    %2217 = vmatprep.subr.mxu0 0.0
    %2218 = vmatpush1.msra.mxu0 0.0
    %2219 = vmatprep.subr.mxu0 0.0
    %2220 = vmatpush1.msra.mxu0 0.0
    %2221 = vmatprep.subr.mxu0 0.0
    %2222 = vmatpush1.msra.mxu0 0.0
    %2223 = vmatprep.subr.mxu0 0.0
    %2224 = vmatpush1.msra.mxu0 0.0
    %2225 = vmatprep.subr.mxu0 0.0
    %2226 = vmatpush1.msra.mxu0 0.0
    %2227 = vmatprep.subr.mxu0 0.0
    %2228 = vmatpush1.msra.mxu0 0.0
    %2229 = vmatprep.subr.mxu0 0.0
    %2230 = vmatpush1.msra.mxu0 0.0
    %2231 = vmatprep.subr.mxu0 0.0
    %2232 = vmatpush1.msra.mxu0 0.0
    %2233 = vmatprep.subr.mxu0 0.0
    %2234 = vmatpush1.msra.mxu0 0.0
    %2235 = vmatprep.subr.mxu0 0.0
    %2236 = vmatpush1.msra.mxu0 0.0
    %2237 = vmatprep.subr.mxu0 0.0
    %2238 = vmatpush1.msra.mxu0 0.0
    %2239 = vmatprep.subr.mxu0 0.0
    %2240 = vmatpush1.msra.mxu0 0.0
    %2241 = vmatprep.subr.mxu0 0.0
    %2242 = vmatpush1.msra.mxu0 0.0
    %2243 = vmatprep.subr.mxu0 0.0
    %2244 = vmatpush1.msra.mxu0 0.0
    %2245 = vmatprep.subr.mxu0 0.0
    %2246 = vmatpush1.msra.mxu0 0.0
    %2247 = vmatprep.subr.mxu0 0.0
    %2248 = vmatpush1.msra.mxu0 0.0
    %2249 = vmatprep.subr.mxu0 0.0
    %2250 = vmatpush1.msra.mxu0 0.0
    %2251 = vmatprep.subr.mxu0 0.0
    %2252 = vmatpush1.msra.mxu0 0.0
    %2253 = vmatprep.subr.mxu0 0.0
    %2254 = vmatpush1.msra.mxu0 0.0
    %2255 = vmatprep.subr.mxu0 0.0
    %2256 = vmatpush1.msra.mxu0 0.0
    %2257 = vmatprep.subr.mxu0 0.0
    %2258 = vmatpush1.msra.mxu0 0.0
    %2259 = vmatprep.subr.mxu0 0.0
    %2260 = vmatpush1.msra.mxu0 0.0
    %2261 = vmatprep.subr.mxu0 0.0
    %2262 = vmatpush1.msra.mxu0 0.0
    %2263 = vmatprep.subr.mxu0 0.0
    %2264 = vmatpush1.msra.mxu0 0.0
    %2265 = vmatprep.subr.mxu0 0.0
    %2266 = vmatpush1.msra.mxu0 0.0
    %2267 = vmatprep.subr.mxu0 0.0
    %2268 = vmatpush1.msra.mxu0 0.0
    %2269 = vmatprep.subr.mxu0 0.0
    %2270 = vmatpush1.msra.mxu0 0.0
    %2271 = vmatprep.subr.mxu0 0.0
    %2272 = vmatpush1.msra.mxu0 0.0
    %2273 = vmatprep.subr.mxu0 0.0
    %2274 = vmatpush1.msra.mxu0 0.0
    %2275 = vmatprep.subr.mxu0 0.0
    %2276 = vmatpush1.msra.mxu0 0.0
    %2277 = vmatprep.subr.mxu0 0.0
    %2278 = vmatpush1.msra.mxu0 0.0
    %2279 = vmatprep.mubr.f32.mxu0 0.0
    %2280 = vmatmul.mubr.f32.gmra.mrb[0].mxu0 %v1623
    %v2281 = vpop.f32.mrb[0].mxu0
    %v2282 = vadd.f32 %v2212, %v2281
    %v2283 = vpop.f32.mrb[0].mxu0
    %2284 = vdwg.mxu0
    %2286 = vrot.lane.b32.xlu0 %v2282, 8
    %v2287 = vpop.permute.xlu0 %2286
    %v2289 = vsel %vm146, %v2142, %v2287
    %vm2290 = vcmask 130048
    %2291 = vst.msk [vmem:[#allocation10] sm:$0xff] %vm2290, %v2289
    %v2292 = vsel %vm146, %v1993, 0.0
    %2293 = vadd.xlane.f32.xlu0 %v2292
    %v2294 = vpop.xlane.xlu0 %2293
    %2295 = vst [vmem:[%s12] sm:$0xff] %v2294
    // Predicated region
    $region62: #{_flow_forward_impl.1} parent=1 // pred_check
      _
    $region63: #{_flow_forward_impl.1} parent=1 // pred_check_branch
      %2297 = sbr.rel (0) target = $region65
    $region64: #{_flow_forward_impl.1} parent=1 // pred_region
      %s2299 = ssub.s32 128, 128
      %2300 = vsyncadd [#allocation4], %s2299
      %s2302 = sshll.u32 [#allocation10], 4
      %s2303 = int_to_ptr.vmem [resolvable:$true] %s2302
      %2305 = dma.vmem_to_hbm [thread:$0]  %s2303, 128, %s11, [#allocation4]
    $region65: #{_flow_forward_impl.1} parent=1 // pred_fallthru
      _
    // Predicated region
    $region66: #{_flow_forward_impl.1} parent=1 // pred_check
      _
    $region67: #{_flow_forward_impl.1} parent=1 // pred_check_branch
      %2307 = sbr.rel (0) target = $region69
    $region68: #{_flow_forward_impl.1} parent=1 // pred_region
      _
    $region69: #{_flow_forward_impl.1} parent=1 // pred_fallthru
      _
    // Predicated region
    $region70: #{_flow_forward_impl.1} parent=1 // pred_check
      _
    $region71: #{_flow_forward_impl.1} parent=1 // pred_check_branch
      %2309 = sbr.rel (0) target = $region73
    $region72: #{_flow_forward_impl.1} parent=1 // pred_region
      %2310 = dma.done [#allocation4], 128
    $region73: #{_flow_forward_impl.1} parent=1 // pred_fallthru
      _
    // Predicated region
    $region74: #{_flow_forward_impl.1} parent=1 // pred_check
      _
    $region75: #{_flow_forward_impl.1} parent=1 // pred_check_branch
      %2312 = sbr.rel (0) target = $region77
    $region76: #{_flow_forward_impl.1} parent=1 // pred_region
      _
    $region77: #{_flow_forward_impl.1} parent=1 // pred_fallthru
      _
    %2313 = vsyncpa [#allocation3], 1
    %2314 = vsyncpa [#allocation6], 1
    %2315 = vsyncpa [#allocation9], 1
    %2316 = vsyncpa [#allocation4], 1

</llo_original>
